<compile_context>
chip_gen: v7x
topology: tpu7x:2x2x1
jax: 0.10.0
libtpu: 0.0.40
codegen_flags: <defaults>
</compile_context>

<pallas_src>
import numpy as np

import jax
import jax.numpy as jnp
from jax.experimental import pallas as pl
from jax.experimental.pallas import tpu as pltpu


# Static architecture: (Cin, Cout, k, spatial_in, spatial_out) for each ConvTranspose2d.
# The 2x nearest Upsample sits after conv layer index 1 (0-based).
_LAYERS = (
    (1, 4, 3, 5, 7),
    (4, 8, 5, 7, 11),
    (8, 8, 3, 22, 24),
    (8, 4, 3, 24, 26),
    (4, 1, 3, 26, 28),
)
_UPSAMPLE_AFTER = 1
_CODE_HW = 5
_OUT_HW = 28


# ---------------------------------------------------------------------------
# One-time, host-side weight preparation (kept OFF the jitted hot path).
# ---------------------------------------------------------------------------
def _band_matrices(w_t, ow, out_pad):
    """ConvTranspose2d weight (Cin, Cout, kh, kw) -> kh MXU matrices.

    B[i] has shape (Cin*Wp_in, Cout*Wp_out) with Wp_in = OW + kw - 1 and
    Wp_out = OW + 2*out_pad, such that the stride-1/pad-0 conv-transpose equals
        sum_i  Xpad[i:i+OH, :] @ B[i]
    where Xpad is the per-channel zero-padded input laid out channel-major along lanes.
    Each output-channel block already carries `out_pad` zero columns on each side,
    i.e. it is laid out exactly as the next layer's padded input.
    """
    w_np = np.asarray(w_t, np.float32)
    cin, cout, kh, kw = w_np.shape
    # conv kernel == spatially flipped, in/out transposed conv-transpose kernel
    wc = np.transpose(w_np[:, :, ::-1, ::-1], (1, 0, 2, 3))      # (Cout, Cin, kh, kw)
    wp_in = ow + kw - 1
    wp_out = ow + 2 * out_pad
    bmat = np.zeros((kh, cin * wp_in, cout * wp_out), np.float32)
    for i in range(kh):
        for ci in range(cin):
            for co in range(cout):
                for j in range(kw):
                    for o in range(ow):
                        bmat[i, ci * wp_in + o + j, co * wp_out + out_pad + o] = wc[co, ci, i, j]
    return jnp.asarray(bmat)


def _bias_row(b, ow, out_pad):
    """Bias laid out as one lane-dense row matching the banded-matmul output layout."""
    b_np = np.asarray(b, np.float32)
    cout = b_np.shape[0]
    wp_out = ow + 2 * out_pad
    row = np.zeros((1, cout * wp_out), np.float32)
    for co in range(cout):
        row[0, co * wp_out + out_pad:co * wp_out + out_pad + ow] = b_np[co]
    return jnp.asarray(row)


def _upsample_matrices(c, hw, out_pad):
    """2x nearest upsample of a (hw, c*hw) channel-major slab as  L @ x @ R.

    R (block diagonal column-duplication) also inserts the next conv layer's zero
    pad columns, so the result is already in that layer's padded input layout.
    """
    left = np.zeros((2 * hw, hw), np.float32)
    left[np.arange(2 * hw), np.arange(2 * hw) // 2] = 1.0
    wp_out = 2 * hw + 2 * out_pad
    right = np.zeros((c * hw, c * wp_out), np.float32)
    for ci in range(c):
        for q in range(2 * hw):
            right[ci * hw + q // 2, ci * wp_out + out_pad + q] = 1.0
    return jnp.asarray(left), jnp.asarray(right)


def prepare_decoder_params(params):
    """PyTorch-layout ConvTranspose2d params -> matmul-ready banded matrices, bias rows
    and upsample matrices.  Done once, outside the jitted forward."""
    next_pad = []
    for li in range(len(_LAYERS)):
        if li == _UPSAMPLE_AFTER or li == len(_LAYERS) - 1:
            next_pad.append(0)                       # upsample inserts pad / final output
        else:
            next_pad.append(_LAYERS[li + 1][2] - 1)  # k_next - 1
    mats = []
    for (w_t, b), (_cin, _cout, _k, _hin, hout), pad in zip(params, _LAYERS, next_pad):
        mats.append(_band_matrices(w_t, hout, pad))
        mats.append(_bias_row(b, hout, pad))
    _, c_up, _, _, hw_up = _LAYERS[_UPSAMPLE_AFTER]
    up_pad = _LAYERS[_UPSAMPLE_AFTER + 1][2] - 1
    up_h, up_w = _upsample_matrices(c_up, hw_up, up_pad)
    return tuple(mats) + (up_h, up_w)


# ---------------------------------------------------------------------------
# Fused decoder kernel (one pallas_call, grid over the batch).
# ---------------------------------------------------------------------------
def _conv_block(p_ref, w_ref, brow_ref, *, kh, oh):
    """sum_i Xpad[i:i+oh, :] @ B_i  + bias_row  -- all FLOPs on the MXU, lane-dense."""
    acc = jnp.dot(p_ref[0:oh, :], w_ref[0], preferred_element_type=jnp.float32)
    for i in range(1, kh):
        acc = acc + jnp.dot(p_ref[i:i + oh, :], w_ref[i],
                            preferred_element_type=jnp.float32)
    return acc + brow_ref[...]


def _decoder_kernel(x_ref,
                    w1, br1, w2, br2, w3, br3, w4, br4, w5, br5,
                    up_h, up_w,
                    o_ref,
                    p1, p2, p3, p4, p5):
    # Zero the padded scratch activations: the zero rows/columns ARE the implicit
    # "full" (k-1 each side) padding of every ConvTranspose2d.
    p1[...] = jnp.zeros_like(p1)
    p2[...] = jnp.zeros_like(p2)
    p3[...] = jnp.zeros_like(p3)
    p4[...] = jnp.zeros_like(p4)
    p5[...] = jnp.zeros_like(p5)

    # Layer 1: ConvT(1->4, 3x3) + tanh:  5x5 codes -> (7, 4*15), already padded for layer 2.
    p1[2:7, 2:7] = x_ref[0, :, :]
    p2[4:11, :] = jnp.tanh(_conv_block(p1, w1, br1, kh=3, oh=7))

    # Layer 2: ConvT(4->8, 5x5) + tanh -> (11, 8*11)
    y = jnp.tanh(_conv_block(p2, w2, br2, kh=5, oh=11))
    # 2x nearest Upsample as two MXU matmuls -> (22, 8*26), already padded for layer 3.
    y = jnp.dot(up_h[...], y, preferred_element_type=jnp.float32)
    p3[2:24, :] = jnp.dot(y, up_w[...], preferred_element_type=jnp.float32)

    # Layer 3: ConvT(8->8, 3x3) + tanh -> (24, 8*28), padded for layer 4.
    p4[2:26, :] = jnp.tanh(_conv_block(p3, w3, br3, kh=3, oh=24))

    # Layer 4: ConvT(8->4, 3x3) + tanh -> (26, 4*30), padded for layer 5.
    p5[2:28, :] = jnp.tanh(_conv_block(p4, w4, br4, kh=3, oh=26))

    # Layer 5: ConvT(4->1, 3x3) + sigmoid -> (28, 28) final image.
    o_ref[0, :, :] = jax.nn.sigmoid(_conv_block(p5, w5, br5, kh=3, oh=28))


def _full_spec(arr):
    zeros = (0,) * arr.ndim
    return pl.BlockSpec(arr.shape, lambda b, _z=zeros: _z)


def decoder_forward(codes, prep):
    """codes: (N, 1, 5, 5) float32 -> (N, 1, 28, 28).  Whole decoder == one Pallas kernel."""
    n = codes.shape[0]
    x2d = codes.reshape(n, _CODE_HW, _CODE_HW).astype(jnp.float32)

    # Per-layer padded input activations, channel-major along lanes, kept in VMEM scratch.
    scratch = []
    for (cin, _cout, k, _hin, hout) in _LAYERS:
        hp = hout + k - 1                      # padded height == padded per-channel width
        scratch.append(pltpu.VMEM((hp, cin * hp), jnp.float32))

    out = pl.pallas_call(
        _decoder_kernel,
        out_shape=jax.ShapeDtypeStruct((n, _OUT_HW, _OUT_HW), jnp.float32),
        grid_spec=pltpu.PrefetchScalarGridSpec(
            num_scalar_prefetch=0,
            grid=(n,),
            in_specs=[pl.BlockSpec((1, _CODE_HW, _CODE_HW), lambda b: (b, 0, 0))]
                     + [_full_spec(a) for a in prep],
            out_specs=pl.BlockSpec((1, _OUT_HW, _OUT_HW), lambda b: (b, 0, 0)),
            scratch_shapes=scratch,
        ),
        compiler_params=pltpu.CompilerParams(
            dimension_semantics=("parallel",)),          # batch split across v7x's 2 TCs
    )(x2d, *prep)
    return out.reshape(n, 1, _OUT_HW, _OUT_HW)


# ---------------------------------------------------------------------------
# Pure-JAX (XLA conv) reference + synthetic params.
# ---------------------------------------------------------------------------
def decoder_reference(codes, params):
    x = codes
    for li, ((w_t, b), (_cin, _cout, k, _hin, _hout)) in enumerate(zip(params, _LAYERS)):
        w_conv = jnp.transpose(w_t[:, :, ::-1, ::-1], (1, 0, 2, 3))   # (Cout, Cin, kh, kw)
        x = jax.lax.conv_general_dilated(
            x, w_conv, window_strides=(1, 1),
            padding=[(k - 1, k - 1), (k - 1, k - 1)],
            dimension_numbers=("NCHW", "OIHW", "NCHW"),
            precision=jax.lax.Precision.HIGHEST)
        x = x + b[None, :, None, None]
        x = jax.nn.sigmoid(x) if li == len(_LAYERS) - 1 else jnp.tanh(x)
        if li == _UPSAMPLE_AFTER:
            x = jnp.repeat(jnp.repeat(x, 2, axis=2), 2, axis=3)       # nearest 2x
    return x


def init_params(key):
    """Deterministic synthetic params, PyTorch ConvTranspose2d layout (Cin, Cout, kh, kw)."""
    params = []
    for (cin, cout, k, _hin, _hout) in _LAYERS:
        key, kw_, kb_ = jax.random.split(key, 3)
        bound = 1.0 / float(cin * k * k) ** 0.5
        w = jax.random.uniform(kw_, (cin, cout, k, k), jnp.float32, -bound, bound)
        b = jax.random.uniform(kb_, (cout,), jnp.float32, -bound, bound)
        params.append((w, b))
    return params


if __name__ == "__main__":
    key = jax.random.PRNGKey(0)
    key, k_in = jax.random.split(key)
    # Encoder "codes": batch=2, 1 channel, 5x5 spatial (the module's self.input_shape).
    codes = jax.random.normal(k_in, (2, 1, _CODE_HW, _CODE_HW), jnp.float32)
    params = init_params(key)
    prep = prepare_decoder_params(params)     # one-time weight reshuffle, off the hot path

    fwd = jax.jit(decoder_forward)
    out = jax.block_until_ready(fwd(codes, prep))

    assert out.shape == (2, 1, _OUT_HW, _OUT_HW), out.shape
    assert out.dtype == jnp.float32
    assert bool(jnp.all((out >= 0.0) & (out <= 1.0)))     # sigmoid output range

    ref = decoder_reference(codes, params)
    max_err = float(jnp.max(jnp.abs(out - ref)))
    assert max_err < 2e-2, f"mismatch vs pure-JAX reference: max abs err = {max_err}"
    print("KERNEL_OK")
</pallas_src>

<mosaic_0001>
module attributes {stable_mosaic.version = 11 : i64} {
  func.func @_decoder_kernel(%arg0: i32, %arg1: memref<1x5x5xf32, #tpu.memory_space<vmem>>, %arg2: memref<3x9x60xf32, #tpu.memory_space<vmem>>, %arg3: memref<1x60xf32, #tpu.memory_space<vmem>>, %arg4: memref<5x60x88xf32, #tpu.memory_space<vmem>>, %arg5: memref<1x88xf32, #tpu.memory_space<vmem>>, %arg6: memref<3x208x224xf32, #tpu.memory_space<vmem>>, %arg7: memref<1x224xf32, #tpu.memory_space<vmem>>, %arg8: memref<3x224x120xf32, #tpu.memory_space<vmem>>, %arg9: memref<1x120xf32, #tpu.memory_space<vmem>>, %arg10: memref<3x120x28xf32, #tpu.memory_space<vmem>>, %arg11: memref<1x28xf32, #tpu.memory_space<vmem>>, %arg12: memref<22x11xf32, #tpu.memory_space<vmem>>, %arg13: memref<88x208xf32, #tpu.memory_space<vmem>>, %arg14: memref<1x28x28xf32, #tpu.memory_space<vmem>>, %arg15: memref<9x9xf32, #tpu.memory_space<vmem>>, %arg16: memref<15x60xf32, #tpu.memory_space<vmem>>, %arg17: memref<26x208xf32, #tpu.memory_space<vmem>>, %arg18: memref<28x224xf32, #tpu.memory_space<vmem>>, %arg19: memref<30x120xf32, #tpu.memory_space<vmem>>) attributes {dimension_semantics = [#tpu.dimension_semantics<parallel>], iteration_bounds = array<i64: 2>, scalar_prefetch = 0 : i64, scratch_operands = 5 : i64, tpu.core_type = #tpu.core_type<tc>, window_params = [{transform_indices = @transform_0, window_bounds = array<i64: 1, 5, 5>}, {pipeline_mode = #tpu.pipeline_mode<synchronous>, transform_indices = @transform_1, window_bounds = array<i64: 3, 9, 60>}, {pipeline_mode = #tpu.pipeline_mode<synchronous>, transform_indices = @transform_2, window_bounds = array<i64: 1, 60>}, {pipeline_mode = #tpu.pipeline_mode<synchronous>, transform_indices = @transform_3, window_bounds = array<i64: 5, 60, 88>}, {pipeline_mode = #tpu.pipeline_mode<synchronous>, transform_indices = @transform_4, window_bounds = array<i64: 1, 88>}, {pipeline_mode = #tpu.pipeline_mode<synchronous>, transform_indices = @transform_5, window_bounds = array<i64: 3, 208, 224>}, {pipeline_mode = #tpu.pipeline_mode<synchronous>, transform_indices = @transform_6, window_bounds = array<i64: 1, 224>}, {pipeline_mode = #tpu.pipeline_mode<synchronous>, transform_indices = @transform_7, window_bounds = array<i64: 3, 224, 120>}, {pipeline_mode = #tpu.pipeline_mode<synchronous>, transform_indices = @transform_8, window_bounds = array<i64: 1, 120>}, {pipeline_mode = #tpu.pipeline_mode<synchronous>, transform_indices = @transform_9, window_bounds = array<i64: 3, 120, 28>}, {pipeline_mode = #tpu.pipeline_mode<synchronous>, transform_indices = @transform_10, window_bounds = array<i64: 1, 28>}, {pipeline_mode = #tpu.pipeline_mode<synchronous>, transform_indices = @transform_11, window_bounds = array<i64: 22, 11>}, {pipeline_mode = #tpu.pipeline_mode<synchronous>, transform_indices = @transform_12, window_bounds = array<i64: 88, 208>}, {transform_indices = @transform_13, window_bounds = array<i64: 1, 28, 28>}]} {
    %cst = arith.constant 0.000000e+00 : f32
    %0 = vector.broadcast %cst : f32 to vector<9x9xf32>
    %c0 = arith.constant 0 : index
    %c0_0 = arith.constant 0 : index
    %1 = vector.load %arg15[%c0, %c0_0] : memref<9x9xf32, #tpu.memory_space<vmem>>, vector<9x9xf32>
    tpu.vector_store %arg15[%c0, %c0_0], %0 {strides = array<i32>} : memref<9x9xf32, #tpu.memory_space<vmem>>, vector<9x9xf32>,
    %cst_1 = arith.constant 0.000000e+00 : f32
    %2 = vector.broadcast %cst_1 : f32 to vector<15x60xf32>
    %c0_2 = arith.constant 0 : index
    %c0_3 = arith.constant 0 : index
    %3 = vector.load %arg16[%c0_2, %c0_3] : memref<15x60xf32, #tpu.memory_space<vmem>>, vector<15x60xf32>
    tpu.vector_store %arg16[%c0_2, %c0_3], %2 {strides = array<i32>} : memref<15x60xf32, #tpu.memory_space<vmem>>, vector<15x60xf32>,
    %cst_4 = arith.constant 0.000000e+00 : f32
    %4 = vector.broadcast %cst_4 : f32 to vector<26x208xf32>
    %c0_5 = arith.constant 0 : index
    %c0_6 = arith.constant 0 : index
    %5 = vector.load %arg17[%c0_5, %c0_6] : memref<26x208xf32, #tpu.memory_space<vmem>>, vector<26x208xf32>
    tpu.vector_store %arg17[%c0_5, %c0_6], %4 {strides = array<i32>} : memref<26x208xf32, #tpu.memory_space<vmem>>, vector<26x208xf32>,
    %cst_7 = arith.constant 0.000000e+00 : f32
    %6 = vector.broadcast %cst_7 : f32 to vector<28x224xf32>
    %c0_8 = arith.constant 0 : index
    %c0_9 = arith.constant 0 : index
    %7 = vector.load %arg18[%c0_8, %c0_9] : memref<28x224xf32, #tpu.memory_space<vmem>>, vector<28x224xf32>
    tpu.vector_store %arg18[%c0_8, %c0_9], %6 {strides = array<i32>} : memref<28x224xf32, #tpu.memory_space<vmem>>, vector<28x224xf32>,
    %cst_10 = arith.constant 0.000000e+00 : f32
    %8 = vector.broadcast %cst_10 : f32 to vector<30x120xf32>
    %c0_11 = arith.constant 0 : index
    %c0_12 = arith.constant 0 : index
    %9 = vector.load %arg19[%c0_11, %c0_12] : memref<30x120xf32, #tpu.memory_space<vmem>>, vector<30x120xf32>
    tpu.vector_store %arg19[%c0_11, %c0_12], %8 {strides = array<i32>} : memref<30x120xf32, #tpu.memory_space<vmem>>, vector<30x120xf32>,
    %c0_13 = arith.constant 0 : index
    %c0_14 = arith.constant 0 : index
    %c0_15 = arith.constant 0 : index
    %10 = vector.load %arg1[%c0_13, %c0_14, %c0_15] : memref<1x5x5xf32, #tpu.memory_space<vmem>>, vector<1x5x5xf32>
    %11 = vector.shape_cast %10 : vector<1x5x5xf32> to vector<5x5xf32>
    %c2 = arith.constant 2 : index
    %c2_16 = arith.constant 2 : index
    %12 = vector.load %arg15[%c2, %c2_16] : memref<9x9xf32, #tpu.memory_space<vmem>>, vector<5x5xf32>
    tpu.vector_store %arg15[%c2, %c2_16], %11 {strides = array<i32>} : memref<9x9xf32, #tpu.memory_space<vmem>>, vector<5x5xf32>,
    %c0_17 = arith.constant 0 : index
    %c0_18 = arith.constant 0 : index
    %13 = vector.load %arg15[%c0_17, %c0_18] : memref<9x9xf32, #tpu.memory_space<vmem>>, vector<7x9xf32>
    %c0_19 = arith.constant 0 : index
    %c0_20 = arith.constant 0 : index
    %c0_21 = arith.constant 0 : index
    %14 = vector.load %arg2[%c0_19, %c0_20, %c0_21] : memref<3x9x60xf32, #tpu.memory_space<vmem>>, vector<1x9x60xf32>
    %15 = vector.shape_cast %14 : vector<1x9x60xf32> to vector<9x60xf32>
    %cst_22 = arith.constant dense<0.000000e+00> : vector<7x60xf32>
    %16 = tpu.matmul %13, %15, %cst_22 {dimension_numbers = #tpu.dot_dimension_numbers<[1], [0], [0], [1], [0, 0, 1, 1], [], []>} : vector<7x9xf32>, vector<9x60xf32>, vector<7x60xf32> -> vector<7x60xf32>
    %c1 = arith.constant 1 : index
    %c0_23 = arith.constant 0 : index
    %17 = vector.load %arg15[%c1, %c0_23] : memref<9x9xf32, #tpu.memory_space<vmem>>, vector<7x9xf32>
    %c1_24 = arith.constant 1 : index
    %c0_25 = arith.constant 0 : index
    %c0_26 = arith.constant 0 : index
    %18 = vector.load %arg2[%c1_24, %c0_25, %c0_26] : memref<3x9x60xf32, #tpu.memory_space<vmem>>, vector<1x9x60xf32>
    %19 = vector.shape_cast %18 : vector<1x9x60xf32> to vector<9x60xf32>
    %cst_27 = arith.constant dense<0.000000e+00> : vector<7x60xf32>
    %20 = tpu.matmul %17, %19, %cst_27 {dimension_numbers = #tpu.dot_dimension_numbers<[1], [0], [0], [1], [0, 0, 1, 1], [], []>} : vector<7x9xf32>, vector<9x60xf32>, vector<7x60xf32> -> vector<7x60xf32>
    %21 = arith.addf %16, %20 : vector<7x60xf32>
    %c2_28 = arith.constant 2 : index
    %c0_29 = arith.constant 0 : index
    %22 = vector.load %arg15[%c2_28, %c0_29] : memref<9x9xf32, #tpu.memory_space<vmem>>, vector<7x9xf32>
    %c2_30 = arith.constant 2 : index
    %c0_31 = arith.constant 0 : index
    %c0_32 = arith.constant 0 : index
    %23 = vector.load %arg2[%c2_30, %c0_31, %c0_32] : memref<3x9x60xf32, #tpu.memory_space<vmem>>, vector<1x9x60xf32>
    %24 = vector.shape_cast %23 : vector<1x9x60xf32> to vector<9x60xf32>
    %cst_33 = arith.constant dense<0.000000e+00> : vector<7x60xf32>
    %25 = tpu.matmul %22, %24, %cst_33 {dimension_numbers = #tpu.dot_dimension_numbers<[1], [0], [0], [1], [0, 0, 1, 1], [], []>} : vector<7x9xf32>, vector<9x60xf32>, vector<7x60xf32> -> vector<7x60xf32>
    %26 = arith.addf %21, %25 : vector<7x60xf32>
    %c0_34 = arith.constant 0 : index
    %c0_35 = arith.constant 0 : index
    %27 = vector.load %arg3[%c0_34, %c0_35] : memref<1x60xf32, #tpu.memory_space<vmem>>, vector<1x60xf32>
    %28 = vector.broadcast %27 : vector<1x60xf32> to vector<7x60xf32>
    %29 = arith.addf %26, %28 : vector<7x60xf32>
    %30 = math.tanh %29 : vector<7x60xf32>
    %c4 = arith.constant 4 : index
    %c0_36 = arith.constant 0 : index
    %31 = vector.load %arg16[%c4, %c0_36] : memref<15x60xf32, #tpu.memory_space<vmem>>, vector<7x60xf32>
    tpu.vector_store %arg16[%c4, %c0_36], %30 {strides = array<i32>} : memref<15x60xf32, #tpu.memory_space<vmem>>, vector<7x60xf32>,
    %c0_37 = arith.constant 0 : index
    %c0_38 = arith.constant 0 : index
    %32 = vector.load %arg16[%c0_37, %c0_38] : memref<15x60xf32, #tpu.memory_space<vmem>>, vector<11x60xf32>
    %c0_39 = arith.constant 0 : index
    %c0_40 = arith.constant 0 : index
    %c0_41 = arith.constant 0 : index
    %33 = vector.load %arg4[%c0_39, %c0_40, %c0_41] : memref<5x60x88xf32, #tpu.memory_space<vmem>>, vector<1x60x88xf32>
    %34 = vector.shape_cast %33 : vector<1x60x88xf32> to vector<60x88xf32>
    %cst_42 = arith.constant dense<0.000000e+00> : vector<11x88xf32>
    %35 = tpu.matmul %32, %34, %cst_42 {dimension_numbers = #tpu.dot_dimension_numbers<[1], [0], [0], [1], [0, 0, 1, 1], [], []>} : vector<11x60xf32>, vector<60x88xf32>, vector<11x88xf32> -> vector<11x88xf32>
    %c1_43 = arith.constant 1 : index
    %c0_44 = arith.constant 0 : index
    %36 = vector.load %arg16[%c1_43, %c0_44] : memref<15x60xf32, #tpu.memory_space<vmem>>, vector<11x60xf32>
    %c1_45 = arith.constant 1 : index
    %c0_46 = arith.constant 0 : index
    %c0_47 = arith.constant 0 : index
    %37 = vector.load %arg4[%c1_45, %c0_46, %c0_47] : memref<5x60x88xf32, #tpu.memory_space<vmem>>, vector<1x60x88xf32>
    %38 = vector.shape_cast %37 : vector<1x60x88xf32> to vector<60x88xf32>
    %cst_48 = arith.constant dense<0.000000e+00> : vector<11x88xf32>
    %39 = tpu.matmul %36, %38, %cst_48 {dimension_numbers = #tpu.dot_dimension_numbers<[1], [0], [0], [1], [0, 0, 1, 1], [], []>} : vector<11x60xf32>, vector<60x88xf32>, vector<11x88xf32> -> vector<11x88xf32>
    %40 = arith.addf %35, %39 : vector<11x88xf32>
    %c2_49 = arith.constant 2 : index
    %c0_50 = arith.constant 0 : index
    %41 = vector.load %arg16[%c2_49, %c0_50] : memref<15x60xf32, #tpu.memory_space<vmem>>, vector<11x60xf32>
    %c2_51 = arith.constant 2 : index
    %c0_52 = arith.constant 0 : index
    %c0_53 = arith.constant 0 : index
    %42 = vector.load %arg4[%c2_51, %c0_52, %c0_53] : memref<5x60x88xf32, #tpu.memory_space<vmem>>, vector<1x60x88xf32>
    %43 = vector.shape_cast %42 : vector<1x60x88xf32> to vector<60x88xf32>
    %cst_54 = arith.constant dense<0.000000e+00> : vector<11x88xf32>
    %44 = tpu.matmul %41, %43, %cst_54 {dimension_numbers = #tpu.dot_dimension_numbers<[1], [0], [0], [1], [0, 0, 1, 1], [], []>} : vector<11x60xf32>, vector<60x88xf32>, vector<11x88xf32> -> vector<11x88xf32>
    %45 = arith.addf %40, %44 : vector<11x88xf32>
    %c3 = arith.constant 3 : index
    %c0_55 = arith.constant 0 : index
    %46 = vector.load %arg16[%c3, %c0_55] : memref<15x60xf32, #tpu.memory_space<vmem>>, vector<11x60xf32>
    %c3_56 = arith.constant 3 : index
    %c0_57 = arith.constant 0 : index
    %c0_58 = arith.constant 0 : index
    %47 = vector.load %arg4[%c3_56, %c0_57, %c0_58] : memref<5x60x88xf32, #tpu.memory_space<vmem>>, vector<1x60x88xf32>
    %48 = vector.shape_cast %47 : vector<1x60x88xf32> to vector<60x88xf32>
    %cst_59 = arith.constant dense<0.000000e+00> : vector<11x88xf32>
    %49 = tpu.matmul %46, %48, %cst_59 {dimension_numbers = #tpu.dot_dimension_numbers<[1], [0], [0], [1], [0, 0, 1, 1], [], []>} : vector<11x60xf32>, vector<60x88xf32>, vector<11x88xf32> -> vector<11x88xf32>
    %50 = arith.addf %45, %49 : vector<11x88xf32>
    %c4_60 = arith.constant 4 : index
    %c0_61 = arith.constant 0 : index
    %51 = vector.load %arg16[%c4_60, %c0_61] : memref<15x60xf32, #tpu.memory_space<vmem>>, vector<11x60xf32>
    %c4_62 = arith.constant 4 : index
    %c0_63 = arith.constant 0 : index
    %c0_64 = arith.constant 0 : index
    %52 = vector.load %arg4[%c4_62, %c0_63, %c0_64] : memref<5x60x88xf32, #tpu.memory_space<vmem>>, vector<1x60x88xf32>
    %53 = vector.shape_cast %52 : vector<1x60x88xf32> to vector<60x88xf32>
    %cst_65 = arith.constant dense<0.000000e+00> : vector<11x88xf32>
    %54 = tpu.matmul %51, %53, %cst_65 {dimension_numbers = #tpu.dot_dimension_numbers<[1], [0], [0], [1], [0, 0, 1, 1], [], []>} : vector<11x60xf32>, vector<60x88xf32>, vector<11x88xf32> -> vector<11x88xf32>
    %55 = arith.addf %50, %54 : vector<11x88xf32>
    %c0_66 = arith.constant 0 : index
    %c0_67 = arith.constant 0 : index
    %56 = vector.load %arg5[%c0_66, %c0_67] : memref<1x88xf32, #tpu.memory_space<vmem>>, vector<1x88xf32>
    %57 = vector.broadcast %56 : vector<1x88xf32> to vector<11x88xf32>
    %58 = arith.addf %55, %57 : vector<11x88xf32>
    %59 = math.tanh %58 : vector<11x88xf32>
    %c0_68 = arith.constant 0 : index
    %c0_69 = arith.constant 0 : index
    %60 = vector.load %arg12[%c0_68, %c0_69] : memref<22x11xf32, #tpu.memory_space<vmem>>, vector<22x11xf32>
    %cst_70 = arith.constant dense<0.000000e+00> : vector<22x88xf32>
    %61 = tpu.matmul %60, %59, %cst_70 {dimension_numbers = #tpu.dot_dimension_numbers<[1], [0], [0], [1], [0, 0, 1, 1], [], []>} : vector<22x11xf32>, vector<11x88xf32>, vector<22x88xf32> -> vector<22x88xf32>
    %c0_71 = arith.constant 0 : index
    %c0_72 = arith.constant 0 : index
    %62 = vector.load %arg13[%c0_71, %c0_72] : memref<88x208xf32, #tpu.memory_space<vmem>>, vector<88x208xf32>
    %cst_73 = arith.constant dense<0.000000e+00> : vector<22x208xf32>
    %63 = tpu.matmul %61, %62, %cst_73 {dimension_numbers = #tpu.dot_dimension_numbers<[1], [0], [0], [1], [0, 0, 1, 1], [], []>} : vector<22x88xf32>, vector<88x208xf32>, vector<22x208xf32> -> vector<22x208xf32>
    %c2_74 = arith.constant 2 : index
    %c0_75 = arith.constant 0 : index
    %64 = vector.load %arg17[%c2_74, %c0_75] : memref<26x208xf32, #tpu.memory_space<vmem>>, vector<22x208xf32>
    tpu.vector_store %arg17[%c2_74, %c0_75], %63 {strides = array<i32>} : memref<26x208xf32, #tpu.memory_space<vmem>>, vector<22x208xf32>,
    %c0_76 = arith.constant 0 : index
    %c0_77 = arith.constant 0 : index
    %65 = vector.load %arg17[%c0_76, %c0_77] : memref<26x208xf32, #tpu.memory_space<vmem>>, vector<24x208xf32>
    %c0_78 = arith.constant 0 : index
    %c0_79 = arith.constant 0 : index
    %c0_80 = arith.constant 0 : index
    %66 = vector.load %arg6[%c0_78, %c0_79, %c0_80] : memref<3x208x224xf32, #tpu.memory_space<vmem>>, vector<1x208x224xf32>
    %67 = vector.shape_cast %66 : vector<1x208x224xf32> to vector<208x224xf32>
    %cst_81 = arith.constant dense<0.000000e+00> : vector<24x224xf32>
    %68 = tpu.matmul %65, %67, %cst_81 {dimension_numbers = #tpu.dot_dimension_numbers<[1], [0], [0], [1], [0, 0, 1, 1], [], []>} : vector<24x208xf32>, vector<208x224xf32>, vector<24x224xf32> -> vector<24x224xf32>
    %c1_82 = arith.constant 1 : index
    %c0_83 = arith.constant 0 : index
    %69 = vector.load %arg17[%c1_82, %c0_83] : memref<26x208xf32, #tpu.memory_space<vmem>>, vector<24x208xf32>
    %c1_84 = arith.constant 1 : index
    %c0_85 = arith.constant 0 : index
    %c0_86 = arith.constant 0 : index
    %70 = vector.load %arg6[%c1_84, %c0_85, %c0_86] : memref<3x208x224xf32, #tpu.memory_space<vmem>>, vector<1x208x224xf32>
    %71 = vector.shape_cast %70 : vector<1x208x224xf32> to vector<208x224xf32>
    %cst_87 = arith.constant dense<0.000000e+00> : vector<24x224xf32>
    %72 = tpu.matmul %69, %71, %cst_87 {dimension_numbers = #tpu.dot_dimension_numbers<[1], [0], [0], [1], [0, 0, 1, 1], [], []>} : vector<24x208xf32>, vector<208x224xf32>, vector<24x224xf32> -> vector<24x224xf32>
    %73 = arith.addf %68, %72 : vector<24x224xf32>
    %c2_88 = arith.constant 2 : index
    %c0_89 = arith.constant 0 : index
    %74 = vector.load %arg17[%c2_88, %c0_89] : memref<26x208xf32, #tpu.memory_space<vmem>>, vector<24x208xf32>
    %c2_90 = arith.constant 2 : index
    %c0_91 = arith.constant 0 : index
    %c0_92 = arith.constant 0 : index
    %75 = vector.load %arg6[%c2_90, %c0_91, %c0_92] : memref<3x208x224xf32, #tpu.memory_space<vmem>>, vector<1x208x224xf32>
    %76 = vector.shape_cast %75 : vector<1x208x224xf32> to vector<208x224xf32>
    %cst_93 = arith.constant dense<0.000000e+00> : vector<24x224xf32>
    %77 = tpu.matmul %74, %76, %cst_93 {dimension_numbers = #tpu.dot_dimension_numbers<[1], [0], [0], [1], [0, 0, 1, 1], [], []>} : vector<24x208xf32>, vector<208x224xf32>, vector<24x224xf32> -> vector<24x224xf32>
    %78 = arith.addf %73, %77 : vector<24x224xf32>
    %c0_94 = arith.constant 0 : index
    %c0_95 = arith.constant 0 : index
    %79 = vector.load %arg7[%c0_94, %c0_95] : memref<1x224xf32, #tpu.memory_space<vmem>>, vector<1x224xf32>
    %80 = vector.broadcast %79 : vector<1x224xf32> to vector<24x224xf32>
    %81 = arith.addf %78, %80 : vector<24x224xf32>
    %82 = math.tanh %81 : vector<24x224xf32>
    %c2_96 = arith.constant 2 : index
    %c0_97 = arith.constant 0 : index
    %83 = vector.load %arg18[%c2_96, %c0_97] : memref<28x224xf32, #tpu.memory_space<vmem>>, vector<24x224xf32>
    tpu.vector_store %arg18[%c2_96, %c0_97], %82 {strides = array<i32>} : memref<28x224xf32, #tpu.memory_space<vmem>>, vector<24x224xf32>,
    %c0_98 = arith.constant 0 : index
    %c0_99 = arith.constant 0 : index
    %84 = vector.load %arg18[%c0_98, %c0_99] : memref<28x224xf32, #tpu.memory_space<vmem>>, vector<26x224xf32>
    %c0_100 = arith.constant 0 : index
    %c0_101 = arith.constant 0 : index
    %c0_102 = arith.constant 0 : index
    %85 = vector.load %arg8[%c0_100, %c0_101, %c0_102] : memref<3x224x120xf32, #tpu.memory_space<vmem>>, vector<1x224x120xf32>
    %86 = vector.shape_cast %85 : vector<1x224x120xf32> to vector<224x120xf32>
    %cst_103 = arith.constant dense<0.000000e+00> : vector<26x120xf32>
    %87 = tpu.matmul %84, %86, %cst_103 {dimension_numbers = #tpu.dot_dimension_numbers<[1], [0], [0], [1], [0, 0, 1, 1], [], []>} : vector<26x224xf32>, vector<224x120xf32>, vector<26x120xf32> -> vector<26x120xf32>
    %c1_104 = arith.constant 1 : index
    %c0_105 = arith.constant 0 : index
    %88 = vector.load %arg18[%c1_104, %c0_105] : memref<28x224xf32, #tpu.memory_space<vmem>>, vector<26x224xf32>
    %c1_106 = arith.constant 1 : index
    %c0_107 = arith.constant 0 : index
    %c0_108 = arith.constant 0 : index
    %89 = vector.load %arg8[%c1_106, %c0_107, %c0_108] : memref<3x224x120xf32, #tpu.memory_space<vmem>>, vector<1x224x120xf32>
    %90 = vector.shape_cast %89 : vector<1x224x120xf32> to vector<224x120xf32>
    %cst_109 = arith.constant dense<0.000000e+00> : vector<26x120xf32>
    %91 = tpu.matmul %88, %90, %cst_109 {dimension_numbers = #tpu.dot_dimension_numbers<[1], [0], [0], [1], [0, 0, 1, 1], [], []>} : vector<26x224xf32>, vector<224x120xf32>, vector<26x120xf32> -> vector<26x120xf32>
    %92 = arith.addf %87, %91 : vector<26x120xf32>
    %c2_110 = arith.constant 2 : index
    %c0_111 = arith.constant 0 : index
    %93 = vector.load %arg18[%c2_110, %c0_111] : memref<28x224xf32, #tpu.memory_space<vmem>>, vector<26x224xf32>
    %c2_112 = arith.constant 2 : index
    %c0_113 = arith.constant 0 : index
    %c0_114 = arith.constant 0 : index
    %94 = vector.load %arg8[%c2_112, %c0_113, %c0_114] : memref<3x224x120xf32, #tpu.memory_space<vmem>>, vector<1x224x120xf32>
    %95 = vector.shape_cast %94 : vector<1x224x120xf32> to vector<224x120xf32>
    %cst_115 = arith.constant dense<0.000000e+00> : vector<26x120xf32>
    %96 = tpu.matmul %93, %95, %cst_115 {dimension_numbers = #tpu.dot_dimension_numbers<[1], [0], [0], [1], [0, 0, 1, 1], [], []>} : vector<26x224xf32>, vector<224x120xf32>, vector<26x120xf32> -> vector<26x120xf32>
    %97 = arith.addf %92, %96 : vector<26x120xf32>
    %c0_116 = arith.constant 0 : index
    %c0_117 = arith.constant 0 : index
    %98 = vector.load %arg9[%c0_116, %c0_117] : memref<1x120xf32, #tpu.memory_space<vmem>>, vector<1x120xf32>
    %99 = vector.broadcast %98 : vector<1x120xf32> to vector<26x120xf32>
    %100 = arith.addf %97, %99 : vector<26x120xf32>
    %101 = math.tanh %100 : vector<26x120xf32>
    %c2_118 = arith.constant 2 : index
    %c0_119 = arith.constant 0 : index
    %102 = vector.load %arg19[%c2_118, %c0_119] : memref<30x120xf32, #tpu.memory_space<vmem>>, vector<26x120xf32>
    tpu.vector_store %arg19[%c2_118, %c0_119], %101 {strides = array<i32>} : memref<30x120xf32, #tpu.memory_space<vmem>>, vector<26x120xf32>,
    %c0_120 = arith.constant 0 : index
    %c0_121 = arith.constant 0 : index
    %103 = vector.load %arg19[%c0_120, %c0_121] : memref<30x120xf32, #tpu.memory_space<vmem>>, vector<28x120xf32>
    %c0_122 = arith.constant 0 : index
    %c0_123 = arith.constant 0 : index
    %c0_124 = arith.constant 0 : index
    %104 = vector.load %arg10[%c0_122, %c0_123, %c0_124] : memref<3x120x28xf32, #tpu.memory_space<vmem>>, vector<1x120x28xf32>
    %105 = vector.shape_cast %104 : vector<1x120x28xf32> to vector<120x28xf32>
    %cst_125 = arith.constant dense<0.000000e+00> : vector<28x28xf32>
    %106 = tpu.matmul %103, %105, %cst_125 {dimension_numbers = #tpu.dot_dimension_numbers<[1], [0], [0], [1], [0, 0, 1, 1], [], []>} : vector<28x120xf32>, vector<120x28xf32>, vector<28x28xf32> -> vector<28x28xf32>
    %c1_126 = arith.constant 1 : index
    %c0_127 = arith.constant 0 : index
    %107 = vector.load %arg19[%c1_126, %c0_127] : memref<30x120xf32, #tpu.memory_space<vmem>>, vector<28x120xf32>
    %c1_128 = arith.constant 1 : index
    %c0_129 = arith.constant 0 : index
    %c0_130 = arith.constant 0 : index
    %108 = vector.load %arg10[%c1_128, %c0_129, %c0_130] : memref<3x120x28xf32, #tpu.memory_space<vmem>>, vector<1x120x28xf32>
    %109 = vector.shape_cast %108 : vector<1x120x28xf32> to vector<120x28xf32>
    %cst_131 = arith.constant dense<0.000000e+00> : vector<28x28xf32>
    %110 = tpu.matmul %107, %109, %cst_131 {dimension_numbers = #tpu.dot_dimension_numbers<[1], [0], [0], [1], [0, 0, 1, 1], [], []>} : vector<28x120xf32>, vector<120x28xf32>, vector<28x28xf32> -> vector<28x28xf32>
    %111 = arith.addf %106, %110 : vector<28x28xf32>
    %c2_132 = arith.constant 2 : index
    %c0_133 = arith.constant 0 : index
    %112 = vector.load %arg19[%c2_132, %c0_133] : memref<30x120xf32, #tpu.memory_space<vmem>>, vector<28x120xf32>
    %c2_134 = arith.constant 2 : index
    %c0_135 = arith.constant 0 : index
    %c0_136 = arith.constant 0 : index
    %113 = vector.load %arg10[%c2_134, %c0_135, %c0_136] : memref<3x120x28xf32, #tpu.memory_space<vmem>>, vector<1x120x28xf32>
    %114 = vector.shape_cast %113 : vector<1x120x28xf32> to vector<120x28xf32>
    %cst_137 = arith.constant dense<0.000000e+00> : vector<28x28xf32>
    %115 = tpu.matmul %112, %114, %cst_137 {dimension_numbers = #tpu.dot_dimension_numbers<[1], [0], [0], [1], [0, 0, 1, 1], [], []>} : vector<28x120xf32>, vector<120x28xf32>, vector<28x28xf32> -> vector<28x28xf32>
    %116 = arith.addf %111, %115 : vector<28x28xf32>
    %c0_138 = arith.constant 0 : index
    %c0_139 = arith.constant 0 : index
    %117 = vector.load %arg11[%c0_138, %c0_139] : memref<1x28xf32, #tpu.memory_space<vmem>>, vector<1x28xf32>
    %118 = vector.broadcast %117 : vector<1x28xf32> to vector<28x28xf32>
    %119 = arith.addf %116, %118 : vector<28x28xf32>
    %120 = arith.negf %119 : vector<28x28xf32>
    %121 = math.exp %120 : vector<28x28xf32>
    %cst_140 = arith.constant 1.000000e+00 : f32
    %122 = vector.broadcast %cst_140 : f32 to vector<28x28xf32>
    %123 = arith.addf %122, %121 : vector<28x28xf32>
    %124 = arith.divf %122, %123 : vector<28x28xf32>
    %c0_141 = arith.constant 0 : index
    %c0_142 = arith.constant 0 : index
    %c0_143 = arith.constant 0 : index
    %125 = vector.load %arg14[%c0_141, %c0_142, %c0_143] : memref<1x28x28xf32, #tpu.memory_space<vmem>>, vector<1x28x28xf32>
    %126 = vector.shape_cast %125 : vector<1x28x28xf32> to vector<28x28xf32>
    %127 = vector.shape_cast %124 : vector<28x28xf32> to vector<1x28x28xf32>
    tpu.vector_store %arg14[%c0_141, %c0_142, %c0_143], %127 {strides = array<i32>} : memref<1x28x28xf32, #tpu.memory_space<vmem>>, vector<1x28x28xf32>,
    return
  }
  func.func @transform_0(%arg0: i32) -> (i32, i32, i32) {
    %c0_i32 = arith.constant 0 : i32
    %c0_i32_0 = arith.constant 0 : i32
    %c0_i32_1 = arith.constant 0 : i32
    return %arg0, %c0_i32, %c0_i32_0 : i32, i32, i32
  }
  func.func @transform_1(%arg0: i32) -> (i32, i32, i32) {
    %c0_i32 = arith.constant 0 : i32
    %c0_i32_0 = arith.constant 0 : i32
    %c0_i32_1 = arith.constant 0 : i32
    %c0_i32_2 = arith.constant 0 : i32
    return %c0_i32, %c0_i32_0, %c0_i32_1 : i32, i32, i32
  }
  func.func @transform_2(%arg0: i32) -> (i32, i32) {
    %c0_i32 = arith.constant 0 : i32
    %c0_i32_0 = arith.constant 0 : i32
    %c0_i32_1 = arith.constant 0 : i32
    return %c0_i32, %c0_i32_0 : i32, i32
  }
  func.func @transform_3(%arg0: i32) -> (i32, i32, i32) {
    %c0_i32 = arith.constant 0 : i32
    %c0_i32_0 = arith.constant 0 : i32
    %c0_i32_1 = arith.constant 0 : i32
    %c0_i32_2 = arith.constant 0 : i32
    return %c0_i32, %c0_i32_0, %c0_i32_1 : i32, i32, i32
  }
  func.func @transform_4(%arg0: i32) -> (i32, i32) {
    %c0_i32 = arith.constant 0 : i32
    %c0_i32_0 = arith.constant 0 : i32
    %c0_i32_1 = arith.constant 0 : i32
    return %c0_i32, %c0_i32_0 : i32, i32
  }
  func.func @transform_5(%arg0: i32) -> (i32, i32, i32) {
    %c0_i32 = arith.constant 0 : i32
    %c0_i32_0 = arith.constant 0 : i32
    %c0_i32_1 = arith.constant 0 : i32
    %c0_i32_2 = arith.constant 0 : i32
    return %c0_i32, %c0_i32_0, %c0_i32_1 : i32, i32, i32
  }
  func.func @transform_6(%arg0: i32) -> (i32, i32) {
    %c0_i32 = arith.constant 0 : i32
    %c0_i32_0 = arith.constant 0 : i32
    %c0_i32_1 = arith.constant 0 : i32
    return %c0_i32, %c0_i32_0 : i32, i32
  }
  func.func @transform_7(%arg0: i32) -> (i32, i32, i32) {
    %c0_i32 = arith.constant 0 : i32
    %c0_i32_0 = arith.constant 0 : i32
    %c0_i32_1 = arith.constant 0 : i32
    %c0_i32_2 = arith.constant 0 : i32
    return %c0_i32, %c0_i32_0, %c0_i32_1 : i32, i32, i32
  }
  func.func @transform_8(%arg0: i32) -> (i32, i32) {
    %c0_i32 = arith.constant 0 : i32
    %c0_i32_0 = arith.constant 0 : i32
    %c0_i32_1 = arith.constant 0 : i32
    return %c0_i32, %c0_i32_0 : i32, i32
  }
  func.func @transform_9(%arg0: i32) -> (i32, i32, i32) {
    %c0_i32 = arith.constant 0 : i32
    %c0_i32_0 = arith.constant 0 : i32
    %c0_i32_1 = arith.constant 0 : i32
    %c0_i32_2 = arith.constant 0 : i32
    return %c0_i32, %c0_i32_0, %c0_i32_1 : i32, i32, i32
  }
  func.func @transform_10(%arg0: i32) -> (i32, i32) {
    %c0_i32 = arith.constant 0 : i32
    %c0_i32_0 = arith.constant 0 : i32
    %c0_i32_1 = arith.constant 0 : i32
    return %c0_i32, %c0_i32_0 : i32, i32
  }
  func.func @transform_11(%arg0: i32) -> (i32, i32) {
    %c0_i32 = arith.constant 0 : i32
    %c0_i32_0 = arith.constant 0 : i32
    %c0_i32_1 = arith.constant 0 : i32
    return %c0_i32, %c0_i32_0 : i32, i32
  }
  func.func @transform_12(%arg0: i32) -> (i32, i32) {
    %c0_i32 = arith.constant 0 : i32
    %c0_i32_0 = arith.constant 0 : i32
    %c0_i32_1 = arith.constant 0 : i32
    return %c0_i32, %c0_i32_0 : i32, i32
  }
  func.func @transform_13(%arg0: i32) -> (i32, i32, i32) {
    %c0_i32 = arith.constant 0 : i32
    %c0_i32_0 = arith.constant 0 : i32
    %c0_i32_1 = arith.constant 0 : i32
    return %arg0, %c0_i32, %c0_i32_0 : i32, i32, i32
  }
}

</mosaic_0001>

<llo_original>
// kernel: decoder_forward.1
$region0: #{decoder_forward.1}
  #allocation0 [shape = 'u32[]', space=smem, size = 0x4, offset = 0x4, fixed_abs, tag = 'smem constant byte address 0x4 - core index']
  #allocation1 [shape = 'u32[144,128]{1,0:T(1,128)}', space=vmem, size = 0x12000, scoped, tag = 'internal scratch']
  #allocation2 [shape = 'f32[9,9]{1,0:T(8,128)}', space=vmem, size = 0x2000, scoped, tag = 'scratch operand']
  #allocation3 [shape = 'f32[15,60]{1,0:T(8,128)}', space=vmem, size = 0x2000, scoped, tag = 'scratch operand']
  #allocation4 [shape = 'f32[26,208]{1,0:T(8,128)}', space=vmem, size = 0x8000, scoped, tag = 'scratch operand']
  #allocation5 [shape = 'f32[28,224]{1,0:T(8,128)}', space=vmem, size = 0x8000, scoped, tag = 'scratch operand']
  #allocation6 [shape = 'f32[30,120]{1,0:T(8,128)}', space=vmem, size = 0x4000, scoped, tag = 'scratch operand']
  %s0 = inlined_call_operand.vmem [shape: f32[2,5,5], index: 0, kind: input, shape index: {}]
  %s1 = inlined_call_operand.vmem [shape: f32[3,9,60], index: 1, kind: input, shape index: {}]
  %s2 = inlined_call_operand.vmem [shape: f32[1,60], index: 2, kind: input, shape index: {}]
  %s3 = inlined_call_operand.vmem [shape: f32[5,60,88], index: 3, kind: input, shape index: {}]
  %s4 = inlined_call_operand.vmem [shape: f32[1,88], index: 4, kind: input, shape index: {}]
  %s5 = inlined_call_operand.hbm [shape: f32[3,208,224], index: 5, kind: input, shape index: {}]
  %s6 = inlined_call_operand.vmem [shape: f32[1,224], index: 6, kind: input, shape index: {}]
  %s7 = inlined_call_operand.hbm [shape: f32[3,224,120], index: 7, kind: input, shape index: {}]
  %s8 = inlined_call_operand.vmem [shape: f32[1,120], index: 8, kind: input, shape index: {}]
  %s9 = inlined_call_operand.vmem [shape: f32[3,120,28], index: 9, kind: input, shape index: {}]
  %s10 = inlined_call_operand.vmem [shape: f32[1,28], index: 10, kind: input, shape index: {}]
  %s11 = inlined_call_operand.vmem [shape: f32[22,11], index: 11, kind: input, shape index: {}]
  %s12 = inlined_call_operand.vmem [shape: f32[88,208], index: 12, kind: input, shape index: {}]
  %s13 = inlined_call_operand.vmem [shape: f32[2,28,28], index: 13, kind: output, shape index: {}]
  %s14 = sld [smem:[#allocation0]]
  $region93: #{decoder_forward.1} parent=0
    _
  %s16 = ssub.s32 1, %s14
  %s17 = scalar_select 0, %s16, %s14
  $region1: #{decoder_forward.1} parent=0
    #allocation7 [shape = 'u8[638976]{0}', space=vmem, size = 0x9c000, scoped, tag = 'input window, operand 5, single buffered']
    #allocation8 [shape = 's32[2]{0}', space=sflag, size = 0x8, scoped, tag = 'scoped memory for decoder_forward.1']
    #allocation9 [shape = 'u8[344064]{0}', space=vmem, size = 0x54000, scoped, tag = 'input window, operand 7, single buffered']
    #allocation10 [shape = 's32[1]{0}', space=sflag, size = 0x4, scoped, tag = 'scoped memory for decoder_forward.1']
    %18 = vsyncpa [#allocation8], 0
    %19 = vsyncpa [#allocation10], 0
    loop: start=0, step=1, limit=4
    $region2: #{decoder_forward.1} parent=1 // loop_pre_header
      _
    $region3: #{decoder_forward.1} parent=1 // loop_header
      %s21 = sphi 0, %s25
      %p22 = scmp.ge.s32.totalorder %s21, 4
      %s31 = sphi 0, %s33
      %s34 = sphi 0, %s31
      %s35 = sphi 0, %s34
      %s51 = sphi 0, %s35
      %s55 = sphi 0, %s55
      %s57 = sphi 0, %s55
      %s58 = sphi 0, %s57
      %s72 = sphi 0, %s58
      %s76 = sphi 0, %s76
      %s78 = sphi 0, %s76
      %s79 = sphi 0, %s78
      %s93 = sphi 0, %s79
      %s97 = sphi 0, %s97
      %s99 = sphi 0, %s97
      %s100 = sphi 0, %s99
      %s114 = sphi 0, %s100
      %s118 = sphi 0, %s118
      %s120 = sphi 0, %s118
      %s121 = sphi 0, %s120
      %s135 = sphi 0, %s121
      %s139 = sphi 0, %s139
      %s141 = sphi 0, %s139
      %s142 = sphi 0, %s141
      %s156 = sphi 0, %s142
      %s160 = sphi 0, %s160
      %s162 = sphi 0, %s160
      %s163 = sphi 0, %s162
      %s177 = sphi 0, %s163
      %s181 = sphi 0, %s181
      %s183 = sphi 0, %s181
      %s184 = sphi 0, %s183
      %s198 = sphi 0, %s184
      %s202 = sphi 0, %s202
      %s204 = sphi 0, %s202
      %s205 = sphi 0, %s204
      %s219 = sphi 0, %s205
      %s223 = sphi 0, %s223
      %s225 = sphi 0, %s223
      %s226 = sphi 0, %s225
      %s240 = sphi 0, %s226
      %s244 = sphi 0, %s244
      %s246 = sphi 0, %s244
      %s247 = sphi 0, %s246
      %s261 = sphi 0, %s247
      %s265 = sphi 0, %s265
      %s267 = sphi 0, %s265
      %s268 = sphi 0, %s267
      %s282 = sphi 0, %s268
      %s286 = sphi 0, %s286
      %s288 = sphi 0, %s286
      %s289 = sphi 0, %s288
      %s303 = sphi 0, %s289
      %s309 = sphi 0, %s311
      %s312 = sphi 0, %s309
      %s313 = sphi 0, %s312
      %s329 = sphi 0, %s313
    $region4: #{decoder_forward.1} parent=1 // loop_header_branch
      %24 = sbr.rel (%p22) target = $region8
    $region5: #{decoder_forward.1} parent=1 // loop_body
      %s26 = ssub.s32 %s21, 1
      %s27 = ssub.s32 %s21, 2
      %s28 = sadd.s32 %s21, 1
      %s29 = ssub.s32 %s21, %s28
      %p30 = scmp.eq.s32.totalorder %s29, 0
      %s32 = sadd.s32 %s31, 1
      %s33 = scalar_select %p30, %s31, %s32
      %p36 = pneg %p30
      %p37 = scmp.eq.s32.totalorder %s21, 1
      %p38 = por %p36, %p37
      %p39 = scmp.ne.s32.totalorder %s31, %s34
      %p40 = scmp.eq.s32.totalorder %s21, 0
      %p41 = por %p39, %p40
      %p42 = scmp.ne.s32.totalorder %s31, %s34
      %p43 = scmp.eq.s32.totalorder %s26, 1
      %p44 = por %p42, %p43
      %p45 = scmp.ne.s32.totalorder %s34, %s35
      %p46 = scmp.eq.s32.totalorder %s26, 0
      %p47 = por %p45, %p46
      %p48 = scmp.ne.s32.totalorder %s34, %s35
      %p49 = scmp.eq.s32.totalorder %s27, 1
      %p50 = por %p48, %p49
      %p52 = scmp.ne.s32.totalorder %s35, %s51
      %p53 = scmp.eq.s32.totalorder %s27, 0
      %p54 = por %p52, %p53
      %s56 = sadd.s32 %s55, 1
      %p59 = scmp.eq.s32.totalorder %s21, 1
      %p60 = scmp.ne.s32.totalorder %s55, %s57
      %p61 = scmp.eq.s32.totalorder %s21, 0
      %p62 = por %p60, %p61
      %p63 = scmp.ne.s32.totalorder %s55, %s57
      %p64 = scmp.eq.s32.totalorder %s26, 1
      %p65 = por %p63, %p64
      %p66 = scmp.ne.s32.totalorder %s57, %s58
      %p67 = scmp.eq.s32.totalorder %s26, 0
      %p68 = por %p66, %p67
      %p69 = scmp.ne.s32.totalorder %s57, %s58
      %p70 = scmp.eq.s32.totalorder %s27, 1
      %p71 = por %p69, %p70
      %p73 = scmp.ne.s32.totalorder %s58, %s72
      %p74 = scmp.eq.s32.totalorder %s27, 0
      %p75 = por %p73, %p74
      %s77 = sadd.s32 %s76, 1
      %p80 = scmp.eq.s32.totalorder %s21, 1
      %p81 = scmp.ne.s32.totalorder %s76, %s78
      %p82 = scmp.eq.s32.totalorder %s21, 0
      %p83 = por %p81, %p82
      %p84 = scmp.ne.s32.totalorder %s76, %s78
      %p85 = scmp.eq.s32.totalorder %s26, 1
      %p86 = por %p84, %p85
      %p87 = scmp.ne.s32.totalorder %s78, %s79
      %p88 = scmp.eq.s32.totalorder %s26, 0
      %p89 = por %p87, %p88
      %p90 = scmp.ne.s32.totalorder %s78, %s79
      %p91 = scmp.eq.s32.totalorder %s27, 1
      %p92 = por %p90, %p91
      %p94 = scmp.ne.s32.totalorder %s79, %s93
      %p95 = scmp.eq.s32.totalorder %s27, 0
      %p96 = por %p94, %p95
      %s98 = sadd.s32 %s97, 1
      %p101 = scmp.eq.s32.totalorder %s21, 1
      %p102 = scmp.ne.s32.totalorder %s97, %s99
      %p103 = scmp.eq.s32.totalorder %s21, 0
      %p104 = por %p102, %p103
      %p105 = scmp.ne.s32.totalorder %s97, %s99
      %p106 = scmp.eq.s32.totalorder %s26, 1
      %p107 = por %p105, %p106
      %p108 = scmp.ne.s32.totalorder %s99, %s100
      %p109 = scmp.eq.s32.totalorder %s26, 0
      %p110 = por %p108, %p109
      %p111 = scmp.ne.s32.totalorder %s99, %s100
      %p112 = scmp.eq.s32.totalorder %s27, 1
      %p113 = por %p111, %p112
      %p115 = scmp.ne.s32.totalorder %s100, %s114
      %p116 = scmp.eq.s32.totalorder %s27, 0
      %p117 = por %p115, %p116
      %s119 = sadd.s32 %s118, 1
      %p122 = scmp.eq.s32.totalorder %s21, 1
      %p123 = scmp.ne.s32.totalorder %s118, %s120
      %p124 = scmp.eq.s32.totalorder %s21, 0
      %p125 = por %p123, %p124
      %p126 = scmp.ne.s32.totalorder %s118, %s120
      %p127 = scmp.eq.s32.totalorder %s26, 1
      %p128 = por %p126, %p127
      %p129 = scmp.ne.s32.totalorder %s120, %s121
      %p130 = scmp.eq.s32.totalorder %s26, 0
      %p131 = por %p129, %p130
      %p132 = scmp.ne.s32.totalorder %s120, %s121
      %p133 = scmp.eq.s32.totalorder %s27, 1
      %p134 = por %p132, %p133
      %p136 = scmp.ne.s32.totalorder %s121, %s135
      %p137 = scmp.eq.s32.totalorder %s27, 0
      %p138 = por %p136, %p137
      %s140 = sadd.s32 %s139, 1
      %p143 = scmp.eq.s32.totalorder %s21, 1
      %p144 = scmp.ne.s32.totalorder %s139, %s141
      %p145 = scmp.eq.s32.totalorder %s21, 0
      %p146 = por %p144, %p145
      %p147 = scmp.ne.s32.totalorder %s139, %s141
      %p148 = scmp.eq.s32.totalorder %s26, 1
      %p149 = por %p147, %p148
      %p150 = scmp.ne.s32.totalorder %s141, %s142
      %p151 = scmp.eq.s32.totalorder %s26, 0
      %p152 = por %p150, %p151
      %p153 = scmp.ne.s32.totalorder %s141, %s142
      %p154 = scmp.eq.s32.totalorder %s27, 1
      %p155 = por %p153, %p154
      %p157 = scmp.ne.s32.totalorder %s142, %s156
      %p158 = scmp.eq.s32.totalorder %s27, 0
      %p159 = por %p157, %p158
      %s161 = sadd.s32 %s160, 1
      %p164 = scmp.eq.s32.totalorder %s21, 1
      %p165 = scmp.ne.s32.totalorder %s160, %s162
      %p166 = scmp.eq.s32.totalorder %s21, 0
      %p167 = por %p165, %p166
      %p168 = scmp.ne.s32.totalorder %s160, %s162
      %p169 = scmp.eq.s32.totalorder %s26, 1
      %p170 = por %p168, %p169
      %p171 = scmp.ne.s32.totalorder %s162, %s163
      %p172 = scmp.eq.s32.totalorder %s26, 0
      %p173 = por %p171, %p172
      %p174 = scmp.ne.s32.totalorder %s162, %s163
      %p175 = scmp.eq.s32.totalorder %s27, 1
      %p176 = por %p174, %p175
      %p178 = scmp.ne.s32.totalorder %s163, %s177
      %p179 = scmp.eq.s32.totalorder %s27, 0
      %p180 = por %p178, %p179
      %s182 = sadd.s32 %s181, 1
      %p185 = scmp.eq.s32.totalorder %s21, 1
      %p186 = scmp.ne.s32.totalorder %s181, %s183
      %p187 = scmp.eq.s32.totalorder %s21, 0
      %p188 = por %p186, %p187
      %p189 = scmp.ne.s32.totalorder %s181, %s183
      %p190 = scmp.eq.s32.totalorder %s26, 1
      %p191 = por %p189, %p190
      %p192 = scmp.ne.s32.totalorder %s183, %s184
      %p193 = scmp.eq.s32.totalorder %s26, 0
      %p194 = por %p192, %p193
      %p195 = scmp.ne.s32.totalorder %s183, %s184
      %p196 = scmp.eq.s32.totalorder %s27, 1
      %p197 = por %p195, %p196
      %p199 = scmp.ne.s32.totalorder %s184, %s198
      %p200 = scmp.eq.s32.totalorder %s27, 0
      %p201 = por %p199, %p200
      %s203 = sadd.s32 %s202, 1
      %p206 = scmp.eq.s32.totalorder %s21, 1
      %p207 = scmp.ne.s32.totalorder %s202, %s204
      %p208 = scmp.eq.s32.totalorder %s21, 0
      %p209 = por %p207, %p208
      %p210 = scmp.ne.s32.totalorder %s202, %s204
      %p211 = scmp.eq.s32.totalorder %s26, 1
      %p212 = por %p210, %p211
      %p213 = scmp.ne.s32.totalorder %s204, %s205
      %p214 = scmp.eq.s32.totalorder %s26, 0
      %p215 = por %p213, %p214
      %p216 = scmp.ne.s32.totalorder %s204, %s205
      %p217 = scmp.eq.s32.totalorder %s27, 1
      %p218 = por %p216, %p217
      %p220 = scmp.ne.s32.totalorder %s205, %s219
      %p221 = scmp.eq.s32.totalorder %s27, 0
      %p222 = por %p220, %p221
      %s224 = sadd.s32 %s223, 1
      %p227 = scmp.eq.s32.totalorder %s21, 1
      %p228 = scmp.ne.s32.totalorder %s223, %s225
      %p229 = scmp.eq.s32.totalorder %s21, 0
      %p230 = por %p228, %p229
      %p231 = scmp.ne.s32.totalorder %s223, %s225
      %p232 = scmp.eq.s32.totalorder %s26, 1
      %p233 = por %p231, %p232
      %p234 = scmp.ne.s32.totalorder %s225, %s226
      %p235 = scmp.eq.s32.totalorder %s26, 0
      %p236 = por %p234, %p235
      %p237 = scmp.ne.s32.totalorder %s225, %s226
      %p238 = scmp.eq.s32.totalorder %s27, 1
      %p239 = por %p237, %p238
      %p241 = scmp.ne.s32.totalorder %s226, %s240
      %p242 = scmp.eq.s32.totalorder %s27, 0
      %p243 = por %p241, %p242
      %s245 = sadd.s32 %s244, 1
      %p248 = scmp.eq.s32.totalorder %s21, 1
      %p249 = scmp.ne.s32.totalorder %s244, %s246
      %p250 = scmp.eq.s32.totalorder %s21, 0
      %p251 = por %p249, %p250
      %p252 = scmp.ne.s32.totalorder %s244, %s246
      %p253 = scmp.eq.s32.totalorder %s26, 1
      %p254 = por %p252, %p253
      %p255 = scmp.ne.s32.totalorder %s246, %s247
      %p256 = scmp.eq.s32.totalorder %s26, 0
      %p257 = por %p255, %p256
      %p258 = scmp.ne.s32.totalorder %s246, %s247
      %p259 = scmp.eq.s32.totalorder %s27, 1
      %p260 = por %p258, %p259
      %p262 = scmp.ne.s32.totalorder %s247, %s261
      %p263 = scmp.eq.s32.totalorder %s27, 0
      %p264 = por %p262, %p263
      %s266 = sadd.s32 %s265, 1
      %p269 = scmp.eq.s32.totalorder %s21, 1
      %p270 = scmp.ne.s32.totalorder %s265, %s267
      %p271 = scmp.eq.s32.totalorder %s21, 0
      %p272 = por %p270, %p271
      %p273 = scmp.ne.s32.totalorder %s265, %s267
      %p274 = scmp.eq.s32.totalorder %s26, 1
      %p275 = por %p273, %p274
      %p276 = scmp.ne.s32.totalorder %s267, %s268
      %p277 = scmp.eq.s32.totalorder %s26, 0
      %p278 = por %p276, %p277
      %p279 = scmp.ne.s32.totalorder %s267, %s268
      %p280 = scmp.eq.s32.totalorder %s27, 1
      %p281 = por %p279, %p280
      %p283 = scmp.ne.s32.totalorder %s268, %s282
      %p284 = scmp.eq.s32.totalorder %s27, 0
      %p285 = por %p283, %p284
      %s287 = sadd.s32 %s286, 1
      %p290 = scmp.eq.s32.totalorder %s21, 1
      %p291 = scmp.ne.s32.totalorder %s286, %s288
      %p292 = scmp.eq.s32.totalorder %s21, 0
      %p293 = por %p291, %p292
      %p294 = scmp.ne.s32.totalorder %s286, %s288
      %p295 = scmp.eq.s32.totalorder %s26, 1
      %p296 = por %p294, %p295
      %p297 = scmp.ne.s32.totalorder %s288, %s289
      %p298 = scmp.eq.s32.totalorder %s26, 0
      %p299 = por %p297, %p298
      %p300 = scmp.ne.s32.totalorder %s288, %s289
      %p301 = scmp.eq.s32.totalorder %s27, 1
      %p302 = por %p300, %p301
      %p304 = scmp.ne.s32.totalorder %s289, %s303
      %p305 = scmp.eq.s32.totalorder %s27, 0
      %p306 = por %p304, %p305
      %s307 = ssub.s32 %s21, %s28
      %p308 = scmp.eq.s32.totalorder %s307, 0
      %s310 = sadd.s32 %s309, 1
      %s311 = scalar_select %p308, %s309, %s310
      %p314 = pneg %p308
      %p315 = scmp.eq.s32.totalorder %s21, 1
      %p316 = por %p314, %p315
      %p317 = scmp.ne.s32.totalorder %s309, %s312
      %p318 = scmp.eq.s32.totalorder %s21, 0
      %p319 = por %p317, %p318
      %p320 = scmp.ne.s32.totalorder %s309, %s312
      %p321 = scmp.eq.s32.totalorder %s26, 1
      %p322 = por %p320, %p321
      %p323 = scmp.ne.s32.totalorder %s312, %s313
      %p324 = scmp.eq.s32.totalorder %s26, 0
      %p325 = por %p323, %p324
      %p326 = scmp.ne.s32.totalorder %s312, %s313
      %p327 = scmp.eq.s32.totalorder %s27, 1
      %p328 = por %p326, %p327
      %p330 = scmp.ne.s32.totalorder %s313, %s329
      %p331 = scmp.eq.s32.totalorder %s27, 0
      %p332 = por %p330, %p331
      %p333 = scmp.le.s32.totalorder 1, %s21
      %p334 = scmp.lt.s32.totalorder %s21, 3
      %p335 = pnand %p333, %p334
      %p336 = pneg %p335
      // Predicated region
      $region9: #{decoder_forward.1} parent=5 // pred_check
        _
      $region10: #{decoder_forward.1} parent=5 // pred_check_branch
        %338 = sbr.rel (%p335) target = $region12
      $region11: #{decoder_forward.1} parent=5 // pred_region
        %s339 = ssub.s32 %s21, 1
        // Predicated region
        $region13: #{decoder_forward.1} parent=11 // pred_check
          %p340 = pneg %p68
        $region14: #{decoder_forward.1} parent=11 // pred_check_branch
          %342 = sbr.rel (%p340) target = $region16
        $region15: #{decoder_forward.1} parent=11 // pred_region
          _
        $region16: #{decoder_forward.1} parent=11 // pred_fallthru
          _
        // Predicated region
        $region17: #{decoder_forward.1} parent=11 // pred_check
          %p343 = pneg %p89
        $region18: #{decoder_forward.1} parent=11 // pred_check_branch
          %345 = sbr.rel (%p343) target = $region20
        $region19: #{decoder_forward.1} parent=11 // pred_region
          _
        $region20: #{decoder_forward.1} parent=11 // pred_fallthru
          _
        // Predicated region
        $region21: #{decoder_forward.1} parent=11 // pred_check
          %p346 = pneg %p110
        $region22: #{decoder_forward.1} parent=11 // pred_check_branch
          %348 = sbr.rel (%p346) target = $region24
        $region23: #{decoder_forward.1} parent=11 // pred_region
          _
        $region24: #{decoder_forward.1} parent=11 // pred_fallthru
          _
        // Predicated region
        $region25: #{decoder_forward.1} parent=11 // pred_check
          %p349 = pneg %p131
        $region26: #{decoder_forward.1} parent=11 // pred_check_branch
          %351 = sbr.rel (%p349) target = $region28
        $region27: #{decoder_forward.1} parent=11 // pred_region
          _
        $region28: #{decoder_forward.1} parent=11 // pred_fallthru
          _
        // Predicated region
        $region29: #{decoder_forward.1} parent=11 // pred_check
          %p352 = pneg %p152
        $region30: #{decoder_forward.1} parent=11 // pred_check_branch
          %354 = sbr.rel (%p352) target = $region32
        $region31: #{decoder_forward.1} parent=11 // pred_region
          %s356 = ssub.s32 19968, 19968
          %357 = vsyncadd [#allocation8], %s356
          %s358 = sshll.u32 [#allocation7], 4
          %s359 = int_to_ptr.vmem [resolvable:$true] %s358
          %364 = dma.hbm_to_vmem [thread:$0]  %s5, 19968, %s359, [#allocation8], 256, 256, 16
        $region32: #{decoder_forward.1} parent=11 // pred_fallthru
          _
        // Predicated region
        $region33: #{decoder_forward.1} parent=11 // pred_check
          %p365 = pneg %p173
        $region34: #{decoder_forward.1} parent=11 // pred_check_branch
          %367 = sbr.rel (%p365) target = $region36
        $region35: #{decoder_forward.1} parent=11 // pred_region
          _
        $region36: #{decoder_forward.1} parent=11 // pred_fallthru
          _
        // Predicated region
        $region37: #{decoder_forward.1} parent=11 // pred_check
          %p368 = pneg %p194
        $region38: #{decoder_forward.1} parent=11 // pred_check_branch
          %370 = sbr.rel (%p368) target = $region40
        $region39: #{decoder_forward.1} parent=11 // pred_region
          %s372 = ssub.s32 10752, 10752
          %373 = vsyncadd [#allocation10], %s372
          %s374 = sshll.u32 [#allocation9], 4
          %s375 = int_to_ptr.vmem [resolvable:$true] %s374
          %380 = dma.hbm_to_vmem [thread:$0]  %s7, 10752, %s375, [#allocation10], 128, 128, 8
        $region40: #{decoder_forward.1} parent=11 // pred_fallthru
          _
        // Predicated region
        $region41: #{decoder_forward.1} parent=11 // pred_check
          %p381 = pneg %p215
        $region42: #{decoder_forward.1} parent=11 // pred_check_branch
          %383 = sbr.rel (%p381) target = $region44
        $region43: #{decoder_forward.1} parent=11 // pred_region
          _
        $region44: #{decoder_forward.1} parent=11 // pred_fallthru
          _
        // Predicated region
        $region45: #{decoder_forward.1} parent=11 // pred_check
          %p384 = pneg %p236
        $region46: #{decoder_forward.1} parent=11 // pred_check_branch
          %386 = sbr.rel (%p384) target = $region48
        $region47: #{decoder_forward.1} parent=11 // pred_region
          _
        $region48: #{decoder_forward.1} parent=11 // pred_fallthru
          _
        // Predicated region
        $region49: #{decoder_forward.1} parent=11 // pred_check
          %p387 = pneg %p257
        $region50: #{decoder_forward.1} parent=11 // pred_check_branch
          %389 = sbr.rel (%p387) target = $region52
        $region51: #{decoder_forward.1} parent=11 // pred_region
          _
        $region52: #{decoder_forward.1} parent=11 // pred_fallthru
          _
        // Predicated region
        $region53: #{decoder_forward.1} parent=11 // pred_check
          %p390 = pneg %p278
        $region54: #{decoder_forward.1} parent=11 // pred_check_branch
          %392 = sbr.rel (%p390) target = $region56
        $region55: #{decoder_forward.1} parent=11 // pred_region
          _
        $region56: #{decoder_forward.1} parent=11 // pred_fallthru
          _
        // Predicated region
        $region57: #{decoder_forward.1} parent=11 // pred_check
          %p393 = pneg %p299
        $region58: #{decoder_forward.1} parent=11 // pred_check_branch
          %395 = sbr.rel (%p393) target = $region60
        $region59: #{decoder_forward.1} parent=11 // pred_region
          _
        $region60: #{decoder_forward.1} parent=11 // pred_fallthru
          _
      $region12: #{decoder_forward.1} parent=5 // pred_fallthru
        _
      %p396 = scmp.lt.s32.totalorder %s21, 2
      // Predicated region
      $region61: #{decoder_forward.1} parent=5 // pred_check
        %p397 = pneg %p396
      $region62: #{decoder_forward.1} parent=5 // pred_check_branch
        %399 = sbr.rel (%p397) target = $region64
      $region63: #{decoder_forward.1} parent=5 // pred_region
        // Predicated region
        $region65: #{decoder_forward.1} parent=63 // pred_check
          %p400 = pneg %p41
        $region66: #{decoder_forward.1} parent=63 // pred_check_branch
          %402 = sbr.rel (%p400) target = $region68
        $region67: #{decoder_forward.1} parent=63 // pred_region
          %p403 = scmp.lt.s32.totalorder %s21, 1
          %s404 = scalar_select %p403, %s21, 1
          %s405 = smul.addr %s404, 8
          %s406 = scalar_lea.vmem %s0, %s405
        $region68: #{decoder_forward.1} parent=63 // pred_fallthru
          _
      $region64: #{decoder_forward.1} parent=5 // pred_fallthru
        _
      %p407 = scmp.le.s32.totalorder 1, %s21
      %p408 = scmp.lt.s32.totalorder %s21, 3
      %p409 = pnand %p407, %p408
      %p410 = pneg %p409
      // Predicated region
      $region69: #{decoder_forward.1} parent=5 // pred_check
        _
      $region70: #{decoder_forward.1} parent=5 // pred_check_branch
        %412 = sbr.rel (%p409) target = $region72
      $region71: #{decoder_forward.1} parent=5 // pred_region
        %s413 = ssub.s32 %s21, 1
        // Predicated region
        $region73: #{decoder_forward.1} parent=71 // pred_check
          %p414 = pneg %p152
        $region74: #{decoder_forward.1} parent=71 // pred_check_branch
          %416 = sbr.rel (%p414) target = $region76
        $region75: #{decoder_forward.1} parent=71 // pred_region
          %417 = dma.done [#allocation8], 19968
        $region76: #{decoder_forward.1} parent=71 // pred_fallthru
          _
        // Predicated region
        $region77: #{decoder_forward.1} parent=71 // pred_check
          %p418 = pneg %p194
        $region78: #{decoder_forward.1} parent=71 // pred_check_branch
          %420 = sbr.rel (%p418) target = $region80
        $region79: #{decoder_forward.1} parent=71 // pred_region
          %421 = dma.done [#allocation10], 10752
        $region80: #{decoder_forward.1} parent=71 // pred_fallthru
          _
        %p422 = scmp.lt.s32.totalorder %s26, 1
        %s423 = scalar_select %p422, %s26, 1
        %s424 = smul.addr %s423, 8
        %s425 = scalar_lea.vmem %s0, %s424
        %p426 = pneg %p47
        %p427 = pneg %p44
        %p428 = pneg %p68
        %p429 = pneg %p65
        %p430 = pneg %p89
        %p431 = pneg %p86
        %p432 = pneg %p110
        %p433 = pneg %p107
        %p434 = pneg %p131
        %p435 = pneg %p128
        %p436 = pneg %p152
        %p437 = pneg %p149
        %p438 = pneg %p173
        %p439 = pneg %p170
        %p440 = pneg %p194
        %p441 = pneg %p191
        %p442 = pneg %p215
        %p443 = pneg %p212
        %p444 = pneg %p236
        %p445 = pneg %p233
        %p446 = pneg %p257
        %p447 = pneg %p254
        %p448 = pneg %p278
        %p449 = pneg %p275
        %p450 = pneg %p299
        %p451 = pneg %p296
        %p452 = pneg %p325
        %p453 = pneg %p322
        %p454 = scmp.lt.s32.totalorder %s26, 1
        %s455 = scalar_select %p454, %s26, 1
        %s456 = smul.addr %s455, 4
        %s457 = smul.addr %s456, 8
        %s458 = scalar_lea.vmem %s13, %s457
        %p459 = scmp.lt.s32.totalorder %s26, 1
        %s460 = scalar_select %p459, %s26, 1
        %s461 = smul.addr %s460, 8
        %s462 = scalar_lea.vmem %s0, %s461
        %p463 = scmp.lt.s32.totalorder %s26, 1
        %s464 = scalar_select %p463, %s26, 1
        %s465 = smul.addr %s464, 4
        %s466 = smul.addr %s465, 8
        %s467 = scalar_lea.vmem %s13, %s466
        %vm468 = vcmask 72704
        %469 = vst.msk [vmem:[#allocation2] sm:$0xff] %vm468, 0.0
        %vm470 = vcmask 65536
        %471 = vst.msk [vmem:[#allocation2 + $0x8] sm:$0x1] %vm470, 0.0
        %vm472 = vcmask 490496
        %473 = vst.msk [vmem:[#allocation3] sm:$0xff] %vm472, 0.0
        %vm474 = vcmask 489472
        %475 = vst.msk [vmem:[#allocation3 + $0x8] sm:$0x7f] %vm474, 0.0
        %476 = vst [vmem:[#allocation4] sm:$0xff] 0.0
        %vm477 = vcmask 654336
        %478 = vst.msk [vmem:[#allocation4 + $0x8] sm:$0xff] %vm477, 0.0
        %479 = vst [vmem:[#allocation4 + $0x10] sm:$0xff] 0.0
        %480 = vst.msk [vmem:[#allocation4 + $0x18] sm:$0xff] %vm477, 0.0
        %481 = vst [vmem:[#allocation4 + $0x20] sm:$0xff] 0.0
        %482 = vst.msk [vmem:[#allocation4 + $0x28] sm:$0xff] %vm477, 0.0
        %483 = vst [vmem:[#allocation4 + $0x30] sm:$0x3] 0.0
        %vm484 = vcmask 648192
        %485 = vst.msk [vmem:[#allocation4 + $0x38] sm:$0x3] %vm484, 0.0
        %486 = vst [vmem:[#allocation5] sm:$0xff] 0.0
        %vm487 = vcmask 785408
        %488 = vst.msk [vmem:[#allocation5 + $0x8] sm:$0xff] %vm487, 0.0
        %489 = vst [vmem:[#allocation5 + $0x10] sm:$0xff] 0.0
        %490 = vst.msk [vmem:[#allocation5 + $0x18] sm:$0xff] %vm487, 0.0
        %491 = vst [vmem:[#allocation5 + $0x20] sm:$0xff] 0.0
        %492 = vst.msk [vmem:[#allocation5 + $0x28] sm:$0xff] %vm487, 0.0
        %493 = vst [vmem:[#allocation5 + $0x30] sm:$0xf] 0.0
        %vm494 = vcmask 781312
        %495 = vst.msk [vmem:[#allocation5 + $0x38] sm:$0xf] %vm494, 0.0
        %vm496 = vcmask 982016
        %497 = vst.msk [vmem:[#allocation6] sm:$0xff] %vm496, 0.0
        %498 = vst.msk [vmem:[#allocation6 + $0x8] sm:$0xff] %vm496, 0.0
        %499 = vst.msk [vmem:[#allocation6 + $0x10] sm:$0xff] %vm496, 0.0
        %vm500 = vcmask 979968
        %501 = vst.msk [vmem:[#allocation6 + $0x18] sm:$0x3f] %vm500, 0.0
        %v502 = vld [vmem:[%s462] sm:$0x1f]
        %504 = vrot.lane.b32.xlu0 %v502, 2
        %v505 = vpop.permute.xlu0 %504
        %vm507 = vcmask 53264
        %508 = vst.msk [vmem:[#allocation2 + $0x2] sm:$0x1f] %vm507, %v505
        %v509 = vld [vmem:[#allocation2] sm:$0x7f]
        %v510 = vld [vmem:[%s1] sm:$0xff]
        %v511 = vld [vmem:[%s1 + $0x8] sm:$0x1]
        %v512 = vld [vmem:[#allocation2 + $0x1] sm:$0x7f]
        %s513 = scalar_lea.vmem %s1, 16
        %v514 = vld [vmem:[%s513] sm:$0xff]
        %v515 = vld [vmem:[%s513 + $0x8] sm:$0x1]
        %v517 = vsel %vm468, %v512, 0
        %vm519 = vcmask 1040384
        %v521 = vsel %vm519, %v515, 0
        %523 = vmatprep.subr.mxu0 0.0
        %524 = vmatpush1.msra.mxu0 %v514
        %525 = vmatprep.subr.mxu0 0.0
        %526 = vmatpush1.msra.mxu0 %v521
        %527 = vmatprep.subr.mxu0 0.0
        %528 = vmatpush1.msra.mxu0 0.0
        %529 = vmatprep.subr.mxu0 0.0
        %530 = vmatpush1.msra.mxu0 0.0
        %531 = vmatprep.subr.mxu0 0.0
        %532 = vmatpush1.msra.mxu0 0.0
        %533 = vmatprep.subr.mxu0 0.0
        %534 = vmatpush1.msra.mxu0 0.0
        %535 = vmatprep.subr.mxu0 0.0
        %536 = vmatpush1.msra.mxu0 0.0
        %537 = vmatprep.subr.mxu0 0.0
        %538 = vmatpush1.msra.mxu0 0.0
        %539 = vmatprep.subr.mxu0 0.0
        %540 = vmatpush1.msra.mxu0 0.0
        %541 = vmatprep.subr.mxu0 0.0
        %542 = vmatpush1.msra.mxu0 0.0
        %543 = vmatprep.subr.mxu0 0.0
        %544 = vmatpush1.msra.mxu0 0.0
        %545 = vmatprep.subr.mxu0 0.0
        %546 = vmatpush1.msra.mxu0 0.0
        %547 = vmatprep.subr.mxu0 0.0
        %548 = vmatpush1.msra.mxu0 0.0
        %549 = vmatprep.subr.mxu0 0.0
        %550 = vmatpush1.msra.mxu0 0.0
        %551 = vmatprep.subr.mxu0 0.0
        %552 = vmatpush1.msra.mxu0 0.0
        %553 = vmatprep.subr.mxu0 0.0
        %554 = vmatpush1.msra.mxu0 0.0
        %555 = vmatprep.subr.mxu0 0.0
        %556 = vmatpush1.msra.mxu0 0.0
        %557 = vmatprep.subr.mxu0 0.0
        %558 = vmatpush1.msra.mxu0 0.0
        %559 = vmatprep.subr.mxu0 0.0
        %560 = vmatpush1.msra.mxu0 0.0
        %561 = vmatprep.subr.mxu0 0.0
        %562 = vmatpush1.msra.mxu0 0.0
        %563 = vmatprep.subr.mxu0 0.0
        %564 = vmatpush1.msra.mxu0 0.0
        %565 = vmatprep.subr.mxu0 0.0
        %566 = vmatpush1.msra.mxu0 0.0
        %567 = vmatprep.subr.mxu0 0.0
        %568 = vmatpush1.msra.mxu0 0.0
        %569 = vmatprep.subr.mxu0 0.0
        %570 = vmatpush1.msra.mxu0 0.0
        %571 = vmatprep.subr.mxu0 0.0
        %572 = vmatpush1.msra.mxu0 0.0
        %573 = vmatprep.subr.mxu0 0.0
        %574 = vmatpush1.msra.mxu0 0.0
        %575 = vmatprep.subr.mxu0 0.0
        %576 = vmatpush1.msra.mxu0 0.0
        %577 = vmatprep.subr.mxu0 0.0
        %578 = vmatpush1.msra.mxu0 0.0
        %579 = vmatprep.subr.mxu0 0.0
        %580 = vmatpush1.msra.mxu0 0.0
        %581 = vmatprep.subr.mxu0 0.0
        %582 = vmatpush1.msra.mxu0 0.0
        %583 = vmatprep.subr.mxu0 0.0
        %584 = vmatpush1.msra.mxu0 0.0
        %585 = vmatprep.subr.mxu0 0.0
        %586 = vmatpush1.msra.mxu0 0.0
        %587 = vmatprep.mubr.f32.mxu0 0.0
        %588 = vmatmul.mubr.f32.gmra.mrb[0].mxu0 %v517
        %v589 = vpop.f32.mrb[0].mxu0
        %v590 = vadd.f32 0.0, %v589
        %v591 = vpop.f32.mrb[0].mxu0
        %592 = vdwg.mxu0
        %v594 = vsel %vm468, %v509, 0
        %v597 = vsel %vm519, %v511, 0
        %599 = vmatprep.subr.mxu0 0.0
        %600 = vmatpush1.msra.mxu0 %v510
        %601 = vmatprep.subr.mxu0 0.0
        %602 = vmatpush1.msra.mxu0 %v597
        %603 = vmatprep.subr.mxu0 0.0
        %604 = vmatpush1.msra.mxu0 0.0
        %605 = vmatprep.subr.mxu0 0.0
        %606 = vmatpush1.msra.mxu0 0.0
        %607 = vmatprep.subr.mxu0 0.0
        %608 = vmatpush1.msra.mxu0 0.0
        %609 = vmatprep.subr.mxu0 0.0
        %610 = vmatpush1.msra.mxu0 0.0
        %611 = vmatprep.subr.mxu0 0.0
        %612 = vmatpush1.msra.mxu0 0.0
        %613 = vmatprep.subr.mxu0 0.0
        %614 = vmatpush1.msra.mxu0 0.0
        %615 = vmatprep.subr.mxu0 0.0
        %616 = vmatpush1.msra.mxu0 0.0
        %617 = vmatprep.subr.mxu0 0.0
        %618 = vmatpush1.msra.mxu0 0.0
        %619 = vmatprep.subr.mxu0 0.0
        %620 = vmatpush1.msra.mxu0 0.0
        %621 = vmatprep.subr.mxu0 0.0
        %622 = vmatpush1.msra.mxu0 0.0
        %623 = vmatprep.subr.mxu0 0.0
        %624 = vmatpush1.msra.mxu0 0.0
        %625 = vmatprep.subr.mxu0 0.0
        %626 = vmatpush1.msra.mxu0 0.0
        %627 = vmatprep.subr.mxu0 0.0
        %628 = vmatpush1.msra.mxu0 0.0
        %629 = vmatprep.subr.mxu0 0.0
        %630 = vmatpush1.msra.mxu0 0.0
        %631 = vmatprep.subr.mxu0 0.0
        %632 = vmatpush1.msra.mxu0 0.0
        %633 = vmatprep.subr.mxu0 0.0
        %634 = vmatpush1.msra.mxu0 0.0
        %635 = vmatprep.subr.mxu0 0.0
        %636 = vmatpush1.msra.mxu0 0.0
        %637 = vmatprep.subr.mxu0 0.0
        %638 = vmatpush1.msra.mxu0 0.0
        %639 = vmatprep.subr.mxu0 0.0
        %640 = vmatpush1.msra.mxu0 0.0
        %641 = vmatprep.subr.mxu0 0.0
        %642 = vmatpush1.msra.mxu0 0.0
        %643 = vmatprep.subr.mxu0 0.0
        %644 = vmatpush1.msra.mxu0 0.0
        %645 = vmatprep.subr.mxu0 0.0
        %646 = vmatpush1.msra.mxu0 0.0
        %647 = vmatprep.subr.mxu0 0.0
        %648 = vmatpush1.msra.mxu0 0.0
        %649 = vmatprep.subr.mxu0 0.0
        %650 = vmatpush1.msra.mxu0 0.0
        %651 = vmatprep.subr.mxu0 0.0
        %652 = vmatpush1.msra.mxu0 0.0
        %653 = vmatprep.subr.mxu0 0.0
        %654 = vmatpush1.msra.mxu0 0.0
        %655 = vmatprep.subr.mxu0 0.0
        %656 = vmatpush1.msra.mxu0 0.0
        %657 = vmatprep.subr.mxu0 0.0
        %658 = vmatpush1.msra.mxu0 0.0
        %659 = vmatprep.subr.mxu0 0.0
        %660 = vmatpush1.msra.mxu0 0.0
        %661 = vmatprep.subr.mxu0 0.0
        %662 = vmatpush1.msra.mxu0 0.0
        %663 = vmatprep.mubr.f32.mxu0 0.0
        %664 = vmatmul.mubr.f32.gmra.mrb[0].mxu0 %v594
        %v665 = vpop.f32.mrb[0].mxu0
        %v666 = vadd.f32 %v590, %v665
        %v667 = vpop.f32.mrb[0].mxu0
        %668 = vdwg.mxu0
        %v669 = vld [vmem:[#allocation2 + $0x2] sm:$0x7f]
        %s670 = scalar_lea.vmem %s1, 32
        %v671 = vld [vmem:[%s670] sm:$0xff]
        %v672 = vld [vmem:[%s670 + $0x8] sm:$0x1]
        %v674 = vsel %vm468, %v669, 0
        %v677 = vsel %vm519, %v672, 0
        %679 = vmatprep.subr.mxu0 0.0
        %680 = vmatpush1.msra.mxu0 %v671
        %681 = vmatprep.subr.mxu0 0.0
        %682 = vmatpush1.msra.mxu0 %v677
        %683 = vmatprep.subr.mxu0 0.0
        %684 = vmatpush1.msra.mxu0 0.0
        %685 = vmatprep.subr.mxu0 0.0
        %686 = vmatpush1.msra.mxu0 0.0
        %687 = vmatprep.subr.mxu0 0.0
        %688 = vmatpush1.msra.mxu0 0.0
        %689 = vmatprep.subr.mxu0 0.0
        %690 = vmatpush1.msra.mxu0 0.0
        %691 = vmatprep.subr.mxu0 0.0
        %692 = vmatpush1.msra.mxu0 0.0
        %693 = vmatprep.subr.mxu0 0.0
        %694 = vmatpush1.msra.mxu0 0.0
        %695 = vmatprep.subr.mxu0 0.0
        %696 = vmatpush1.msra.mxu0 0.0
        %697 = vmatprep.subr.mxu0 0.0
        %698 = vmatpush1.msra.mxu0 0.0
        %699 = vmatprep.subr.mxu0 0.0
        %700 = vmatpush1.msra.mxu0 0.0
        %701 = vmatprep.subr.mxu0 0.0
        %702 = vmatpush1.msra.mxu0 0.0
        %703 = vmatprep.subr.mxu0 0.0
        %704 = vmatpush1.msra.mxu0 0.0
        %705 = vmatprep.subr.mxu0 0.0
        %706 = vmatpush1.msra.mxu0 0.0
        %707 = vmatprep.subr.mxu0 0.0
        %708 = vmatpush1.msra.mxu0 0.0
        %709 = vmatprep.subr.mxu0 0.0
        %710 = vmatpush1.msra.mxu0 0.0
        %711 = vmatprep.subr.mxu0 0.0
        %712 = vmatpush1.msra.mxu0 0.0
        %713 = vmatprep.subr.mxu0 0.0
        %714 = vmatpush1.msra.mxu0 0.0
        %715 = vmatprep.subr.mxu0 0.0
        %716 = vmatpush1.msra.mxu0 0.0
        %717 = vmatprep.subr.mxu0 0.0
        %718 = vmatpush1.msra.mxu0 0.0
        %719 = vmatprep.subr.mxu0 0.0
        %720 = vmatpush1.msra.mxu0 0.0
        %721 = vmatprep.subr.mxu0 0.0
        %722 = vmatpush1.msra.mxu0 0.0
        %723 = vmatprep.subr.mxu0 0.0
        %724 = vmatpush1.msra.mxu0 0.0
        %725 = vmatprep.subr.mxu0 0.0
        %726 = vmatpush1.msra.mxu0 0.0
        %727 = vmatprep.subr.mxu0 0.0
        %728 = vmatpush1.msra.mxu0 0.0
        %729 = vmatprep.subr.mxu0 0.0
        %730 = vmatpush1.msra.mxu0 0.0
        %731 = vmatprep.subr.mxu0 0.0
        %732 = vmatpush1.msra.mxu0 0.0
        %733 = vmatprep.subr.mxu0 0.0
        %734 = vmatpush1.msra.mxu0 0.0
        %735 = vmatprep.subr.mxu0 0.0
        %736 = vmatpush1.msra.mxu0 0.0
        %737 = vmatprep.subr.mxu0 0.0
        %738 = vmatpush1.msra.mxu0 0.0
        %739 = vmatprep.subr.mxu0 0.0
        %740 = vmatpush1.msra.mxu0 0.0
        %741 = vmatprep.subr.mxu0 0.0
        %742 = vmatpush1.msra.mxu0 0.0
        %743 = vmatprep.mubr.f32.mxu0 0.0
        %744 = vmatmul.mubr.f32.gmra.mrb[0].mxu0 %v674
        %v745 = vpop.f32.mrb[0].mxu0
        %v746 = vadd.f32 0.0, %v745
        %v747 = vpop.f32.mrb[0].mxu0
        %748 = vdwg.mxu0
        %v749 = vadd.f32 %v666, %v746
        %v750 = vld [vmem:[%s2] sm:$0x1]
        %v752 = vlaneseq
        %v753 = vshrl.u32 %v752, 7
        %v754 = vsub.s32 0, %v753
        %v755 = vrot.slane %v750, %v754
        %v757 = vadd.f32 %v749, %v755
        %v758 = vtanh.pop %v757
        %759 = vst.msk [vmem:[#allocation3 + $0x4] sm:$0x7f] %vm474, %v758
        %v760 = vld [vmem:[#allocation3] sm:$0xff]
        %v761 = vld [vmem:[#allocation3 + $0x8] sm:$0x7]
        %v762 = vld [vmem:[%s3] sm:$0xff]
        %v763 = vld [vmem:[%s3 + $0x8] sm:$0xff]
        %v764 = vld [vmem:[%s3 + $0x10] sm:$0xff]
        %v765 = vld [vmem:[%s3 + $0x18] sm:$0xff]
        %v766 = vld [vmem:[%s3 + $0x20] sm:$0xff]
        %v767 = vld [vmem:[%s3 + $0x28] sm:$0xff]
        %v768 = vld [vmem:[%s3 + $0x30] sm:$0xff]
        %v769 = vld [vmem:[%s3 + $0x38] sm:$0xf]
        %v770 = vld [vmem:[#allocation3 + $0x1] sm:$0xff]
        %v771 = vld [vmem:[#allocation3 + $0x9] sm:$0x7]
        %s772 = scalar_lea.vmem %s3, 64
        %v773 = vld [vmem:[%s772] sm:$0xff]
        %v774 = vld [vmem:[%s772 + $0x8] sm:$0xff]
        %v775 = vld [vmem:[%s772 + $0x10] sm:$0xff]
        %v776 = vld [vmem:[%s772 + $0x18] sm:$0xff]
        %v777 = vld [vmem:[%s772 + $0x20] sm:$0xff]
        %v778 = vld [vmem:[%s772 + $0x28] sm:$0xff]
        %v779 = vld [vmem:[%s772 + $0x30] sm:$0xff]
        %v780 = vld [vmem:[%s772 + $0x38] sm:$0xf]
        %v782 = vsel %vm472, %v770, 0
        %v785 = vsel %vm472, %v771, 0
        %vm787 = vcmask 1043456
        %v789 = vsel %vm787, %v780, 0
        %791 = vmatprep.subr.mxu0 0.0
        %792 = vmatpush1.msra.mxu0 %v773
        %793 = vmatprep.subr.mxu0 0.0
        %794 = vmatpush1.msra.mxu0 %v774
        %795 = vmatprep.subr.mxu0 0.0
        %796 = vmatpush1.msra.mxu0 %v775
        %797 = vmatprep.subr.mxu0 0.0
        %798 = vmatpush1.msra.mxu0 %v776
        %799 = vmatprep.subr.mxu0 0.0
        %800 = vmatpush1.msra.mxu0 %v777
        %801 = vmatprep.subr.mxu0 0.0
        %802 = vmatpush1.msra.mxu0 %v778
        %803 = vmatprep.subr.mxu0 0.0
        %804 = vmatpush1.msra.mxu0 %v779
        %805 = vmatprep.subr.mxu0 0.0
        %806 = vmatpush1.msra.mxu0 %v789
        %807 = vmatprep.subr.mxu0 0.0
        %808 = vmatpush1.msra.mxu0 0.0
        %809 = vmatprep.subr.mxu0 0.0
        %810 = vmatpush1.msra.mxu0 0.0
        %811 = vmatprep.subr.mxu0 0.0
        %812 = vmatpush1.msra.mxu0 0.0
        %813 = vmatprep.subr.mxu0 0.0
        %814 = vmatpush1.msra.mxu0 0.0
        %815 = vmatprep.subr.mxu0 0.0
        %816 = vmatpush1.msra.mxu0 0.0
        %817 = vmatprep.subr.mxu0 0.0
        %818 = vmatpush1.msra.mxu0 0.0
        %819 = vmatprep.subr.mxu0 0.0
        %820 = vmatpush1.msra.mxu0 0.0
        %821 = vmatprep.subr.mxu0 0.0
        %822 = vmatpush1.msra.mxu0 0.0
        %823 = vmatprep.subr.mxu0 0.0
        %824 = vmatpush1.msra.mxu0 0.0
        %825 = vmatprep.subr.mxu0 0.0
        %826 = vmatpush1.msra.mxu0 0.0
        %827 = vmatprep.subr.mxu0 0.0
        %828 = vmatpush1.msra.mxu0 0.0
        %829 = vmatprep.subr.mxu0 0.0
        %830 = vmatpush1.msra.mxu0 0.0
        %831 = vmatprep.subr.mxu0 0.0
        %832 = vmatpush1.msra.mxu0 0.0
        %833 = vmatprep.subr.mxu0 0.0
        %834 = vmatpush1.msra.mxu0 0.0
        %835 = vmatprep.subr.mxu0 0.0
        %836 = vmatpush1.msra.mxu0 0.0
        %837 = vmatprep.subr.mxu0 0.0
        %838 = vmatpush1.msra.mxu0 0.0
        %839 = vmatprep.subr.mxu0 0.0
        %840 = vmatpush1.msra.mxu0 0.0
        %841 = vmatprep.subr.mxu0 0.0
        %842 = vmatpush1.msra.mxu0 0.0
        %843 = vmatprep.subr.mxu0 0.0
        %844 = vmatpush1.msra.mxu0 0.0
        %845 = vmatprep.subr.mxu0 0.0
        %846 = vmatpush1.msra.mxu0 0.0
        %847 = vmatprep.subr.mxu0 0.0
        %848 = vmatpush1.msra.mxu0 0.0
        %849 = vmatprep.subr.mxu0 0.0
        %850 = vmatpush1.msra.mxu0 0.0
        %851 = vmatprep.subr.mxu0 0.0
        %852 = vmatpush1.msra.mxu0 0.0
        %853 = vmatprep.subr.mxu0 0.0
        %854 = vmatpush1.msra.mxu0 0.0
        %855 = vmatprep.mubr.f32.mxu0 0.0
        %856 = vmatmul.mubr.f32.gmra.mrb[0].mxu0 %v782
        %v857 = vpop.f32.mrb[0].mxu0
        %v858 = vadd.f32 0.0, %v857
        %v859 = vpop.f32.mrb[0].mxu0
        %860 = vmatprep.mubr.f32.mxu0 0.0
        %861 = vmatmul.mubr.f32.gmra.mrb[0].mxu0 %v785
        %v862 = vpop.f32.mrb[0].mxu0
        %v863 = vadd.f32 0.0, %v862
        %v864 = vpop.f32.mrb[0].mxu0
        %865 = vdwg.mxu0
        %v867 = vsel %vm472, %v760, 0
        %v870 = vsel %vm472, %v761, 0
        %v873 = vsel %vm787, %v769, 0
        %875 = vmatprep.subr.mxu0 0.0
        %876 = vmatpush1.msra.mxu0 %v762
        %877 = vmatprep.subr.mxu0 0.0
        %878 = vmatpush1.msra.mxu0 %v763
        %879 = vmatprep.subr.mxu0 0.0
        %880 = vmatpush1.msra.mxu0 %v764
        %881 = vmatprep.subr.mxu0 0.0
        %882 = vmatpush1.msra.mxu0 %v765
        %883 = vmatprep.subr.mxu0 0.0
        %884 = vmatpush1.msra.mxu0 %v766
        %885 = vmatprep.subr.mxu0 0.0
        %886 = vmatpush1.msra.mxu0 %v767
        %887 = vmatprep.subr.mxu0 0.0
        %888 = vmatpush1.msra.mxu0 %v768
        %889 = vmatprep.subr.mxu0 0.0
        %890 = vmatpush1.msra.mxu0 %v873
        %891 = vmatprep.subr.mxu0 0.0
        %892 = vmatpush1.msra.mxu0 0.0
        %893 = vmatprep.subr.mxu0 0.0
        %894 = vmatpush1.msra.mxu0 0.0
        %895 = vmatprep.subr.mxu0 0.0
        %896 = vmatpush1.msra.mxu0 0.0
        %897 = vmatprep.subr.mxu0 0.0
        %898 = vmatpush1.msra.mxu0 0.0
        %899 = vmatprep.subr.mxu0 0.0
        %900 = vmatpush1.msra.mxu0 0.0
        %901 = vmatprep.subr.mxu0 0.0
        %902 = vmatpush1.msra.mxu0 0.0
        %903 = vmatprep.subr.mxu0 0.0
        %904 = vmatpush1.msra.mxu0 0.0
        %905 = vmatprep.subr.mxu0 0.0
        %906 = vmatpush1.msra.mxu0 0.0
        %907 = vmatprep.subr.mxu0 0.0
        %908 = vmatpush1.msra.mxu0 0.0
        %909 = vmatprep.subr.mxu0 0.0
        %910 = vmatpush1.msra.mxu0 0.0
        %911 = vmatprep.subr.mxu0 0.0
        %912 = vmatpush1.msra.mxu0 0.0
        %913 = vmatprep.subr.mxu0 0.0
        %914 = vmatpush1.msra.mxu0 0.0
        %915 = vmatprep.subr.mxu0 0.0
        %916 = vmatpush1.msra.mxu0 0.0
        %917 = vmatprep.subr.mxu0 0.0
        %918 = vmatpush1.msra.mxu0 0.0
        %919 = vmatprep.subr.mxu0 0.0
        %920 = vmatpush1.msra.mxu0 0.0
        %921 = vmatprep.subr.mxu0 0.0
        %922 = vmatpush1.msra.mxu0 0.0
        %923 = vmatprep.subr.mxu0 0.0
        %924 = vmatpush1.msra.mxu0 0.0
        %925 = vmatprep.subr.mxu0 0.0
        %926 = vmatpush1.msra.mxu0 0.0
        %927 = vmatprep.subr.mxu0 0.0
        %928 = vmatpush1.msra.mxu0 0.0
        %929 = vmatprep.subr.mxu0 0.0
        %930 = vmatpush1.msra.mxu0 0.0
        %931 = vmatprep.subr.mxu0 0.0
        %932 = vmatpush1.msra.mxu0 0.0
        %933 = vmatprep.subr.mxu0 0.0
        %934 = vmatpush1.msra.mxu0 0.0
        %935 = vmatprep.subr.mxu0 0.0
        %936 = vmatpush1.msra.mxu0 0.0
        %937 = vmatprep.subr.mxu0 0.0
        %938 = vmatpush1.msra.mxu0 0.0
        %939 = vmatprep.mubr.f32.mxu0 0.0
        %940 = vmatmul.mubr.f32.gmra.mrb[0].mxu0 %v867
        %v941 = vpop.f32.mrb[0].mxu0
        %v942 = vadd.f32 %v858, %v941
        %v943 = vpop.f32.mrb[0].mxu0
        %944 = vmatprep.mubr.f32.mxu0 0.0
        %945 = vmatmul.mubr.f32.gmra.mrb[0].mxu0 %v870
        %v946 = vpop.f32.mrb[0].mxu0
        %v947 = vadd.f32 %v863, %v946
        %v948 = vpop.f32.mrb[0].mxu0
        %949 = vdwg.mxu0
        %v950 = vld [vmem:[#allocation3 + $0x2] sm:$0xff]
        %v951 = vld [vmem:[#allocation3 + $0xa] sm:$0x7]
        %s952 = scalar_lea.vmem %s3, 128
        %v953 = vld [vmem:[%s952] sm:$0xff]
        %v954 = vld [vmem:[%s952 + $0x8] sm:$0xff]
        %v955 = vld [vmem:[%s952 + $0x10] sm:$0xff]
        %v956 = vld [vmem:[%s952 + $0x18] sm:$0xff]
        %v957 = vld [vmem:[%s952 + $0x20] sm:$0xff]
        %v958 = vld [vmem:[%s952 + $0x28] sm:$0xff]
        %v959 = vld [vmem:[%s952 + $0x30] sm:$0xff]
        %v960 = vld [vmem:[%s952 + $0x38] sm:$0xf]
        %v962 = vsel %vm472, %v950, 0
        %v965 = vsel %vm472, %v951, 0
        %v968 = vsel %vm787, %v960, 0
        %970 = vmatprep.subr.mxu0 0.0
        %971 = vmatpush1.msra.mxu0 %v953
        %972 = vmatprep.subr.mxu0 0.0
        %973 = vmatpush1.msra.mxu0 %v954
        %974 = vmatprep.subr.mxu0 0.0
        %975 = vmatpush1.msra.mxu0 %v955
        %976 = vmatprep.subr.mxu0 0.0
        %977 = vmatpush1.msra.mxu0 %v956
        %978 = vmatprep.subr.mxu0 0.0
        %979 = vmatpush1.msra.mxu0 %v957
        %980 = vmatprep.subr.mxu0 0.0
        %981 = vmatpush1.msra.mxu0 %v958
        %982 = vmatprep.subr.mxu0 0.0
        %983 = vmatpush1.msra.mxu0 %v959
        %984 = vmatprep.subr.mxu0 0.0
        %985 = vmatpush1.msra.mxu0 %v968
        %986 = vmatprep.subr.mxu0 0.0
        %987 = vmatpush1.msra.mxu0 0.0
        %988 = vmatprep.subr.mxu0 0.0
        %989 = vmatpush1.msra.mxu0 0.0
        %990 = vmatprep.subr.mxu0 0.0
        %991 = vmatpush1.msra.mxu0 0.0
        %992 = vmatprep.subr.mxu0 0.0
        %993 = vmatpush1.msra.mxu0 0.0
        %994 = vmatprep.subr.mxu0 0.0
        %995 = vmatpush1.msra.mxu0 0.0
        %996 = vmatprep.subr.mxu0 0.0
        %997 = vmatpush1.msra.mxu0 0.0
        %998 = vmatprep.subr.mxu0 0.0
        %999 = vmatpush1.msra.mxu0 0.0
        %1000 = vmatprep.subr.mxu0 0.0
        %1001 = vmatpush1.msra.mxu0 0.0
        %1002 = vmatprep.subr.mxu0 0.0
        %1003 = vmatpush1.msra.mxu0 0.0
        %1004 = vmatprep.subr.mxu0 0.0
        %1005 = vmatpush1.msra.mxu0 0.0
        %1006 = vmatprep.subr.mxu0 0.0
        %1007 = vmatpush1.msra.mxu0 0.0
        %1008 = vmatprep.subr.mxu0 0.0
        %1009 = vmatpush1.msra.mxu0 0.0
        %1010 = vmatprep.subr.mxu0 0.0
        %1011 = vmatpush1.msra.mxu0 0.0
        %1012 = vmatprep.subr.mxu0 0.0
        %1013 = vmatpush1.msra.mxu0 0.0
        %1014 = vmatprep.subr.mxu0 0.0
        %1015 = vmatpush1.msra.mxu0 0.0
        %1016 = vmatprep.subr.mxu0 0.0
        %1017 = vmatpush1.msra.mxu0 0.0
        %1018 = vmatprep.subr.mxu0 0.0
        %1019 = vmatpush1.msra.mxu0 0.0
        %1020 = vmatprep.subr.mxu0 0.0
        %1021 = vmatpush1.msra.mxu0 0.0
        %1022 = vmatprep.subr.mxu0 0.0
        %1023 = vmatpush1.msra.mxu0 0.0
        %1024 = vmatprep.subr.mxu0 0.0
        %1025 = vmatpush1.msra.mxu0 0.0
        %1026 = vmatprep.subr.mxu0 0.0
        %1027 = vmatpush1.msra.mxu0 0.0
        %1028 = vmatprep.subr.mxu0 0.0
        %1029 = vmatpush1.msra.mxu0 0.0
        %1030 = vmatprep.subr.mxu0 0.0
        %1031 = vmatpush1.msra.mxu0 0.0
        %1032 = vmatprep.subr.mxu0 0.0
        %1033 = vmatpush1.msra.mxu0 0.0
        %1034 = vmatprep.mubr.f32.mxu0 0.0
        %1035 = vmatmul.mubr.f32.gmra.mrb[0].mxu0 %v962
        %v1036 = vpop.f32.mrb[0].mxu0
        %v1037 = vadd.f32 0.0, %v1036
        %v1038 = vpop.f32.mrb[0].mxu0
        %1039 = vmatprep.mubr.f32.mxu0 0.0
        %1040 = vmatmul.mubr.f32.gmra.mrb[0].mxu0 %v965
        %v1041 = vpop.f32.mrb[0].mxu0
        %v1042 = vadd.f32 0.0, %v1041
        %v1043 = vpop.f32.mrb[0].mxu0
        %1044 = vdwg.mxu0
        %v1045 = vadd.f32 %v942, %v1037
        %v1046 = vadd.f32 %v947, %v1042
        %v1047 = vld [vmem:[#allocation3 + $0x3] sm:$0xff]
        %v1048 = vld [vmem:[#allocation3 + $0xb] sm:$0x7]
        %s1049 = scalar_lea.vmem %s3, 192
        %v1050 = vld [vmem:[%s1049] sm:$0xff]
        %v1051 = vld [vmem:[%s1049 + $0x8] sm:$0xff]
        %v1052 = vld [vmem:[%s1049 + $0x10] sm:$0xff]
        %v1053 = vld [vmem:[%s1049 + $0x18] sm:$0xff]
        %v1054 = vld [vmem:[%s1049 + $0x20] sm:$0xff]
        %v1055 = vld [vmem:[%s1049 + $0x28] sm:$0xff]
        %v1056 = vld [vmem:[%s1049 + $0x30] sm:$0xff]
        %v1057 = vld [vmem:[%s1049 + $0x38] sm:$0xf]
        %v1059 = vsel %vm472, %v1047, 0
        %v1062 = vsel %vm472, %v1048, 0
        %v1065 = vsel %vm787, %v1057, 0
        %1067 = vmatprep.subr.mxu0 0.0
        %1068 = vmatpush1.msra.mxu0 %v1050
        %1069 = vmatprep.subr.mxu0 0.0
        %1070 = vmatpush1.msra.mxu0 %v1051
        %1071 = vmatprep.subr.mxu0 0.0
        %1072 = vmatpush1.msra.mxu0 %v1052
        %1073 = vmatprep.subr.mxu0 0.0
        %1074 = vmatpush1.msra.mxu0 %v1053
        %1075 = vmatprep.subr.mxu0 0.0
        %1076 = vmatpush1.msra.mxu0 %v1054
        %1077 = vmatprep.subr.mxu0 0.0
        %1078 = vmatpush1.msra.mxu0 %v1055
        %1079 = vmatprep.subr.mxu0 0.0
        %1080 = vmatpush1.msra.mxu0 %v1056
        %1081 = vmatprep.subr.mxu0 0.0
        %1082 = vmatpush1.msra.mxu0 %v1065
        %1083 = vmatprep.subr.mxu0 0.0
        %1084 = vmatpush1.msra.mxu0 0.0
        %1085 = vmatprep.subr.mxu0 0.0
        %1086 = vmatpush1.msra.mxu0 0.0
        %1087 = vmatprep.subr.mxu0 0.0
        %1088 = vmatpush1.msra.mxu0 0.0
        %1089 = vmatprep.subr.mxu0 0.0
        %1090 = vmatpush1.msra.mxu0 0.0
        %1091 = vmatprep.subr.mxu0 0.0
        %1092 = vmatpush1.msra.mxu0 0.0
        %1093 = vmatprep.subr.mxu0 0.0
        %1094 = vmatpush1.msra.mxu0 0.0
        %1095 = vmatprep.subr.mxu0 0.0
        %1096 = vmatpush1.msra.mxu0 0.0
        %1097 = vmatprep.subr.mxu0 0.0
        %1098 = vmatpush1.msra.mxu0 0.0
        %1099 = vmatprep.subr.mxu0 0.0
        %1100 = vmatpush1.msra.mxu0 0.0
        %1101 = vmatprep.subr.mxu0 0.0
        %1102 = vmatpush1.msra.mxu0 0.0
        %1103 = vmatprep.subr.mxu0 0.0
        %1104 = vmatpush1.msra.mxu0 0.0
        %1105 = vmatprep.subr.mxu0 0.0
        %1106 = vmatpush1.msra.mxu0 0.0
        %1107 = vmatprep.subr.mxu0 0.0
        %1108 = vmatpush1.msra.mxu0 0.0
        %1109 = vmatprep.subr.mxu0 0.0
        %1110 = vmatpush1.msra.mxu0 0.0
        %1111 = vmatprep.subr.mxu0 0.0
        %1112 = vmatpush1.msra.mxu0 0.0
        %1113 = vmatprep.subr.mxu0 0.0
        %1114 = vmatpush1.msra.mxu0 0.0
        %1115 = vmatprep.subr.mxu0 0.0
        %1116 = vmatpush1.msra.mxu0 0.0
        %1117 = vmatprep.subr.mxu0 0.0
        %1118 = vmatpush1.msra.mxu0 0.0
        %1119 = vmatprep.subr.mxu0 0.0
        %1120 = vmatpush1.msra.mxu0 0.0
        %1121 = vmatprep.subr.mxu0 0.0
        %1122 = vmatpush1.msra.mxu0 0.0
        %1123 = vmatprep.subr.mxu0 0.0
        %1124 = vmatpush1.msra.mxu0 0.0
        %1125 = vmatprep.subr.mxu0 0.0
        %1126 = vmatpush1.msra.mxu0 0.0
        %1127 = vmatprep.subr.mxu0 0.0
        %1128 = vmatpush1.msra.mxu0 0.0
        %1129 = vmatprep.subr.mxu0 0.0
        %1130 = vmatpush1.msra.mxu0 0.0
        %1131 = vmatprep.mubr.f32.mxu0 0.0
        %1132 = vmatmul.mubr.f32.gmra.mrb[0].mxu0 %v1059
        %v1133 = vpop.f32.mrb[0].mxu0
        %v1134 = vadd.f32 0.0, %v1133
        %v1135 = vpop.f32.mrb[0].mxu0
        %1136 = vmatprep.mubr.f32.mxu0 0.0
        %1137 = vmatmul.mubr.f32.gmra.mrb[0].mxu0 %v1062
        %v1138 = vpop.f32.mrb[0].mxu0
        %v1139 = vadd.f32 0.0, %v1138
        %v1140 = vpop.f32.mrb[0].mxu0
        %1141 = vdwg.mxu0
        %v1142 = vadd.f32 %v1045, %v1134
        %v1143 = vadd.f32 %v1046, %v1139
        %v1144 = vld [vmem:[#allocation3 + $0x4] sm:$0xff]
        %v1145 = vld [vmem:[#allocation3 + $0xc] sm:$0x7]
        %s1146 = scalar_lea.vmem %s3, 256
        %v1147 = vld [vmem:[%s1146] sm:$0xff]
        %v1148 = vld [vmem:[%s1146 + $0x8] sm:$0xff]
        %v1149 = vld [vmem:[%s1146 + $0x10] sm:$0xff]
        %v1150 = vld [vmem:[%s1146 + $0x18] sm:$0xff]
        %v1151 = vld [vmem:[%s1146 + $0x20] sm:$0xff]
        %v1152 = vld [vmem:[%s1146 + $0x28] sm:$0xff]
        %v1153 = vld [vmem:[%s1146 + $0x30] sm:$0xff]
        %v1154 = vld [vmem:[%s1146 + $0x38] sm:$0xf]
        %v1156 = vsel %vm472, %v1144, 0
        %v1159 = vsel %vm472, %v1145, 0
        %v1162 = vsel %vm787, %v1154, 0
        %1164 = vmatprep.subr.mxu0 0.0
        %1165 = vmatpush1.msra.mxu0 %v1147
        %1166 = vmatprep.subr.mxu0 0.0
        %1167 = vmatpush1.msra.mxu0 %v1148
        %1168 = vmatprep.subr.mxu0 0.0
        %1169 = vmatpush1.msra.mxu0 %v1149
        %1170 = vmatprep.subr.mxu0 0.0
        %1171 = vmatpush1.msra.mxu0 %v1150
        %1172 = vmatprep.subr.mxu0 0.0
        %1173 = vmatpush1.msra.mxu0 %v1151
        %1174 = vmatprep.subr.mxu0 0.0
        %1175 = vmatpush1.msra.mxu0 %v1152
        %1176 = vmatprep.subr.mxu0 0.0
        %1177 = vmatpush1.msra.mxu0 %v1153
        %1178 = vmatprep.subr.mxu0 0.0
        %1179 = vmatpush1.msra.mxu0 %v1162
        %1180 = vmatprep.subr.mxu0 0.0
        %1181 = vmatpush1.msra.mxu0 0.0
        %1182 = vmatprep.subr.mxu0 0.0
        %1183 = vmatpush1.msra.mxu0 0.0
        %1184 = vmatprep.subr.mxu0 0.0
        %1185 = vmatpush1.msra.mxu0 0.0
        %1186 = vmatprep.subr.mxu0 0.0
        %1187 = vmatpush1.msra.mxu0 0.0
        %1188 = vmatprep.subr.mxu0 0.0
        %1189 = vmatpush1.msra.mxu0 0.0
        %1190 = vmatprep.subr.mxu0 0.0
        %1191 = vmatpush1.msra.mxu0 0.0
        %1192 = vmatprep.subr.mxu0 0.0
        %1193 = vmatpush1.msra.mxu0 0.0
        %1194 = vmatprep.subr.mxu0 0.0
        %1195 = vmatpush1.msra.mxu0 0.0
        %1196 = vmatprep.subr.mxu0 0.0
        %1197 = vmatpush1.msra.mxu0 0.0
        %1198 = vmatprep.subr.mxu0 0.0
        %1199 = vmatpush1.msra.mxu0 0.0
        %1200 = vmatprep.subr.mxu0 0.0
        %1201 = vmatpush1.msra.mxu0 0.0
        %1202 = vmatprep.subr.mxu0 0.0
        %1203 = vmatpush1.msra.mxu0 0.0
        %1204 = vmatprep.subr.mxu0 0.0
        %1205 = vmatpush1.msra.mxu0 0.0
        %1206 = vmatprep.subr.mxu0 0.0
        %1207 = vmatpush1.msra.mxu0 0.0
        %1208 = vmatprep.subr.mxu0 0.0
        %1209 = vmatpush1.msra.mxu0 0.0
        %1210 = vmatprep.subr.mxu0 0.0
        %1211 = vmatpush1.msra.mxu0 0.0
        %1212 = vmatprep.subr.mxu0 0.0
        %1213 = vmatpush1.msra.mxu0 0.0
        %1214 = vmatprep.subr.mxu0 0.0
        %1215 = vmatpush1.msra.mxu0 0.0
        %1216 = vmatprep.subr.mxu0 0.0
        %1217 = vmatpush1.msra.mxu0 0.0
        %1218 = vmatprep.subr.mxu0 0.0
        %1219 = vmatpush1.msra.mxu0 0.0
        %1220 = vmatprep.subr.mxu0 0.0
        %1221 = vmatpush1.msra.mxu0 0.0
        %1222 = vmatprep.subr.mxu0 0.0
        %1223 = vmatpush1.msra.mxu0 0.0
        %1224 = vmatprep.subr.mxu0 0.0
        %1225 = vmatpush1.msra.mxu0 0.0
        %1226 = vmatprep.subr.mxu0 0.0
        %1227 = vmatpush1.msra.mxu0 0.0
        %1228 = vmatprep.mubr.f32.mxu0 0.0
        %1229 = vmatmul.mubr.f32.gmra.mrb[0].mxu0 %v1156
        %v1230 = vpop.f32.mrb[0].mxu0
        %v1231 = vadd.f32 0.0, %v1230
        %v1232 = vpop.f32.mrb[0].mxu0
        %1233 = vmatprep.mubr.f32.mxu0 0.0
        %1234 = vmatmul.mubr.f32.gmra.mrb[0].mxu0 %v1159
        %v1235 = vpop.f32.mrb[0].mxu0
        %v1236 = vadd.f32 0.0, %v1235
        %v1237 = vpop.f32.mrb[0].mxu0
        %1238 = vdwg.mxu0
        %v1239 = vadd.f32 %v1142, %v1231
        %v1240 = vadd.f32 %v1143, %v1236
        %v1241 = vld [vmem:[%s4] sm:$0x1]
        %v1243 = vlaneseq
        %v1244 = vshrl.u32 %v1243, 7
        %v1245 = vsub.s32 0, %v1244
        %v1246 = vrot.slane %v1241, %v1245
        %v1248 = vadd.f32 %v1239, %v1246
        %v1249 = vadd.f32 %v1240, %v1246
        %v1250 = vtanh.pop %v1248
        %v1251 = vtanh.pop %v1249
        %v1252 = vld [vmem:[%s11] sm:$0xff]
        %v1253 = vld [vmem:[%s11 + $0x8] sm:$0xff]
        %v1254 = vld [vmem:[%s11 + $0x10] sm:$0x3f]
        %vm1255 = vcmask 89088
        %v1257 = vsel %vm1255, %v1252, 0
        %v1260 = vsel %vm1255, %v1253, 0
        %v1263 = vsel %vm1255, %v1254, 0
        %vm1265 = vcmask 1042432
        %v1267 = vsel %vm1265, %v1251, 0
        %1269 = vmatprep.subr.mxu0 0.0
        %1270 = vmatpush1.msra.mxu0 %v1250
        %1271 = vmatprep.subr.mxu0 0.0
        %1272 = vmatpush1.msra.mxu0 %v1267
        %1273 = vmatprep.subr.mxu0 0.0
        %1274 = vmatpush1.msra.mxu0 0.0
        %1275 = vmatprep.subr.mxu0 0.0
        %1276 = vmatpush1.msra.mxu0 0.0
        %1277 = vmatprep.subr.mxu0 0.0
        %1278 = vmatpush1.msra.mxu0 0.0
        %1279 = vmatprep.subr.mxu0 0.0
        %1280 = vmatpush1.msra.mxu0 0.0
        %1281 = vmatprep.subr.mxu0 0.0
        %1282 = vmatpush1.msra.mxu0 0.0
        %1283 = vmatprep.subr.mxu0 0.0
        %1284 = vmatpush1.msra.mxu0 0.0
        %1285 = vmatprep.subr.mxu0 0.0
        %1286 = vmatpush1.msra.mxu0 0.0
        %1287 = vmatprep.subr.mxu0 0.0
        %1288 = vmatpush1.msra.mxu0 0.0
        %1289 = vmatprep.subr.mxu0 0.0
        %1290 = vmatpush1.msra.mxu0 0.0
        %1291 = vmatprep.subr.mxu0 0.0
        %1292 = vmatpush1.msra.mxu0 0.0
        %1293 = vmatprep.subr.mxu0 0.0
        %1294 = vmatpush1.msra.mxu0 0.0
        %1295 = vmatprep.subr.mxu0 0.0
        %1296 = vmatpush1.msra.mxu0 0.0
        %1297 = vmatprep.subr.mxu0 0.0
        %1298 = vmatpush1.msra.mxu0 0.0
        %1299 = vmatprep.subr.mxu0 0.0
        %1300 = vmatpush1.msra.mxu0 0.0
        %1301 = vmatprep.subr.mxu0 0.0
        %1302 = vmatpush1.msra.mxu0 0.0
        %1303 = vmatprep.subr.mxu0 0.0
        %1304 = vmatpush1.msra.mxu0 0.0
        %1305 = vmatprep.subr.mxu0 0.0
        %1306 = vmatpush1.msra.mxu0 0.0
        %1307 = vmatprep.subr.mxu0 0.0
        %1308 = vmatpush1.msra.mxu0 0.0
        %1309 = vmatprep.subr.mxu0 0.0
        %1310 = vmatpush1.msra.mxu0 0.0
        %1311 = vmatprep.subr.mxu0 0.0
        %1312 = vmatpush1.msra.mxu0 0.0
        %1313 = vmatprep.subr.mxu0 0.0
        %1314 = vmatpush1.msra.mxu0 0.0
        %1315 = vmatprep.subr.mxu0 0.0
        %1316 = vmatpush1.msra.mxu0 0.0
        %1317 = vmatprep.subr.mxu0 0.0
        %1318 = vmatpush1.msra.mxu0 0.0
        %1319 = vmatprep.subr.mxu0 0.0
        %1320 = vmatpush1.msra.mxu0 0.0
        %1321 = vmatprep.subr.mxu0 0.0
        %1322 = vmatpush1.msra.mxu0 0.0
        %1323 = vmatprep.subr.mxu0 0.0
        %1324 = vmatpush1.msra.mxu0 0.0
        %1325 = vmatprep.subr.mxu0 0.0
        %1326 = vmatpush1.msra.mxu0 0.0
        %1327 = vmatprep.subr.mxu0 0.0
        %1328 = vmatpush1.msra.mxu0 0.0
        %1329 = vmatprep.subr.mxu0 0.0
        %1330 = vmatpush1.msra.mxu0 0.0
        %1331 = vmatprep.subr.mxu0 0.0
        %1332 = vmatpush1.msra.mxu0 0.0
        %1333 = vmatprep.mubr.f32.mxu0 0.0
        %1334 = vmatmul.mubr.f32.gmra.mrb[0].mxu0 %v1257
        %v1335 = vpop.f32.mrb[0].mxu0
        %v1336 = vadd.f32 0.0, %v1335
        %v1337 = vpop.f32.mrb[0].mxu0
        %1338 = vmatprep.mubr.f32.mxu0 0.0
        %1339 = vmatmul.mubr.f32.gmra.mrb[0].mxu0 %v1260
        %v1340 = vpop.f32.mrb[0].mxu0
        %v1341 = vadd.f32 0.0, %v1340
        %v1342 = vpop.f32.mrb[0].mxu0
        %1343 = vmatprep.mubr.f32.mxu0 0.0
        %1344 = vmatmul.mubr.f32.gmra.mrb[0].mxu0 %v1263
        %v1345 = vpop.f32.mrb[0].mxu0
        %v1346 = vadd.f32 0.0, %v1345
        %v1347 = vpop.f32.mrb[0].mxu0
        %1348 = vdwg.mxu0
        %v1349 = vld [vmem:[%s12] sm:$0xff]
        %v1350 = vld [vmem:[%s12 + $0x8] sm:$0xff]
        %v1351 = vld [vmem:[%s12 + $0x10] sm:$0xff]
        %v1352 = vld [vmem:[%s12 + $0x18] sm:$0xff]
        %v1353 = vld [vmem:[%s12 + $0x20] sm:$0xff]
        %v1354 = vld [vmem:[%s12 + $0x28] sm:$0xff]
        %v1355 = vld [vmem:[%s12 + $0x30] sm:$0xff]
        %v1356 = vld [vmem:[%s12 + $0x38] sm:$0xff]
        %v1357 = vld [vmem:[%s12 + $0x40] sm:$0xff]
        %v1358 = vld [vmem:[%s12 + $0x48] sm:$0xff]
        %v1359 = vld [vmem:[%s12 + $0x50] sm:$0xff]
        %v1360 = vld [vmem:[%s12 + $0x58] sm:$0xff]
        %v1361 = vld [vmem:[%s12 + $0x60] sm:$0xff]
        %v1362 = vld [vmem:[%s12 + $0x68] sm:$0xff]
        %v1363 = vld [vmem:[%s12 + $0x70] sm:$0xff]
        %v1364 = vld [vmem:[%s12 + $0x78] sm:$0xff]
        %v1365 = vld [vmem:[%s12 + $0x80] sm:$0xff]
        %v1366 = vld [vmem:[%s12 + $0x88] sm:$0xff]
        %v1367 = vld [vmem:[%s12 + $0x90] sm:$0xff]
        %v1368 = vld [vmem:[%s12 + $0x98] sm:$0xff]
        %v1369 = vld [vmem:[%s12 + $0xa0] sm:$0xff]
        %v1370 = vld [vmem:[%s12 + $0xa8] sm:$0xff]
        %vm1371 = vcmask 719872
        %v1373 = vsel %vm1371, %v1336, 0
        %v1376 = vsel %vm1371, %v1341, 0
        %v1379 = vsel %vm1371, %v1346, 0
        %1381 = vmatprep.subr.mxu0 %v1350
        %1382 = vmatpush1.msra.mxu0 %v1349
        %1383 = vmatprep.subr.mxu0 %v1352
        %1384 = vmatpush1.msra.mxu0 %v1351
        %1385 = vmatprep.subr.mxu0 %v1354
        %1386 = vmatpush1.msra.mxu0 %v1353
        %1387 = vmatprep.subr.mxu0 %v1356
        %1388 = vmatpush1.msra.mxu0 %v1355
        %1389 = vmatprep.subr.mxu0 %v1358
        %1390 = vmatpush1.msra.mxu0 %v1357
        %1391 = vmatprep.subr.mxu0 %v1360
        %1392 = vmatpush1.msra.mxu0 %v1359
        %1393 = vmatprep.subr.mxu0 %v1362
        %1394 = vmatpush1.msra.mxu0 %v1361
        %1395 = vmatprep.subr.mxu0 %v1364
        %1396 = vmatpush1.msra.mxu0 %v1363
        %1397 = vmatprep.subr.mxu0 %v1366
        %1398 = vmatpush1.msra.mxu0 %v1365
        %1399 = vmatprep.subr.mxu0 %v1368
        %1400 = vmatpush1.msra.mxu0 %v1367
        %1401 = vmatprep.subr.mxu0 %v1370
        %1402 = vmatpush1.msra.mxu0 %v1369
        %1403 = vmatprep.subr.mxu0 0.0
        %1404 = vmatpush1.msra.mxu0 0.0
        %1405 = vmatprep.subr.mxu0 0.0
        %1406 = vmatpush1.msra.mxu0 0.0
        %1407 = vmatprep.subr.mxu0 0.0
        %1408 = vmatpush1.msra.mxu0 0.0
        %1409 = vmatprep.subr.mxu0 0.0
        %1410 = vmatpush1.msra.mxu0 0.0
        %1411 = vmatprep.subr.mxu0 0.0
        %1412 = vmatpush1.msra.mxu0 0.0
        %1413 = vmatprep.subr.mxu0 0.0
        %1414 = vmatpush1.msra.mxu0 0.0
        %1415 = vmatprep.subr.mxu0 0.0
        %1416 = vmatpush1.msra.mxu0 0.0
        %1417 = vmatprep.subr.mxu0 0.0
        %1418 = vmatpush1.msra.mxu0 0.0
        %1419 = vmatprep.subr.mxu0 0.0
        %1420 = vmatpush1.msra.mxu0 0.0
        %1421 = vmatprep.subr.mxu0 0.0
        %1422 = vmatpush1.msra.mxu0 0.0
        %1423 = vmatprep.subr.mxu0 0.0
        %1424 = vmatpush1.msra.mxu0 0.0
        %1425 = vmatprep.subr.mxu0 0.0
        %1426 = vmatpush1.msra.mxu0 0.0
        %1427 = vmatprep.subr.mxu0 0.0
        %1428 = vmatpush1.msra.mxu0 0.0
        %1429 = vmatprep.subr.mxu0 0.0
        %1430 = vmatpush1.msra.mxu0 0.0
        %1431 = vmatprep.subr.mxu0 0.0
        %1432 = vmatpush1.msra.mxu0 0.0
        %1433 = vmatprep.subr.mxu0 0.0
        %1434 = vmatpush1.msra.mxu0 0.0
        %1435 = vmatprep.subr.mxu0 0.0
        %1436 = vmatpush1.msra.mxu0 0.0
        %1437 = vmatprep.subr.mxu0 0.0
        %1438 = vmatpush1.msra.mxu0 0.0
        %1439 = vmatprep.subr.mxu0 0.0
        %1440 = vmatpush1.msra.mxu0 0.0
        %1441 = vmatprep.subr.mxu0 0.0
        %1442 = vmatpush1.msra.mxu0 0.0
        %1443 = vmatprep.subr.mxu0 0.0
        %1444 = vmatpush1.msra.mxu0 0.0
        %1445 = vmatprep.mubr.f32.mxu0 0.0
        %1446 = vmatmul.mubr.f32.gmra.mrb[0].mxu0 %v1373
        %v1447 = vpop.f32.mrb[0].mxu0
        %v1448 = vadd.f32 0.0, %v1447
        %v1449 = vpop.f32.mrb[0].mxu0
        %v1450 = vadd.f32 0.0, %v1449
        %1451 = vmatprep.mubr.f32.mxu0 0.0
        %1452 = vmatmul.mubr.f32.gmra.mrb[0].mxu0 %v1376
        %v1453 = vpop.f32.mrb[0].mxu0
        %v1454 = vadd.f32 0.0, %v1453
        %v1455 = vpop.f32.mrb[0].mxu0
        %v1456 = vadd.f32 0.0, %v1455
        %1457 = vmatprep.mubr.f32.mxu0 0.0
        %1458 = vmatmul.mubr.f32.gmra.mrb[0].mxu0 %v1379
        %v1459 = vpop.f32.mrb[0].mxu0
        %v1460 = vadd.f32 0.0, %v1459
        %v1461 = vpop.f32.mrb[0].mxu0
        %v1462 = vadd.f32 0.0, %v1461
        %1463 = vdwg.mxu0
        %vm1470 = vcmask 1041408
        %v1471 = vrot.slane %v1448, 6
        %v1472 = vrot.slane %v1450, 6
        %v1473 = vrot.slane %v1454, 6
        %v1474 = vsel %vm1470, %v1471, %v1473
        %v1475 = vrot.slane %v1456, 6
        %v1476 = vsel %vm1470, %v1472, %v1475
        %v1477 = vrot.slane %v1460, 6
        %v1478 = vsel %vm1470, %v1473, %v1477
        %v1479 = vrot.slane %v1462, 6
        %v1480 = vsel %vm1470, %v1475, %v1479
        %1487 = vst [vmem:[#allocation4] sm:$0xfc] %v1471
        %vm1488 = vcmask 654338
        %1489 = vst.msk [vmem:[#allocation4 + $0x8] sm:$0xfc] %vm1488, %v1472
        %1490 = vst [vmem:[#allocation4 + $0x10] sm:$0xff] %v1474
        %1491 = vst.msk [vmem:[#allocation4 + $0x18] sm:$0xff] %vm477, %v1476
        %1492 = vst [vmem:[#allocation4 + $0x20] sm:$0xff] %v1478
        %1493 = vst.msk [vmem:[#allocation4 + $0x28] sm:$0xff] %vm477, %v1480
        %v1494 = vld [vmem:[#allocation4] sm:$0xff]
        %v1495 = vld [vmem:[#allocation4 + $0x8] sm:$0xff]
        %v1496 = vld [vmem:[#allocation4 + $0x10] sm:$0xff]
        %v1497 = vld [vmem:[#allocation4 + $0x18] sm:$0xff]
        %v1498 = vld [vmem:[#allocation4 + $0x20] sm:$0xff]
        %v1499 = vld [vmem:[#allocation4 + $0x28] sm:$0xff]
        %v1500 = vld [vmem:[#allocation7] sm:$0xff]
        %v1501 = vld [vmem:[#allocation7 + $0x8] sm:$0xff]
        %v1502 = vld [vmem:[#allocation7 + $0x10] sm:$0xff]
        %v1503 = vld [vmem:[#allocation7 + $0x18] sm:$0xff]
        %v1504 = vld [vmem:[#allocation7 + $0x20] sm:$0xff]
        %v1505 = vld [vmem:[#allocation7 + $0x28] sm:$0xff]
        %v1506 = vld [vmem:[#allocation7 + $0x30] sm:$0xff]
        %v1507 = vld [vmem:[#allocation7 + $0x38] sm:$0xff]
        %v1508 = vld [vmem:[#allocation7 + $0x40] sm:$0xff]
        %v1509 = vld [vmem:[#allocation7 + $0x48] sm:$0xff]
        %v1510 = vld [vmem:[#allocation7 + $0x50] sm:$0xff]
        %v1511 = vld [vmem:[#allocation7 + $0x58] sm:$0xff]
        %v1512 = vld [vmem:[#allocation7 + $0x60] sm:$0xff]
        %v1513 = vld [vmem:[#allocation7 + $0x68] sm:$0xff]
        %v1514 = vld [vmem:[#allocation7 + $0x70] sm:$0xff]
        %v1515 = vld [vmem:[#allocation7 + $0x78] sm:$0xff]
        %v1516 = vld [vmem:[#allocation7 + $0x80] sm:$0xff]
        %v1517 = vld [vmem:[#allocation7 + $0x88] sm:$0xff]
        %v1518 = vld [vmem:[#allocation7 + $0x90] sm:$0xff]
        %v1519 = vld [vmem:[#allocation7 + $0x98] sm:$0xff]
        %v1520 = vld [vmem:[#allocation7 + $0xa0] sm:$0xff]
        %v1521 = vld [vmem:[#allocation7 + $0xa8] sm:$0xff]
        %v1522 = vld [vmem:[#allocation7 + $0xb0] sm:$0xff]
        %v1523 = vld [vmem:[#allocation7 + $0xb8] sm:$0xff]
        %v1524 = vld [vmem:[#allocation7 + $0xc0] sm:$0xff]
        %v1525 = vld [vmem:[#allocation7 + $0xc8] sm:$0xff]
        %v1526 = vld [vmem:[#allocation7 + $0xd0] sm:$0xff]
        %v1527 = vld [vmem:[#allocation7 + $0xd8] sm:$0xff]
        %v1528 = vld [vmem:[#allocation7 + $0xe0] sm:$0xff]
        %v1529 = vld [vmem:[#allocation7 + $0xe8] sm:$0xff]
        %v1530 = vld [vmem:[#allocation7 + $0xf0] sm:$0xff]
        %v1531 = vld [vmem:[#allocation7 + $0xf8] sm:$0xff]
        %v1532 = vld [vmem:[#allocation7 + $0x100] sm:$0xff]
        %v1533 = vld [vmem:[#allocation7 + $0x108] sm:$0xff]
        %v1534 = vld [vmem:[#allocation7 + $0x110] sm:$0xff]
        %v1535 = vld [vmem:[#allocation7 + $0x118] sm:$0xff]
        %v1536 = vld [vmem:[#allocation7 + $0x120] sm:$0xff]
        %v1537 = vld [vmem:[#allocation7 + $0x128] sm:$0xff]
        %v1538 = vld [vmem:[#allocation7 + $0x130] sm:$0xff]
        %v1539 = vld [vmem:[#allocation7 + $0x138] sm:$0xff]
        %v1540 = vld [vmem:[#allocation7 + $0x140] sm:$0xff]
        %v1541 = vld [vmem:[#allocation7 + $0x148] sm:$0xff]
        %v1542 = vld [vmem:[#allocation7 + $0x150] sm:$0xff]
        %v1543 = vld [vmem:[#allocation7 + $0x158] sm:$0xff]
        %v1544 = vld [vmem:[#allocation7 + $0x160] sm:$0xff]
        %v1545 = vld [vmem:[#allocation7 + $0x168] sm:$0xff]
        %v1546 = vld [vmem:[#allocation7 + $0x170] sm:$0xff]
        %v1547 = vld [vmem:[#allocation7 + $0x178] sm:$0xff]
        %v1548 = vld [vmem:[#allocation7 + $0x180] sm:$0xff]
        %v1549 = vld [vmem:[#allocation7 + $0x188] sm:$0xff]
        %v1550 = vld [vmem:[#allocation7 + $0x190] sm:$0xff]
        %v1551 = vld [vmem:[#allocation7 + $0x198] sm:$0xff]
        %v1552 = vld [vmem:[#allocation4] sm:$0xfe]
        %v1553 = vld [vmem:[#allocation4 + $0x8] sm:$0xfe]
        %v1554 = vld [vmem:[#allocation4 + $0x30] sm:$0x1]
        %v1555 = vld [vmem:[#allocation4 + $0x38] sm:$0x1]
        %s1556 = scalar_lea.vmem [#allocation7], 416
        %v1557 = vld [vmem:[%s1556] sm:$0xff]
        %v1558 = vld [vmem:[%s1556 + $0x8] sm:$0xff]
        %v1559 = vld [vmem:[%s1556 + $0x10] sm:$0xff]
        %v1560 = vld [vmem:[%s1556 + $0x18] sm:$0xff]
        %v1561 = vld [vmem:[%s1556 + $0x20] sm:$0xff]
        %v1562 = vld [vmem:[%s1556 + $0x28] sm:$0xff]
        %v1563 = vld [vmem:[%s1556 + $0x30] sm:$0xff]
        %v1564 = vld [vmem:[%s1556 + $0x38] sm:$0xff]
        %v1565 = vld [vmem:[%s1556 + $0x40] sm:$0xff]
        %v1566 = vld [vmem:[%s1556 + $0x48] sm:$0xff]
        %v1567 = vld [vmem:[%s1556 + $0x50] sm:$0xff]
        %v1568 = vld [vmem:[%s1556 + $0x58] sm:$0xff]
        %v1569 = vld [vmem:[%s1556 + $0x60] sm:$0xff]
        %v1570 = vld [vmem:[%s1556 + $0x68] sm:$0xff]
        %v1571 = vld [vmem:[%s1556 + $0x70] sm:$0xff]
        %v1572 = vld [vmem:[%s1556 + $0x78] sm:$0xff]
        %v1573 = vld [vmem:[%s1556 + $0x80] sm:$0xff]
        %v1574 = vld [vmem:[%s1556 + $0x88] sm:$0xff]
        %v1575 = vld [vmem:[%s1556 + $0x90] sm:$0xff]
        %v1576 = vld [vmem:[%s1556 + $0x98] sm:$0xff]
        %v1577 = vld [vmem:[%s1556 + $0xa0] sm:$0xff]
        %v1578 = vld [vmem:[%s1556 + $0xa8] sm:$0xff]
        %v1579 = vld [vmem:[%s1556 + $0xb0] sm:$0xff]
        %v1580 = vld [vmem:[%s1556 + $0xb8] sm:$0xff]
        %v1581 = vld [vmem:[%s1556 + $0xc0] sm:$0xff]
        %v1582 = vld [vmem:[%s1556 + $0xc8] sm:$0xff]
        %v1583 = vld [vmem:[%s1556 + $0xd0] sm:$0xff]
        %v1584 = vld [vmem:[%s1556 + $0xd8] sm:$0xff]
        %v1585 = vld [vmem:[%s1556 + $0xe0] sm:$0xff]
        %v1586 = vld [vmem:[%s1556 + $0xe8] sm:$0xff]
        %v1587 = vld [vmem:[%s1556 + $0xf0] sm:$0xff]
        %v1588 = vld [vmem:[%s1556 + $0xf8] sm:$0xff]
        %v1589 = vld [vmem:[%s1556 + $0x100] sm:$0xff]
        %v1590 = vld [vmem:[%s1556 + $0x108] sm:$0xff]
        %v1591 = vld [vmem:[%s1556 + $0x110] sm:$0xff]
        %v1592 = vld [vmem:[%s1556 + $0x118] sm:$0xff]
        %v1593 = vld [vmem:[%s1556 + $0x120] sm:$0xff]
        %v1594 = vld [vmem:[%s1556 + $0x128] sm:$0xff]
        %v1595 = vld [vmem:[%s1556 + $0x130] sm:$0xff]
        %v1596 = vld [vmem:[%s1556 + $0x138] sm:$0xff]
        %v1597 = vld [vmem:[%s1556 + $0x140] sm:$0xff]
        %v1598 = vld [vmem:[%s1556 + $0x148] sm:$0xff]
        %v1599 = vld [vmem:[%s1556 + $0x150] sm:$0xff]
        %v1600 = vld [vmem:[%s1556 + $0x158] sm:$0xff]
        %v1601 = vld [vmem:[%s1556 + $0x160] sm:$0xff]
        %v1602 = vld [vmem:[%s1556 + $0x168] sm:$0xff]
        %v1603 = vld [vmem:[%s1556 + $0x170] sm:$0xff]
        %v1604 = vld [vmem:[%s1556 + $0x178] sm:$0xff]
        %v1605 = vld [vmem:[%s1556 + $0x180] sm:$0xff]
        %v1606 = vld [vmem:[%s1556 + $0x188] sm:$0xff]
        %v1607 = vld [vmem:[%s1556 + $0x190] sm:$0xff]
        %v1608 = vld [vmem:[%s1556 + $0x198] sm:$0xff]
        %vm1617 = vcmask 1046528
        %v1618 = vrot.slane %v1552, 1
        %v1619 = vrot.slane %v1496, 1
        %v1620 = vsel %vm1617, %v1618, %v1619
        %v1621 = vrot.slane %v1553, 1
        %v1622 = vrot.slane %v1497, 1
        %v1623 = vsel %vm1617, %v1621, %v1622
        %v1624 = vrot.slane %v1498, 1
        %v1625 = vsel %vm1617, %v1619, %v1624
        %v1626 = vrot.slane %v1499, 1
        %v1627 = vsel %vm1617, %v1622, %v1626
        %v1628 = vrot.slane %v1554, 1
        %v1629 = vsel %vm1617, %v1624, %v1628
        %v1630 = vrot.slane %v1555, 1
        %v1631 = vsel %vm1617, %v1626, %v1630
        %v1635 = vsel %vm477, %v1623, 0
        %v1637 = vsel %vm477, %v1627, 0
        %v1639 = vsel %vm477, %v1631, 0
        %1641 = vmatprep.subr.mxu0 %v1558
        %1642 = vmatpush1.msra.mxu0 %v1557
        %1643 = vmatprep.subr.mxu0 %v1560
        %1644 = vmatpush1.msra.mxu0 %v1559
        %1645 = vmatprep.subr.mxu0 %v1562
        %1646 = vmatpush1.msra.mxu0 %v1561
        %1647 = vmatprep.subr.mxu0 %v1564
        %1648 = vmatpush1.msra.mxu0 %v1563
        %1649 = vmatprep.subr.mxu0 %v1566
        %1650 = vmatpush1.msra.mxu0 %v1565
        %1651 = vmatprep.subr.mxu0 %v1568
        %1652 = vmatpush1.msra.mxu0 %v1567
        %1653 = vmatprep.subr.mxu0 %v1570
        %1654 = vmatpush1.msra.mxu0 %v1569
        %1655 = vmatprep.subr.mxu0 %v1572
        %1656 = vmatpush1.msra.mxu0 %v1571
        %1657 = vmatprep.subr.mxu0 %v1574
        %1658 = vmatpush1.msra.mxu0 %v1573
        %1659 = vmatprep.subr.mxu0 %v1576
        %1660 = vmatpush1.msra.mxu0 %v1575
        %1661 = vmatprep.subr.mxu0 %v1578
        %1662 = vmatpush1.msra.mxu0 %v1577
        %1663 = vmatprep.subr.mxu0 %v1580
        %1664 = vmatpush1.msra.mxu0 %v1579
        %1665 = vmatprep.subr.mxu0 %v1582
        %1666 = vmatpush1.msra.mxu0 %v1581
        %1667 = vmatprep.subr.mxu0 %v1584
        %1668 = vmatpush1.msra.mxu0 %v1583
        %1669 = vmatprep.subr.mxu0 %v1586
        %1670 = vmatpush1.msra.mxu0 %v1585
        %1671 = vmatprep.subr.mxu0 %v1588
        %1672 = vmatpush1.msra.mxu0 %v1587
        %1673 = vmatprep.subr.mxu0 %v1590
        %1674 = vmatpush1.msra.mxu0 %v1589
        %1675 = vmatprep.subr.mxu0 %v1592
        %1676 = vmatpush1.msra.mxu0 %v1591
        %1677 = vmatprep.subr.mxu0 %v1594
        %1678 = vmatpush1.msra.mxu0 %v1593
        %1679 = vmatprep.subr.mxu0 %v1596
        %1680 = vmatpush1.msra.mxu0 %v1595
        %1681 = vmatprep.subr.mxu0 %v1598
        %1682 = vmatpush1.msra.mxu0 %v1597
        %1683 = vmatprep.subr.mxu0 %v1600
        %1684 = vmatpush1.msra.mxu0 %v1599
        %1685 = vmatprep.subr.mxu0 %v1602
        %1686 = vmatpush1.msra.mxu0 %v1601
        %1687 = vmatprep.subr.mxu0 %v1604
        %1688 = vmatpush1.msra.mxu0 %v1603
        %1689 = vmatprep.subr.mxu0 %v1606
        %1690 = vmatpush1.msra.mxu0 %v1605
        %1691 = vmatprep.subr.mxu0 %v1608
        %1692 = vmatpush1.msra.mxu0 %v1607
        %1693 = vmatprep.subr.mxu0 0.0
        %1694 = vmatpush1.msra.mxu0 0.0
        %1695 = vmatprep.subr.mxu0 0.0
        %1696 = vmatpush1.msra.mxu0 0.0
        %1697 = vmatprep.subr.mxu0 0.0
        %1698 = vmatpush1.msra.mxu0 0.0
        %1699 = vmatprep.subr.mxu0 0.0
        %1700 = vmatpush1.msra.mxu0 0.0
        %1701 = vmatprep.subr.mxu0 0.0
        %1702 = vmatpush1.msra.mxu0 0.0
        %1703 = vmatprep.subr.mxu0 0.0
        %1704 = vmatpush1.msra.mxu0 0.0
        %1705 = vmatprep.mubr.f32.mxu0 %v1635
        %1706 = vmatmul.mubr.f32.gmra.mrb[0].mxu0 %v1620
        %v1707 = vpop.f32.mrb[0].mxu0
        %v1708 = vadd.f32 0.0, %v1707
        %v1709 = vpop.f32.mrb[0].mxu0
        %v1710 = vadd.f32 0.0, %v1709
        %1711 = vmatprep.mubr.f32.mxu0 %v1637
        %1712 = vmatmul.mubr.f32.gmra.mrb[0].mxu0 %v1625
        %v1713 = vpop.f32.mrb[0].mxu0
        %v1714 = vadd.f32 0.0, %v1713
        %v1715 = vpop.f32.mrb[0].mxu0
        %v1716 = vadd.f32 0.0, %v1715
        %1717 = vmatprep.mubr.f32.mxu0 %v1639
        %1718 = vmatmul.mubr.f32.gmra.mrb[0].mxu0 %v1629
        %v1719 = vpop.f32.mrb[0].mxu0
        %v1720 = vadd.f32 0.0, %v1719
        %v1721 = vpop.f32.mrb[0].mxu0
        %v1722 = vadd.f32 0.0, %v1721
        %1723 = vdwg.mxu0
        %v1725 = vsel %vm477, %v1495, 0
        %v1727 = vsel %vm477, %v1497, 0
        %v1729 = vsel %vm477, %v1499, 0
        %1731 = vmatprep.subr.mxu0 %v1501
        %1732 = vmatpush1.msra.mxu0 %v1500
        %1733 = vmatprep.subr.mxu0 %v1503
        %1734 = vmatpush1.msra.mxu0 %v1502
        %1735 = vmatprep.subr.mxu0 %v1505
        %1736 = vmatpush1.msra.mxu0 %v1504
        %1737 = vmatprep.subr.mxu0 %v1507
        %1738 = vmatpush1.msra.mxu0 %v1506
        %1739 = vmatprep.subr.mxu0 %v1509
        %1740 = vmatpush1.msra.mxu0 %v1508
        %1741 = vmatprep.subr.mxu0 %v1511
        %1742 = vmatpush1.msra.mxu0 %v1510
        %1743 = vmatprep.subr.mxu0 %v1513
        %1744 = vmatpush1.msra.mxu0 %v1512
        %1745 = vmatprep.subr.mxu0 %v1515
        %1746 = vmatpush1.msra.mxu0 %v1514
        %1747 = vmatprep.subr.mxu0 %v1517
        %1748 = vmatpush1.msra.mxu0 %v1516
        %1749 = vmatprep.subr.mxu0 %v1519
        %1750 = vmatpush1.msra.mxu0 %v1518
        %1751 = vmatprep.subr.mxu0 %v1521
        %1752 = vmatpush1.msra.mxu0 %v1520
        %1753 = vmatprep.subr.mxu0 %v1523
        %1754 = vmatpush1.msra.mxu0 %v1522
        %1755 = vmatprep.subr.mxu0 %v1525
        %1756 = vmatpush1.msra.mxu0 %v1524
        %1757 = vmatprep.subr.mxu0 %v1527
        %1758 = vmatpush1.msra.mxu0 %v1526
        %1759 = vmatprep.subr.mxu0 %v1529
        %1760 = vmatpush1.msra.mxu0 %v1528
        %1761 = vmatprep.subr.mxu0 %v1531
        %1762 = vmatpush1.msra.mxu0 %v1530
        %1763 = vmatprep.subr.mxu0 %v1533
        %1764 = vmatpush1.msra.mxu0 %v1532
        %1765 = vmatprep.subr.mxu0 %v1535
        %1766 = vmatpush1.msra.mxu0 %v1534
        %1767 = vmatprep.subr.mxu0 %v1537
        %1768 = vmatpush1.msra.mxu0 %v1536
        %1769 = vmatprep.subr.mxu0 %v1539
        %1770 = vmatpush1.msra.mxu0 %v1538
        %1771 = vmatprep.subr.mxu0 %v1541
        %1772 = vmatpush1.msra.mxu0 %v1540
        %1773 = vmatprep.subr.mxu0 %v1543
        %1774 = vmatpush1.msra.mxu0 %v1542
        %1775 = vmatprep.subr.mxu0 %v1545
        %1776 = vmatpush1.msra.mxu0 %v1544
        %1777 = vmatprep.subr.mxu0 %v1547
        %1778 = vmatpush1.msra.mxu0 %v1546
        %1779 = vmatprep.subr.mxu0 %v1549
        %1780 = vmatpush1.msra.mxu0 %v1548
        %1781 = vmatprep.subr.mxu0 %v1551
        %1782 = vmatpush1.msra.mxu0 %v1550
        %1783 = vmatprep.subr.mxu0 0.0
        %1784 = vmatpush1.msra.mxu0 0.0
        %1785 = vmatprep.subr.mxu0 0.0
        %1786 = vmatpush1.msra.mxu0 0.0
        %1787 = vmatprep.subr.mxu0 0.0
        %1788 = vmatpush1.msra.mxu0 0.0
        %1789 = vmatprep.subr.mxu0 0.0
        %1790 = vmatpush1.msra.mxu0 0.0
        %1791 = vmatprep.subr.mxu0 0.0
        %1792 = vmatpush1.msra.mxu0 0.0
        %1793 = vmatprep.subr.mxu0 0.0
        %1794 = vmatpush1.msra.mxu0 0.0
        %1795 = vmatprep.mubr.f32.mxu0 %v1725
        %1796 = vmatmul.mubr.f32.gmra.mrb[0].mxu0 %v1494
        %v1797 = vpop.f32.mrb[0].mxu0
        %v1798 = vadd.f32 %v1708, %v1797
        %v1799 = vpop.f32.mrb[0].mxu0
        %v1800 = vadd.f32 %v1710, %v1799
        %1801 = vmatprep.mubr.f32.mxu0 %v1727
        %1802 = vmatmul.mubr.f32.gmra.mrb[0].mxu0 %v1496
        %v1803 = vpop.f32.mrb[0].mxu0
        %v1804 = vadd.f32 %v1714, %v1803
        %v1805 = vpop.f32.mrb[0].mxu0
        %v1806 = vadd.f32 %v1716, %v1805
        %1807 = vmatprep.mubr.f32.mxu0 %v1729
        %1808 = vmatmul.mubr.f32.gmra.mrb[0].mxu0 %v1498
        %v1809 = vpop.f32.mrb[0].mxu0
        %v1810 = vadd.f32 %v1720, %v1809
        %v1811 = vpop.f32.mrb[0].mxu0
        %v1812 = vadd.f32 %v1722, %v1811
        %1813 = vdwg.mxu0
        %v1814 = vld [vmem:[#allocation4] sm:$0xfc]
        %v1815 = vld [vmem:[#allocation4 + $0x8] sm:$0xfc]
        %v1816 = vld [vmem:[#allocation4 + $0x30] sm:$0x3]
        %v1817 = vld [vmem:[#allocation4 + $0x38] sm:$0x3]
        %s1818 = scalar_lea.vmem [#allocation7], 832
        %v1819 = vld [vmem:[%s1818] sm:$0xff]
        %v1820 = vld [vmem:[%s1818 + $0x8] sm:$0xff]
        %v1821 = vld [vmem:[%s1818 + $0x10] sm:$0xff]
        %v1822 = vld [vmem:[%s1818 + $0x18] sm:$0xff]
        %v1823 = vld [vmem:[%s1818 + $0x20] sm:$0xff]
        %v1824 = vld [vmem:[%s1818 + $0x28] sm:$0xff]
        %v1825 = vld [vmem:[%s1818 + $0x30] sm:$0xff]
        %v1826 = vld [vmem:[%s1818 + $0x38] sm:$0xff]
        %v1827 = vld [vmem:[%s1818 + $0x40] sm:$0xff]
        %v1828 = vld [vmem:[%s1818 + $0x48] sm:$0xff]
        %v1829 = vld [vmem:[%s1818 + $0x50] sm:$0xff]
        %v1830 = vld [vmem:[%s1818 + $0x58] sm:$0xff]
        %v1831 = vld [vmem:[%s1818 + $0x60] sm:$0xff]
        %v1832 = vld [vmem:[%s1818 + $0x68] sm:$0xff]
        %v1833 = vld [vmem:[%s1818 + $0x70] sm:$0xff]
        %v1834 = vld [vmem:[%s1818 + $0x78] sm:$0xff]
        %v1835 = vld [vmem:[%s1818 + $0x80] sm:$0xff]
        %v1836 = vld [vmem:[%s1818 + $0x88] sm:$0xff]
        %v1837 = vld [vmem:[%s1818 + $0x90] sm:$0xff]
        %v1838 = vld [vmem:[%s1818 + $0x98] sm:$0xff]
        %v1839 = vld [vmem:[%s1818 + $0xa0] sm:$0xff]
        %v1840 = vld [vmem:[%s1818 + $0xa8] sm:$0xff]
        %v1841 = vld [vmem:[%s1818 + $0xb0] sm:$0xff]
        %v1842 = vld [vmem:[%s1818 + $0xb8] sm:$0xff]
        %v1843 = vld [vmem:[%s1818 + $0xc0] sm:$0xff]
        %v1844 = vld [vmem:[%s1818 + $0xc8] sm:$0xff]
        %v1845 = vld [vmem:[%s1818 + $0xd0] sm:$0xff]
        %v1846 = vld [vmem:[%s1818 + $0xd8] sm:$0xff]
        %v1847 = vld [vmem:[%s1818 + $0xe0] sm:$0xff]
        %v1848 = vld [vmem:[%s1818 + $0xe8] sm:$0xff]
        %v1849 = vld [vmem:[%s1818 + $0xf0] sm:$0xff]
        %v1850 = vld [vmem:[%s1818 + $0xf8] sm:$0xff]
        %v1851 = vld [vmem:[%s1818 + $0x100] sm:$0xff]
        %v1852 = vld [vmem:[%s1818 + $0x108] sm:$0xff]
        %v1853 = vld [vmem:[%s1818 + $0x110] sm:$0xff]
        %v1854 = vld [vmem:[%s1818 + $0x118] sm:$0xff]
        %v1855 = vld [vmem:[%s1818 + $0x120] sm:$0xff]
        %v1856 = vld [vmem:[%s1818 + $0x128] sm:$0xff]
        %v1857 = vld [vmem:[%s1818 + $0x130] sm:$0xff]
        %v1858 = vld [vmem:[%s1818 + $0x138] sm:$0xff]
        %v1859 = vld [vmem:[%s1818 + $0x140] sm:$0xff]
        %v1860 = vld [vmem:[%s1818 + $0x148] sm:$0xff]
        %v1861 = vld [vmem:[%s1818 + $0x150] sm:$0xff]
        %v1862 = vld [vmem:[%s1818 + $0x158] sm:$0xff]
        %v1863 = vld [vmem:[%s1818 + $0x160] sm:$0xff]
        %v1864 = vld [vmem:[%s1818 + $0x168] sm:$0xff]
        %v1865 = vld [vmem:[%s1818 + $0x170] sm:$0xff]
        %v1866 = vld [vmem:[%s1818 + $0x178] sm:$0xff]
        %v1867 = vld [vmem:[%s1818 + $0x180] sm:$0xff]
        %v1868 = vld [vmem:[%s1818 + $0x188] sm:$0xff]
        %v1869 = vld [vmem:[%s1818 + $0x190] sm:$0xff]
        %v1870 = vld [vmem:[%s1818 + $0x198] sm:$0xff]
        %vm1875 = vcmask 1045504
        %v1876 = vrot.slane %v1814, 2
        %v1877 = vrot.slane %v1496, 2
        %v1878 = vsel %vm1875, %v1876, %v1877
        %v1879 = vrot.slane %v1815, 2
        %v1880 = vrot.slane %v1497, 2
        %v1881 = vsel %vm1875, %v1879, %v1880
        %v1882 = vrot.slane %v1498, 2
        %v1883 = vsel %vm1875, %v1877, %v1882
        %v1884 = vrot.slane %v1499, 2
        %v1885 = vsel %vm1875, %v1880, %v1884
        %v1886 = vrot.slane %v1816, 2
        %v1887 = vsel %vm1875, %v1882, %v1886
        %v1888 = vrot.slane %v1817, 2
        %v1889 = vsel %vm1875, %v1884, %v1888
        %v1893 = vsel %vm477, %v1881, 0
        %v1895 = vsel %vm477, %v1885, 0
        %v1897 = vsel %vm477, %v1889, 0
        %1899 = vmatprep.subr.mxu0 %v1820
        %1900 = vmatpush1.msra.mxu0 %v1819
        %1901 = vmatprep.subr.mxu0 %v1822
        %1902 = vmatpush1.msra.mxu0 %v1821
        %1903 = vmatprep.subr.mxu0 %v1824
        %1904 = vmatpush1.msra.mxu0 %v1823
        %1905 = vmatprep.subr.mxu0 %v1826
        %1906 = vmatpush1.msra.mxu0 %v1825
        %1907 = vmatprep.subr.mxu0 %v1828
        %1908 = vmatpush1.msra.mxu0 %v1827
        %1909 = vmatprep.subr.mxu0 %v1830
        %1910 = vmatpush1.msra.mxu0 %v1829
        %1911 = vmatprep.subr.mxu0 %v1832
        %1912 = vmatpush1.msra.mxu0 %v1831
        %1913 = vmatprep.subr.mxu0 %v1834
        %1914 = vmatpush1.msra.mxu0 %v1833
        %1915 = vmatprep.subr.mxu0 %v1836
        %1916 = vmatpush1.msra.mxu0 %v1835
        %1917 = vmatprep.subr.mxu0 %v1838
        %1918 = vmatpush1.msra.mxu0 %v1837
        %1919 = vmatprep.subr.mxu0 %v1840
        %1920 = vmatpush1.msra.mxu0 %v1839
        %1921 = vmatprep.subr.mxu0 %v1842
        %1922 = vmatpush1.msra.mxu0 %v1841
        %1923 = vmatprep.subr.mxu0 %v1844
        %1924 = vmatpush1.msra.mxu0 %v1843
        %1925 = vmatprep.subr.mxu0 %v1846
        %1926 = vmatpush1.msra.mxu0 %v1845
        %1927 = vmatprep.subr.mxu0 %v1848
        %1928 = vmatpush1.msra.mxu0 %v1847
        %1929 = vmatprep.subr.mxu0 %v1850
        %1930 = vmatpush1.msra.mxu0 %v1849
        %1931 = vmatprep.subr.mxu0 %v1852
        %1932 = vmatpush1.msra.mxu0 %v1851
        %1933 = vmatprep.subr.mxu0 %v1854
        %1934 = vmatpush1.msra.mxu0 %v1853
        %1935 = vmatprep.subr.mxu0 %v1856
        %1936 = vmatpush1.msra.mxu0 %v1855
        %1937 = vmatprep.subr.mxu0 %v1858
        %1938 = vmatpush1.msra.mxu0 %v1857
        %1939 = vmatprep.subr.mxu0 %v1860
        %1940 = vmatpush1.msra.mxu0 %v1859
        %1941 = vmatprep.subr.mxu0 %v1862
        %1942 = vmatpush1.msra.mxu0 %v1861
        %1943 = vmatprep.subr.mxu0 %v1864
        %1944 = vmatpush1.msra.mxu0 %v1863
        %1945 = vmatprep.subr.mxu0 %v1866
        %1946 = vmatpush1.msra.mxu0 %v1865
        %1947 = vmatprep.subr.mxu0 %v1868
        %1948 = vmatpush1.msra.mxu0 %v1867
        %1949 = vmatprep.subr.mxu0 %v1870
        %1950 = vmatpush1.msra.mxu0 %v1869
        %1951 = vmatprep.subr.mxu0 0.0
        %1952 = vmatpush1.msra.mxu0 0.0
        %1953 = vmatprep.subr.mxu0 0.0
        %1954 = vmatpush1.msra.mxu0 0.0
        %1955 = vmatprep.subr.mxu0 0.0
        %1956 = vmatpush1.msra.mxu0 0.0
        %1957 = vmatprep.subr.mxu0 0.0
        %1958 = vmatpush1.msra.mxu0 0.0
        %1959 = vmatprep.subr.mxu0 0.0
        %1960 = vmatpush1.msra.mxu0 0.0
        %1961 = vmatprep.subr.mxu0 0.0
        %1962 = vmatpush1.msra.mxu0 0.0
        %1963 = vmatprep.mubr.f32.mxu0 %v1893
        %1964 = vmatmul.mubr.f32.gmra.mrb[0].mxu0 %v1878
        %v1965 = vpop.f32.mrb[0].mxu0
        %v1966 = vadd.f32 0.0, %v1965
        %v1967 = vpop.f32.mrb[0].mxu0
        %v1968 = vadd.f32 0.0, %v1967
        %1969 = vmatprep.mubr.f32.mxu0 %v1895
        %1970 = vmatmul.mubr.f32.gmra.mrb[0].mxu0 %v1883
        %v1971 = vpop.f32.mrb[0].mxu0
        %v1972 = vadd.f32 0.0, %v1971
        %v1973 = vpop.f32.mrb[0].mxu0
        %v1974 = vadd.f32 0.0, %v1973
        %1975 = vmatprep.mubr.f32.mxu0 %v1897
        %1976 = vmatmul.mubr.f32.gmra.mrb[0].mxu0 %v1887
        %v1977 = vpop.f32.mrb[0].mxu0
        %v1978 = vadd.f32 0.0, %v1977
        %v1979 = vpop.f32.mrb[0].mxu0
        %v1980 = vadd.f32 0.0, %v1979
        %1981 = vdwg.mxu0
        %v1982 = vadd.f32 %v1798, %v1966
        %v1983 = vadd.f32 %v1800, %v1968
        %v1984 = vadd.f32 %v1804, %v1972
        %v1985 = vadd.f32 %v1806, %v1974
        %v1986 = vadd.f32 %v1810, %v1978
        %v1987 = vadd.f32 %v1812, %v1980
        %v1988 = vld [vmem:[%s6] sm:$0x3]
        %v1990 = vlaneseq
        %v1991 = vshrl.u32 %v1990, 7
        %v1992 = vsub.s32 0, %v1991
        %v1993 = vrot.slane %v1988, %v1992
        %v1994 = vlaneseq
        %v1995 = vshrl.u32 %v1994, 7
        %v1996 = vsub.s32 1, %v1995
        %v1997 = vrot.slane %v1988, %v1996
        %v2000 = vadd.f32 %v1982, %v1993
        %v2001 = vadd.f32 %v1983, %v1997
        %v2002 = vadd.f32 %v1984, %v1993
        %v2003 = vadd.f32 %v1985, %v1997
        %v2004 = vadd.f32 %v1986, %v1993
        %v2005 = vadd.f32 %v1987, %v1997
        %v2006 = vtanh.pop %v2000
        %v2007 = vtanh.pop %v2001
        %v2008 = vtanh.pop %v2002
        %v2009 = vtanh.pop %v2003
        %v2010 = vtanh.pop %v2004
        %v2011 = vtanh.pop %v2005
        %v2018 = vrot.slane %v2006, 6
        %v2019 = vrot.slane %v2007, 6
        %v2020 = vrot.slane %v2008, 6
        %v2021 = vsel %vm1470, %v2018, %v2020
        %v2022 = vrot.slane %v2009, 6
        %v2023 = vsel %vm1470, %v2019, %v2022
        %v2024 = vrot.slane %v2010, 6
        %v2025 = vsel %vm1470, %v2020, %v2024
        %v2026 = vrot.slane %v2011, 6
        %v2027 = vsel %vm1470, %v2022, %v2026
        %2036 = vst [vmem:[#allocation5] sm:$0xfc] %v2018
        %vm2037 = vcmask 785410
        %2038 = vst.msk [vmem:[#allocation5 + $0x8] sm:$0xfc] %vm2037, %v2019
        %2039 = vst [vmem:[#allocation5 + $0x10] sm:$0xff] %v2021
        %2040 = vst.msk [vmem:[#allocation5 + $0x18] sm:$0xff] %vm487, %v2023
        %2041 = vst [vmem:[#allocation5 + $0x20] sm:$0xff] %v2025
        %2042 = vst.msk [vmem:[#allocation5 + $0x28] sm:$0xff] %vm487, %v2027
        %2043 = vst [vmem:[#allocation5 + $0x30] sm:$0x3] %v2024
        %vm2044 = vcmask 779264
        %2045 = vst.msk [vmem:[#allocation5 + $0x38] sm:$0x3] %vm2044, %v2026
        %v2046 = vld [vmem:[#allocation5] sm:$0xff]
        %v2047 = vld [vmem:[#allocation5 + $0x8] sm:$0xff]
        %v2048 = vld [vmem:[#allocation5 + $0x10] sm:$0xff]
        %v2049 = vld [vmem:[#allocation5 + $0x18] sm:$0xff]
        %v2050 = vld [vmem:[#allocation5 + $0x20] sm:$0xff]
        %v2051 = vld [vmem:[#allocation5 + $0x28] sm:$0xff]
        %v2052 = vld [vmem:[#allocation5 + $0x30] sm:$0x3]
        %v2053 = vld [vmem:[#allocation5 + $0x38] sm:$0x3]
        %v2054 = vld [vmem:[#allocation9] sm:$0xff]
        %v2055 = vld [vmem:[#allocation9 + $0x8] sm:$0xff]
        %v2056 = vld [vmem:[#allocation9 + $0x10] sm:$0xff]
        %v2057 = vld [vmem:[#allocation9 + $0x18] sm:$0xff]
        %v2058 = vld [vmem:[#allocation9 + $0x20] sm:$0xff]
        %v2059 = vld [vmem:[#allocation9 + $0x28] sm:$0xff]
        %v2060 = vld [vmem:[#allocation9 + $0x30] sm:$0xff]
        %v2061 = vld [vmem:[#allocation9 + $0x38] sm:$0xff]
        %v2062 = vld [vmem:[#allocation9 + $0x40] sm:$0xff]
        %v2063 = vld [vmem:[#allocation9 + $0x48] sm:$0xff]
        %v2064 = vld [vmem:[#allocation9 + $0x50] sm:$0xff]
        %v2065 = vld [vmem:[#allocation9 + $0x58] sm:$0xff]
        %v2066 = vld [vmem:[#allocation9 + $0x60] sm:$0xff]
        %v2067 = vld [vmem:[#allocation9 + $0x68] sm:$0xff]
        %v2068 = vld [vmem:[#allocation9 + $0x70] sm:$0xff]
        %v2069 = vld [vmem:[#allocation9 + $0x78] sm:$0xff]
        %v2070 = vld [vmem:[#allocation9 + $0x80] sm:$0xff]
        %v2071 = vld [vmem:[#allocation9 + $0x88] sm:$0xff]
        %v2072 = vld [vmem:[#allocation9 + $0x90] sm:$0xff]
        %v2073 = vld [vmem:[#allocation9 + $0x98] sm:$0xff]
        %v2074 = vld [vmem:[#allocation9 + $0xa0] sm:$0xff]
        %v2075 = vld [vmem:[#allocation9 + $0xa8] sm:$0xff]
        %v2076 = vld [vmem:[#allocation9 + $0xb0] sm:$0xff]
        %v2077 = vld [vmem:[#allocation9 + $0xb8] sm:$0xff]
        %v2078 = vld [vmem:[#allocation9 + $0xc0] sm:$0xff]
        %v2079 = vld [vmem:[#allocation9 + $0xc8] sm:$0xff]
        %v2080 = vld [vmem:[#allocation9 + $0xd0] sm:$0xff]
        %v2081 = vld [vmem:[#allocation9 + $0xd8] sm:$0xff]
        %v2082 = vld [vmem:[#allocation5] sm:$0xfe]
        %v2083 = vld [vmem:[#allocation5 + $0x8] sm:$0xfe]
        %v2084 = vld [vmem:[#allocation5 + $0x30] sm:$0x7]
        %v2085 = vld [vmem:[#allocation5 + $0x38] sm:$0x7]
        %s2086 = scalar_lea.vmem [#allocation9], 224
        %v2087 = vld [vmem:[%s2086] sm:$0xff]
        %v2088 = vld [vmem:[%s2086 + $0x8] sm:$0xff]
        %v2089 = vld [vmem:[%s2086 + $0x10] sm:$0xff]
        %v2090 = vld [vmem:[%s2086 + $0x18] sm:$0xff]
        %v2091 = vld [vmem:[%s2086 + $0x20] sm:$0xff]
        %v2092 = vld [vmem:[%s2086 + $0x28] sm:$0xff]
        %v2093 = vld [vmem:[%s2086 + $0x30] sm:$0xff]
        %v2094 = vld [vmem:[%s2086 + $0x38] sm:$0xff]
        %v2095 = vld [vmem:[%s2086 + $0x40] sm:$0xff]
        %v2096 = vld [vmem:[%s2086 + $0x48] sm:$0xff]
        %v2097 = vld [vmem:[%s2086 + $0x50] sm:$0xff]
        %v2098 = vld [vmem:[%s2086 + $0x58] sm:$0xff]
        %v2099 = vld [vmem:[%s2086 + $0x60] sm:$0xff]
        %v2100 = vld [vmem:[%s2086 + $0x68] sm:$0xff]
        %v2101 = vld [vmem:[%s2086 + $0x70] sm:$0xff]
        %v2102 = vld [vmem:[%s2086 + $0x78] sm:$0xff]
        %v2103 = vld [vmem:[%s2086 + $0x80] sm:$0xff]
        %v2104 = vld [vmem:[%s2086 + $0x88] sm:$0xff]
        %v2105 = vld [vmem:[%s2086 + $0x90] sm:$0xff]
        %v2106 = vld [vmem:[%s2086 + $0x98] sm:$0xff]
        %v2107 = vld [vmem:[%s2086 + $0xa0] sm:$0xff]
        %v2108 = vld [vmem:[%s2086 + $0xa8] sm:$0xff]
        %v2109 = vld [vmem:[%s2086 + $0xb0] sm:$0xff]
        %v2110 = vld [vmem:[%s2086 + $0xb8] sm:$0xff]
        %v2111 = vld [vmem:[%s2086 + $0xc0] sm:$0xff]
        %v2112 = vld [vmem:[%s2086 + $0xc8] sm:$0xff]
        %v2113 = vld [vmem:[%s2086 + $0xd0] sm:$0xff]
        %v2114 = vld [vmem:[%s2086 + $0xd8] sm:$0xff]
        %v2123 = vrot.slane %v2082, 1
        %v2124 = vrot.slane %v2048, 1
        %v2125 = vsel %vm1617, %v2123, %v2124
        %v2126 = vrot.slane %v2083, 1
        %v2127 = vrot.slane %v2049, 1
        %v2128 = vsel %vm1617, %v2126, %v2127
        %v2129 = vrot.slane %v2050, 1
        %v2130 = vsel %vm1617, %v2124, %v2129
        %v2131 = vrot.slane %v2051, 1
        %v2132 = vsel %vm1617, %v2127, %v2131
        %v2133 = vrot.slane %v2084, 1
        %v2134 = vsel %vm1617, %v2129, %v2133
        %v2135 = vrot.slane %v2085, 1
        %v2136 = vsel %vm1617, %v2131, %v2135
        %v2141 = vsel %vm487, %v2128, 0
        %v2143 = vsel %vm487, %v2132, 0
        %v2145 = vsel %vm487, %v2136, 0
        %v2147 = vsel %vm487, %v2135, 0
        %2149 = vmatprep.subr.mxu0 0.0
        %2150 = vmatpush1.msra.mxu0 %v2087
        %2151 = vmatprep.subr.mxu0 0.0
        %2152 = vmatpush1.msra.mxu0 %v2088
        %2153 = vmatprep.subr.mxu0 0.0
        %2154 = vmatpush1.msra.mxu0 %v2089
        %2155 = vmatprep.subr.mxu0 0.0
        %2156 = vmatpush1.msra.mxu0 %v2090
        %2157 = vmatprep.subr.mxu0 0.0
        %2158 = vmatpush1.msra.mxu0 %v2091
        %2159 = vmatprep.subr.mxu0 0.0
        %2160 = vmatpush1.msra.mxu0 %v2092
        %2161 = vmatprep.subr.mxu0 0.0
        %2162 = vmatpush1.msra.mxu0 %v2093
        %2163 = vmatprep.subr.mxu0 0.0
        %2164 = vmatpush1.msra.mxu0 %v2094
        %2165 = vmatprep.subr.mxu0 0.0
        %2166 = vmatpush1.msra.mxu0 %v2095
        %2167 = vmatprep.subr.mxu0 0.0
        %2168 = vmatpush1.msra.mxu0 %v2096
        %2169 = vmatprep.subr.mxu0 0.0
        %2170 = vmatpush1.msra.mxu0 %v2097
        %2171 = vmatprep.subr.mxu0 0.0
        %2172 = vmatpush1.msra.mxu0 %v2098
        %2173 = vmatprep.subr.mxu0 0.0
        %2174 = vmatpush1.msra.mxu0 %v2099
        %2175 = vmatprep.subr.mxu0 0.0
        %2176 = vmatpush1.msra.mxu0 %v2100
        %2177 = vmatprep.subr.mxu0 0.0
        %2178 = vmatpush1.msra.mxu0 %v2101
        %2179 = vmatprep.subr.mxu0 0.0
        %2180 = vmatpush1.msra.mxu0 %v2102
        %2181 = vmatprep.subr.mxu0 0.0
        %2182 = vmatpush1.msra.mxu0 %v2103
        %2183 = vmatprep.subr.mxu0 0.0
        %2184 = vmatpush1.msra.mxu0 %v2104
        %2185 = vmatprep.subr.mxu0 0.0
        %2186 = vmatpush1.msra.mxu0 %v2105
        %2187 = vmatprep.subr.mxu0 0.0
        %2188 = vmatpush1.msra.mxu0 %v2106
        %2189 = vmatprep.subr.mxu0 0.0
        %2190 = vmatpush1.msra.mxu0 %v2107
        %2191 = vmatprep.subr.mxu0 0.0
        %2192 = vmatpush1.msra.mxu0 %v2108
        %2193 = vmatprep.subr.mxu0 0.0
        %2194 = vmatpush1.msra.mxu0 %v2109
        %2195 = vmatprep.subr.mxu0 0.0
        %2196 = vmatpush1.msra.mxu0 %v2110
        %2197 = vmatprep.subr.mxu0 0.0
        %2198 = vmatpush1.msra.mxu0 %v2111
        %2199 = vmatprep.subr.mxu0 0.0
        %2200 = vmatpush1.msra.mxu0 %v2112
        %2201 = vmatprep.subr.mxu0 0.0
        %2202 = vmatpush1.msra.mxu0 %v2113
        %2203 = vmatprep.subr.mxu0 0.0
        %2204 = vmatpush1.msra.mxu0 %v2114
        %2205 = vmatprep.subr.mxu0 0.0
        %2206 = vmatpush1.msra.mxu0 0.0
        %2207 = vmatprep.subr.mxu0 0.0
        %2208 = vmatpush1.msra.mxu0 0.0
        %2209 = vmatprep.subr.mxu0 0.0
        %2210 = vmatpush1.msra.mxu0 0.0
        %2211 = vmatprep.subr.mxu0 0.0
        %2212 = vmatpush1.msra.mxu0 0.0
        %2213 = vmatprep.mubr.f32.mxu0 %v2141
        %2214 = vmatmul.mubr.f32.gmra.mrb[0].mxu0 %v2125
        %v2215 = vpop.f32.mrb[0].mxu0
        %v2216 = vadd.f32 0.0, %v2215
        %v2217 = vpop.f32.mrb[0].mxu0
        %2218 = vmatprep.mubr.f32.mxu0 %v2143
        %2219 = vmatmul.mubr.f32.gmra.mrb[0].mxu0 %v2130
        %v2220 = vpop.f32.mrb[0].mxu0
        %v2221 = vadd.f32 0.0, %v2220
        %v2222 = vpop.f32.mrb[0].mxu0
        %2223 = vmatprep.mubr.f32.mxu0 %v2145
        %2224 = vmatmul.mubr.f32.gmra.mrb[0].mxu0 %v2134
        %v2225 = vpop.f32.mrb[0].mxu0
        %v2226 = vadd.f32 0.0, %v2225
        %v2227 = vpop.f32.mrb[0].mxu0
        %2228 = vmatprep.mubr.f32.mxu0 %v2147
        %2229 = vmatmul.mubr.f32.gmra.mrb[0].mxu0 %v2133
        %v2230 = vpop.f32.mrb[0].mxu0
        %v2231 = vadd.f32 0.0, %v2230
        %v2232 = vpop.f32.mrb[0].mxu0
        %2233 = vdwg.mxu0
        %v2235 = vsel %vm487, %v2047, 0
        %v2237 = vsel %vm487, %v2049, 0
        %v2239 = vsel %vm487, %v2051, 0
        %v2242 = vsel %vm487, %v2053, 0
        %2244 = vmatprep.subr.mxu0 0.0
        %2245 = vmatpush1.msra.mxu0 %v2054
        %2246 = vmatprep.subr.mxu0 0.0
        %2247 = vmatpush1.msra.mxu0 %v2055
        %2248 = vmatprep.subr.mxu0 0.0
        %2249 = vmatpush1.msra.mxu0 %v2056
        %2250 = vmatprep.subr.mxu0 0.0
        %2251 = vmatpush1.msra.mxu0 %v2057
        %2252 = vmatprep.subr.mxu0 0.0
        %2253 = vmatpush1.msra.mxu0 %v2058
        %2254 = vmatprep.subr.mxu0 0.0
        %2255 = vmatpush1.msra.mxu0 %v2059
        %2256 = vmatprep.subr.mxu0 0.0
        %2257 = vmatpush1.msra.mxu0 %v2060
        %2258 = vmatprep.subr.mxu0 0.0
        %2259 = vmatpush1.msra.mxu0 %v2061
        %2260 = vmatprep.subr.mxu0 0.0
        %2261 = vmatpush1.msra.mxu0 %v2062
        %2262 = vmatprep.subr.mxu0 0.0
        %2263 = vmatpush1.msra.mxu0 %v2063
        %2264 = vmatprep.subr.mxu0 0.0
        %2265 = vmatpush1.msra.mxu0 %v2064
        %2266 = vmatprep.subr.mxu0 0.0
        %2267 = vmatpush1.msra.mxu0 %v2065
        %2268 = vmatprep.subr.mxu0 0.0
        %2269 = vmatpush1.msra.mxu0 %v2066
        %2270 = vmatprep.subr.mxu0 0.0
        %2271 = vmatpush1.msra.mxu0 %v2067
        %2272 = vmatprep.subr.mxu0 0.0
        %2273 = vmatpush1.msra.mxu0 %v2068
        %2274 = vmatprep.subr.mxu0 0.0
        %2275 = vmatpush1.msra.mxu0 %v2069
        %2276 = vmatprep.subr.mxu0 0.0
        %2277 = vmatpush1.msra.mxu0 %v2070
        %2278 = vmatprep.subr.mxu0 0.0
        %2279 = vmatpush1.msra.mxu0 %v2071
        %2280 = vmatprep.subr.mxu0 0.0
        %2281 = vmatpush1.msra.mxu0 %v2072
        %2282 = vmatprep.subr.mxu0 0.0
        %2283 = vmatpush1.msra.mxu0 %v2073
        %2284 = vmatprep.subr.mxu0 0.0
        %2285 = vmatpush1.msra.mxu0 %v2074
        %2286 = vmatprep.subr.mxu0 0.0
        %2287 = vmatpush1.msra.mxu0 %v2075
        %2288 = vmatprep.subr.mxu0 0.0
        %2289 = vmatpush1.msra.mxu0 %v2076
        %2290 = vmatprep.subr.mxu0 0.0
        %2291 = vmatpush1.msra.mxu0 %v2077
        %2292 = vmatprep.subr.mxu0 0.0
        %2293 = vmatpush1.msra.mxu0 %v2078
        %2294 = vmatprep.subr.mxu0 0.0
        %2295 = vmatpush1.msra.mxu0 %v2079
        %2296 = vmatprep.subr.mxu0 0.0
        %2297 = vmatpush1.msra.mxu0 %v2080
        %2298 = vmatprep.subr.mxu0 0.0
        %2299 = vmatpush1.msra.mxu0 %v2081
        %2300 = vmatprep.subr.mxu0 0.0
        %2301 = vmatpush1.msra.mxu0 0.0
        %2302 = vmatprep.subr.mxu0 0.0
        %2303 = vmatpush1.msra.mxu0 0.0
        %2304 = vmatprep.subr.mxu0 0.0
        %2305 = vmatpush1.msra.mxu0 0.0
        %2306 = vmatprep.subr.mxu0 0.0
        %2307 = vmatpush1.msra.mxu0 0.0
        %2308 = vmatprep.mubr.f32.mxu0 %v2235
        %2309 = vmatmul.mubr.f32.gmra.mrb[0].mxu0 %v2046
        %v2310 = vpop.f32.mrb[0].mxu0
        %v2311 = vadd.f32 %v2216, %v2310
        %v2312 = vpop.f32.mrb[0].mxu0
        %2313 = vmatprep.mubr.f32.mxu0 %v2237
        %2314 = vmatmul.mubr.f32.gmra.mrb[0].mxu0 %v2048
        %v2315 = vpop.f32.mrb[0].mxu0
        %v2316 = vadd.f32 %v2221, %v2315
        %v2317 = vpop.f32.mrb[0].mxu0
        %2318 = vmatprep.mubr.f32.mxu0 %v2239
        %2319 = vmatmul.mubr.f32.gmra.mrb[0].mxu0 %v2050
        %v2320 = vpop.f32.mrb[0].mxu0
        %v2321 = vadd.f32 %v2226, %v2320
        %v2322 = vpop.f32.mrb[0].mxu0
        %2323 = vmatprep.mubr.f32.mxu0 %v2242
        %2324 = vmatmul.mubr.f32.gmra.mrb[0].mxu0 %v2052
        %v2325 = vpop.f32.mrb[0].mxu0
        %v2326 = vadd.f32 %v2231, %v2325
        %v2327 = vpop.f32.mrb[0].mxu0
        %2328 = vdwg.mxu0
        %v2329 = vld [vmem:[#allocation5] sm:$0xfc]
        %v2330 = vld [vmem:[#allocation5 + $0x8] sm:$0xfc]
        %v2331 = vld [vmem:[#allocation5 + $0x30] sm:$0xf]
        %v2332 = vld [vmem:[#allocation5 + $0x38] sm:$0xf]
        %s2333 = scalar_lea.vmem [#allocation9], 448
        %v2334 = vld [vmem:[%s2333] sm:$0xff]
        %v2335 = vld [vmem:[%s2333 + $0x8] sm:$0xff]
        %v2336 = vld [vmem:[%s2333 + $0x10] sm:$0xff]
        %v2337 = vld [vmem:[%s2333 + $0x18] sm:$0xff]
        %v2338 = vld [vmem:[%s2333 + $0x20] sm:$0xff]
        %v2339 = vld [vmem:[%s2333 + $0x28] sm:$0xff]
        %v2340 = vld [vmem:[%s2333 + $0x30] sm:$0xff]
        %v2341 = vld [vmem:[%s2333 + $0x38] sm:$0xff]
        %v2342 = vld [vmem:[%s2333 + $0x40] sm:$0xff]
        %v2343 = vld [vmem:[%s2333 + $0x48] sm:$0xff]
        %v2344 = vld [vmem:[%s2333 + $0x50] sm:$0xff]
        %v2345 = vld [vmem:[%s2333 + $0x58] sm:$0xff]
        %v2346 = vld [vmem:[%s2333 + $0x60] sm:$0xff]
        %v2347 = vld [vmem:[%s2333 + $0x68] sm:$0xff]
        %v2348 = vld [vmem:[%s2333 + $0x70] sm:$0xff]
        %v2349 = vld [vmem:[%s2333 + $0x78] sm:$0xff]
        %v2350 = vld [vmem:[%s2333 + $0x80] sm:$0xff]
        %v2351 = vld [vmem:[%s2333 + $0x88] sm:$0xff]
        %v2352 = vld [vmem:[%s2333 + $0x90] sm:$0xff]
        %v2353 = vld [vmem:[%s2333 + $0x98] sm:$0xff]
        %v2354 = vld [vmem:[%s2333 + $0xa0] sm:$0xff]
        %v2355 = vld [vmem:[%s2333 + $0xa8] sm:$0xff]
        %v2356 = vld [vmem:[%s2333 + $0xb0] sm:$0xff]
        %v2357 = vld [vmem:[%s2333 + $0xb8] sm:$0xff]
        %v2358 = vld [vmem:[%s2333 + $0xc0] sm:$0xff]
        %v2359 = vld [vmem:[%s2333 + $0xc8] sm:$0xff]
        %v2360 = vld [vmem:[%s2333 + $0xd0] sm:$0xff]
        %v2361 = vld [vmem:[%s2333 + $0xd8] sm:$0xff]
        %v2366 = vrot.slane %v2329, 2
        %v2367 = vrot.slane %v2048, 2
        %v2368 = vsel %vm1875, %v2366, %v2367
        %v2369 = vrot.slane %v2330, 2
        %v2370 = vrot.slane %v2049, 2
        %v2371 = vsel %vm1875, %v2369, %v2370
        %v2372 = vrot.slane %v2050, 2
        %v2373 = vsel %vm1875, %v2367, %v2372
        %v2374 = vrot.slane %v2051, 2
        %v2375 = vsel %vm1875, %v2370, %v2374
        %v2376 = vrot.slane %v2331, 2
        %v2377 = vsel %vm1875, %v2372, %v2376
        %v2378 = vrot.slane %v2332, 2
        %v2379 = vsel %vm1875, %v2374, %v2378
        %v2384 = vsel %vm487, %v2371, 0
        %v2386 = vsel %vm487, %v2375, 0
        %v2388 = vsel %vm487, %v2379, 0
        %v2390 = vsel %vm487, %v2378, 0
        %2392 = vmatprep.subr.mxu0 0.0
        %2393 = vmatpush1.msra.mxu0 %v2334
        %2394 = vmatprep.subr.mxu0 0.0
        %2395 = vmatpush1.msra.mxu0 %v2335
        %2396 = vmatprep.subr.mxu0 0.0
        %2397 = vmatpush1.msra.mxu0 %v2336
        %2398 = vmatprep.subr.mxu0 0.0
        %2399 = vmatpush1.msra.mxu0 %v2337
        %2400 = vmatprep.subr.mxu0 0.0
        %2401 = vmatpush1.msra.mxu0 %v2338
        %2402 = vmatprep.subr.mxu0 0.0
        %2403 = vmatpush1.msra.mxu0 %v2339
        %2404 = vmatprep.subr.mxu0 0.0
        %2405 = vmatpush1.msra.mxu0 %v2340
        %2406 = vmatprep.subr.mxu0 0.0
        %2407 = vmatpush1.msra.mxu0 %v2341
        %2408 = vmatprep.subr.mxu0 0.0
        %2409 = vmatpush1.msra.mxu0 %v2342
        %2410 = vmatprep.subr.mxu0 0.0
        %2411 = vmatpush1.msra.mxu0 %v2343
        %2412 = vmatprep.subr.mxu0 0.0
        %2413 = vmatpush1.msra.mxu0 %v2344
        %2414 = vmatprep.subr.mxu0 0.0
        %2415 = vmatpush1.msra.mxu0 %v2345
        %2416 = vmatprep.subr.mxu0 0.0
        %2417 = vmatpush1.msra.mxu0 %v2346
        %2418 = vmatprep.subr.mxu0 0.0
        %2419 = vmatpush1.msra.mxu0 %v2347
        %2420 = vmatprep.subr.mxu0 0.0
        %2421 = vmatpush1.msra.mxu0 %v2348
        %2422 = vmatprep.subr.mxu0 0.0
        %2423 = vmatpush1.msra.mxu0 %v2349
        %2424 = vmatprep.subr.mxu0 0.0
        %2425 = vmatpush1.msra.mxu0 %v2350
        %2426 = vmatprep.subr.mxu0 0.0
        %2427 = vmatpush1.msra.mxu0 %v2351
        %2428 = vmatprep.subr.mxu0 0.0
        %2429 = vmatpush1.msra.mxu0 %v2352
        %2430 = vmatprep.subr.mxu0 0.0
        %2431 = vmatpush1.msra.mxu0 %v2353
        %2432 = vmatprep.subr.mxu0 0.0
        %2433 = vmatpush1.msra.mxu0 %v2354
        %2434 = vmatprep.subr.mxu0 0.0
        %2435 = vmatpush1.msra.mxu0 %v2355
        %2436 = vmatprep.subr.mxu0 0.0
        %2437 = vmatpush1.msra.mxu0 %v2356
        %2438 = vmatprep.subr.mxu0 0.0
        %2439 = vmatpush1.msra.mxu0 %v2357
        %2440 = vmatprep.subr.mxu0 0.0
        %2441 = vmatpush1.msra.mxu0 %v2358
        %2442 = vmatprep.subr.mxu0 0.0
        %2443 = vmatpush1.msra.mxu0 %v2359
        %2444 = vmatprep.subr.mxu0 0.0
        %2445 = vmatpush1.msra.mxu0 %v2360
        %2446 = vmatprep.subr.mxu0 0.0
        %2447 = vmatpush1.msra.mxu0 %v2361
        %2448 = vmatprep.subr.mxu0 0.0
        %2449 = vmatpush1.msra.mxu0 0.0
        %2450 = vmatprep.subr.mxu0 0.0
        %2451 = vmatpush1.msra.mxu0 0.0
        %2452 = vmatprep.subr.mxu0 0.0
        %2453 = vmatpush1.msra.mxu0 0.0
        %2454 = vmatprep.subr.mxu0 0.0
        %2455 = vmatpush1.msra.mxu0 0.0
        %2456 = vmatprep.mubr.f32.mxu0 %v2384
        %2457 = vmatmul.mubr.f32.gmra.mrb[0].mxu0 %v2368
        %v2458 = vpop.f32.mrb[0].mxu0
        %v2459 = vadd.f32 0.0, %v2458
        %v2460 = vpop.f32.mrb[0].mxu0
        %2461 = vmatprep.mubr.f32.mxu0 %v2386
        %2462 = vmatmul.mubr.f32.gmra.mrb[0].mxu0 %v2373
        %v2463 = vpop.f32.mrb[0].mxu0
        %v2464 = vadd.f32 0.0, %v2463
        %v2465 = vpop.f32.mrb[0].mxu0
        %2466 = vmatprep.mubr.f32.mxu0 %v2388
        %2467 = vmatmul.mubr.f32.gmra.mrb[0].mxu0 %v2377
        %v2468 = vpop.f32.mrb[0].mxu0
        %v2469 = vadd.f32 0.0, %v2468
        %v2470 = vpop.f32.mrb[0].mxu0
        %2471 = vmatprep.mubr.f32.mxu0 %v2390
        %2472 = vmatmul.mubr.f32.gmra.mrb[0].mxu0 %v2376
        %v2473 = vpop.f32.mrb[0].mxu0
        %v2474 = vadd.f32 0.0, %v2473
        %v2475 = vpop.f32.mrb[0].mxu0
        %2476 = vdwg.mxu0
        %v2477 = vadd.f32 %v2311, %v2459
        %v2478 = vadd.f32 %v2316, %v2464
        %v2479 = vadd.f32 %v2321, %v2469
        %v2480 = vadd.f32 %v2326, %v2474
        %v2481 = vld [vmem:[%s8] sm:$0x1]
        %v2483 = vlaneseq
        %v2484 = vshrl.u32 %v2483, 7
        %v2485 = vsub.s32 0, %v2484
        %v2486 = vrot.slane %v2481, %v2485
        %v2488 = vadd.f32 %v2477, %v2486
        %v2489 = vadd.f32 %v2478, %v2486
        %v2490 = vadd.f32 %v2479, %v2486
        %v2491 = vadd.f32 %v2480, %v2486
        %v2492 = vtanh.pop %v2488
        %v2493 = vtanh.pop %v2489
        %v2494 = vtanh.pop %v2490
        %v2495 = vtanh.pop %v2491
        %2496 = vst.msk [vmem:[#allocation6 + $0x2] sm:$0xff] %vm496, %v2492
        %2497 = vst.msk [vmem:[#allocation6 + $0xa] sm:$0xff] %vm496, %v2493
        %2498 = vst.msk [vmem:[#allocation6 + $0x12] sm:$0xff] %vm496, %v2494
        %vm2499 = vcmask 975872
        %2500 = vst.msk [vmem:[#allocation6 + $0x1a] sm:$0x3] %vm2499, %v2495
        %v2501 = vld [vmem:[#allocation6] sm:$0xff]
        %v2502 = vld [vmem:[#allocation6 + $0x8] sm:$0xff]
        %v2503 = vld [vmem:[#allocation6 + $0x10] sm:$0xff]
        %v2504 = vld [vmem:[#allocation6 + $0x18] sm:$0xf]
        %v2505 = vld [vmem:[%s9] sm:$0xff]
        %v2506 = vld [vmem:[%s9 + $0x8] sm:$0xff]
        %v2507 = vld [vmem:[%s9 + $0x10] sm:$0xff]
        %v2508 = vld [vmem:[%s9 + $0x18] sm:$0xff]
        %v2509 = vld [vmem:[%s9 + $0x20] sm:$0xff]
        %v2510 = vld [vmem:[%s9 + $0x28] sm:$0xff]
        %v2511 = vld [vmem:[%s9 + $0x30] sm:$0xff]
        %v2512 = vld [vmem:[%s9 + $0x38] sm:$0xff]
        %v2513 = vld [vmem:[%s9 + $0x40] sm:$0xff]
        %v2514 = vld [vmem:[%s9 + $0x48] sm:$0xff]
        %v2515 = vld [vmem:[%s9 + $0x50] sm:$0xff]
        %v2516 = vld [vmem:[%s9 + $0x58] sm:$0xff]
        %v2517 = vld [vmem:[%s9 + $0x60] sm:$0xff]
        %v2518 = vld [vmem:[%s9 + $0x68] sm:$0xff]
        %v2519 = vld [vmem:[%s9 + $0x70] sm:$0xff]
        %v2520 = vld [vmem:[#allocation6 + $0x1] sm:$0xff]
        %v2521 = vld [vmem:[#allocation6 + $0x9] sm:$0xff]
        %v2522 = vld [vmem:[#allocation6 + $0x11] sm:$0xff]
        %v2523 = vld [vmem:[#allocation6 + $0x19] sm:$0xf]
        %s2524 = scalar_lea.vmem %s9, 120
        %v2525 = vld [vmem:[%s2524] sm:$0xff]
        %v2526 = vld [vmem:[%s2524 + $0x8] sm:$0xff]
        %v2527 = vld [vmem:[%s2524 + $0x10] sm:$0xff]
        %v2528 = vld [vmem:[%s2524 + $0x18] sm:$0xff]
        %v2529 = vld [vmem:[%s2524 + $0x20] sm:$0xff]
        %v2530 = vld [vmem:[%s2524 + $0x28] sm:$0xff]
        %v2531 = vld [vmem:[%s2524 + $0x30] sm:$0xff]
        %v2532 = vld [vmem:[%s2524 + $0x38] sm:$0xff]
        %v2533 = vld [vmem:[%s2524 + $0x40] sm:$0xff]
        %v2534 = vld [vmem:[%s2524 + $0x48] sm:$0xff]
        %v2535 = vld [vmem:[%s2524 + $0x50] sm:$0xff]
        %v2536 = vld [vmem:[%s2524 + $0x58] sm:$0xff]
        %v2537 = vld [vmem:[%s2524 + $0x60] sm:$0xff]
        %v2538 = vld [vmem:[%s2524 + $0x68] sm:$0xff]
        %v2539 = vld [vmem:[%s2524 + $0x70] sm:$0xff]
        %v2541 = vsel %vm496, %v2520, 0
        %v2544 = vsel %vm496, %v2521, 0
        %v2547 = vsel %vm496, %v2522, 0
        %v2550 = vsel %vm496, %v2523, 0
        %2552 = vmatprep.subr.mxu0 0.0
        %2553 = vmatpush1.msra.mxu0 %v2525
        %2554 = vmatprep.subr.mxu0 0.0
        %2555 = vmatpush1.msra.mxu0 %v2526
        %2556 = vmatprep.subr.mxu0 0.0
        %2557 = vmatpush1.msra.mxu0 %v2527
        %2558 = vmatprep.subr.mxu0 0.0
        %2559 = vmatpush1.msra.mxu0 %v2528
        %2560 = vmatprep.subr.mxu0 0.0
        %2561 = vmatpush1.msra.mxu0 %v2529
        %2562 = vmatprep.subr.mxu0 0.0
        %2563 = vmatpush1.msra.mxu0 %v2530
        %2564 = vmatprep.subr.mxu0 0.0
        %2565 = vmatpush1.msra.mxu0 %v2531
        %2566 = vmatprep.subr.mxu0 0.0
        %2567 = vmatpush1.msra.mxu0 %v2532
        %2568 = vmatprep.subr.mxu0 0.0
        %2569 = vmatpush1.msra.mxu0 %v2533
        %2570 = vmatprep.subr.mxu0 0.0
        %2571 = vmatpush1.msra.mxu0 %v2534
        %2572 = vmatprep.subr.mxu0 0.0
        %2573 = vmatpush1.msra.mxu0 %v2535
        %2574 = vmatprep.subr.mxu0 0.0
        %2575 = vmatpush1.msra.mxu0 %v2536
        %2576 = vmatprep.subr.mxu0 0.0
        %2577 = vmatpush1.msra.mxu0 %v2537
        %2578 = vmatprep.subr.mxu0 0.0
        %2579 = vmatpush1.msra.mxu0 %v2538
        %2580 = vmatprep.subr.mxu0 0.0
        %2581 = vmatpush1.msra.mxu0 %v2539
        %2582 = vmatprep.subr.mxu0 0.0
        %2583 = vmatpush1.msra.mxu0 0.0
        %2584 = vmatprep.subr.mxu0 0.0
        %2585 = vmatpush1.msra.mxu0 0.0
        %2586 = vmatprep.subr.mxu0 0.0
        %2587 = vmatpush1.msra.mxu0 0.0
        %2588 = vmatprep.subr.mxu0 0.0
        %2589 = vmatpush1.msra.mxu0 0.0
        %2590 = vmatprep.subr.mxu0 0.0
        %2591 = vmatpush1.msra.mxu0 0.0
        %2592 = vmatprep.subr.mxu0 0.0
        %2593 = vmatpush1.msra.mxu0 0.0
        %2594 = vmatprep.subr.mxu0 0.0
        %2595 = vmatpush1.msra.mxu0 0.0
        %2596 = vmatprep.subr.mxu0 0.0
        %2597 = vmatpush1.msra.mxu0 0.0
        %2598 = vmatprep.subr.mxu0 0.0
        %2599 = vmatpush1.msra.mxu0 0.0
        %2600 = vmatprep.subr.mxu0 0.0
        %2601 = vmatpush1.msra.mxu0 0.0
        %2602 = vmatprep.subr.mxu0 0.0
        %2603 = vmatpush1.msra.mxu0 0.0
        %2604 = vmatprep.subr.mxu0 0.0
        %2605 = vmatpush1.msra.mxu0 0.0
        %2606 = vmatprep.subr.mxu0 0.0
        %2607 = vmatpush1.msra.mxu0 0.0
        %2608 = vmatprep.subr.mxu0 0.0
        %2609 = vmatpush1.msra.mxu0 0.0
        %2610 = vmatprep.subr.mxu0 0.0
        %2611 = vmatpush1.msra.mxu0 0.0
        %2612 = vmatprep.subr.mxu0 0.0
        %2613 = vmatpush1.msra.mxu0 0.0
        %2614 = vmatprep.subr.mxu0 0.0
        %2615 = vmatpush1.msra.mxu0 0.0
        %2616 = vmatprep.mubr.f32.mxu0 0.0
        %2617 = vmatmul.mubr.f32.gmra.mrb[0].mxu0 %v2541
        %v2618 = vpop.f32.mrb[0].mxu0
        %v2619 = vadd.f32 0.0, %v2618
        %v2620 = vpop.f32.mrb[0].mxu0
        %2621 = vmatprep.mubr.f32.mxu0 0.0
        %2622 = vmatmul.mubr.f32.gmra.mrb[0].mxu0 %v2544
        %v2623 = vpop.f32.mrb[0].mxu0
        %v2624 = vadd.f32 0.0, %v2623
        %v2625 = vpop.f32.mrb[0].mxu0
        %2626 = vmatprep.mubr.f32.mxu0 0.0
        %2627 = vmatmul.mubr.f32.gmra.mrb[0].mxu0 %v2547
        %v2628 = vpop.f32.mrb[0].mxu0
        %v2629 = vadd.f32 0.0, %v2628
        %v2630 = vpop.f32.mrb[0].mxu0
        %2631 = vmatprep.mubr.f32.mxu0 0.0
        %2632 = vmatmul.mubr.f32.gmra.mrb[0].mxu0 %v2550
        %v2633 = vpop.f32.mrb[0].mxu0
        %v2634 = vadd.f32 0.0, %v2633
        %v2635 = vpop.f32.mrb[0].mxu0
        %2636 = vdwg.mxu0
        %v2638 = vsel %vm496, %v2501, 0
        %v2641 = vsel %vm496, %v2502, 0
        %v2644 = vsel %vm496, %v2503, 0
        %v2647 = vsel %vm496, %v2504, 0
        %2649 = vmatprep.subr.mxu0 0.0
        %2650 = vmatpush1.msra.mxu0 %v2505
        %2651 = vmatprep.subr.mxu0 0.0
        %2652 = vmatpush1.msra.mxu0 %v2506
        %2653 = vmatprep.subr.mxu0 0.0
        %2654 = vmatpush1.msra.mxu0 %v2507
        %2655 = vmatprep.subr.mxu0 0.0
        %2656 = vmatpush1.msra.mxu0 %v2508
        %2657 = vmatprep.subr.mxu0 0.0
        %2658 = vmatpush1.msra.mxu0 %v2509
        %2659 = vmatprep.subr.mxu0 0.0
        %2660 = vmatpush1.msra.mxu0 %v2510
        %2661 = vmatprep.subr.mxu0 0.0
        %2662 = vmatpush1.msra.mxu0 %v2511
        %2663 = vmatprep.subr.mxu0 0.0
        %2664 = vmatpush1.msra.mxu0 %v2512
        %2665 = vmatprep.subr.mxu0 0.0
        %2666 = vmatpush1.msra.mxu0 %v2513
        %2667 = vmatprep.subr.mxu0 0.0
        %2668 = vmatpush1.msra.mxu0 %v2514
        %2669 = vmatprep.subr.mxu0 0.0
        %2670 = vmatpush1.msra.mxu0 %v2515
        %2671 = vmatprep.subr.mxu0 0.0
        %2672 = vmatpush1.msra.mxu0 %v2516
        %2673 = vmatprep.subr.mxu0 0.0
        %2674 = vmatpush1.msra.mxu0 %v2517
        %2675 = vmatprep.subr.mxu0 0.0
        %2676 = vmatpush1.msra.mxu0 %v2518
        %2677 = vmatprep.subr.mxu0 0.0
        %2678 = vmatpush1.msra.mxu0 %v2519
        %2679 = vmatprep.subr.mxu0 0.0
        %2680 = vmatpush1.msra.mxu0 0.0
        %2681 = vmatprep.subr.mxu0 0.0
        %2682 = vmatpush1.msra.mxu0 0.0
        %2683 = vmatprep.subr.mxu0 0.0
        %2684 = vmatpush1.msra.mxu0 0.0
        %2685 = vmatprep.subr.mxu0 0.0
        %2686 = vmatpush1.msra.mxu0 0.0
        %2687 = vmatprep.subr.mxu0 0.0
        %2688 = vmatpush1.msra.mxu0 0.0
        %2689 = vmatprep.subr.mxu0 0.0
        %2690 = vmatpush1.msra.mxu0 0.0
        %2691 = vmatprep.subr.mxu0 0.0
        %2692 = vmatpush1.msra.mxu0 0.0
        %2693 = vmatprep.subr.mxu0 0.0
        %2694 = vmatpush1.msra.mxu0 0.0
        %2695 = vmatprep.subr.mxu0 0.0
        %2696 = vmatpush1.msra.mxu0 0.0
        %2697 = vmatprep.subr.mxu0 0.0
        %2698 = vmatpush1.msra.mxu0 0.0
        %2699 = vmatprep.subr.mxu0 0.0
        %2700 = vmatpush1.msra.mxu0 0.0
        %2701 = vmatprep.subr.mxu0 0.0
        %2702 = vmatpush1.msra.mxu0 0.0
        %2703 = vmatprep.subr.mxu0 0.0
        %2704 = vmatpush1.msra.mxu0 0.0
        %2705 = vmatprep.subr.mxu0 0.0
        %2706 = vmatpush1.msra.mxu0 0.0
        %2707 = vmatprep.subr.mxu0 0.0
        %2708 = vmatpush1.msra.mxu0 0.0
        %2709 = vmatprep.subr.mxu0 0.0
        %2710 = vmatpush1.msra.mxu0 0.0
        %2711 = vmatprep.subr.mxu0 0.0
        %2712 = vmatpush1.msra.mxu0 0.0
        %2713 = vmatprep.mubr.f32.mxu0 0.0
        %2714 = vmatmul.mubr.f32.gmra.mrb[0].mxu0 %v2638
        %v2715 = vpop.f32.mrb[0].mxu0
        %v2716 = vadd.f32 %v2619, %v2715
        %v2717 = vpop.f32.mrb[0].mxu0
        %2718 = vmatprep.mubr.f32.mxu0 0.0
        %2719 = vmatmul.mubr.f32.gmra.mrb[0].mxu0 %v2641
        %v2720 = vpop.f32.mrb[0].mxu0
        %v2721 = vadd.f32 %v2624, %v2720
        %v2722 = vpop.f32.mrb[0].mxu0
        %2723 = vmatprep.mubr.f32.mxu0 0.0
        %2724 = vmatmul.mubr.f32.gmra.mrb[0].mxu0 %v2644
        %v2725 = vpop.f32.mrb[0].mxu0
        %v2726 = vadd.f32 %v2629, %v2725
        %v2727 = vpop.f32.mrb[0].mxu0
        %2728 = vmatprep.mubr.f32.mxu0 0.0
        %2729 = vmatmul.mubr.f32.gmra.mrb[0].mxu0 %v2647
        %v2730 = vpop.f32.mrb[0].mxu0
        %v2731 = vadd.f32 %v2634, %v2730
        %v2732 = vpop.f32.mrb[0].mxu0
        %2733 = vdwg.mxu0
        %v2734 = vld [vmem:[#allocation6 + $0x2] sm:$0xff]
        %v2735 = vld [vmem:[#allocation6 + $0xa] sm:$0xff]
        %v2736 = vld [vmem:[#allocation6 + $0x12] sm:$0xff]
        %v2737 = vld [vmem:[#allocation6 + $0x1a] sm:$0xf]
        %s2738 = scalar_lea.vmem %s9, 240
        %v2739 = vld [vmem:[%s2738] sm:$0xff]
        %v2740 = vld [vmem:[%s2738 + $0x8] sm:$0xff]
        %v2741 = vld [vmem:[%s2738 + $0x10] sm:$0xff]
        %v2742 = vld [vmem:[%s2738 + $0x18] sm:$0xff]
        %v2743 = vld [vmem:[%s2738 + $0x20] sm:$0xff]
        %v2744 = vld [vmem:[%s2738 + $0x28] sm:$0xff]
        %v2745 = vld [vmem:[%s2738 + $0x30] sm:$0xff]
        %v2746 = vld [vmem:[%s2738 + $0x38] sm:$0xff]
        %v2747 = vld [vmem:[%s2738 + $0x40] sm:$0xff]
        %v2748 = vld [vmem:[%s2738 + $0x48] sm:$0xff]
        %v2749 = vld [vmem:[%s2738 + $0x50] sm:$0xff]
        %v2750 = vld [vmem:[%s2738 + $0x58] sm:$0xff]
        %v2751 = vld [vmem:[%s2738 + $0x60] sm:$0xff]
        %v2752 = vld [vmem:[%s2738 + $0x68] sm:$0xff]
        %v2753 = vld [vmem:[%s2738 + $0x70] sm:$0xff]
        %v2755 = vsel %vm496, %v2734, 0
        %v2758 = vsel %vm496, %v2735, 0
        %v2761 = vsel %vm496, %v2736, 0
        %v2764 = vsel %vm496, %v2737, 0
        %2766 = vmatprep.subr.mxu0 0.0
        %2767 = vmatpush1.msra.mxu0 %v2739
        %2768 = vmatprep.subr.mxu0 0.0
        %2769 = vmatpush1.msra.mxu0 %v2740
        %2770 = vmatprep.subr.mxu0 0.0
        %2771 = vmatpush1.msra.mxu0 %v2741
        %2772 = vmatprep.subr.mxu0 0.0
        %2773 = vmatpush1.msra.mxu0 %v2742
        %2774 = vmatprep.subr.mxu0 0.0
        %2775 = vmatpush1.msra.mxu0 %v2743
        %2776 = vmatprep.subr.mxu0 0.0
        %2777 = vmatpush1.msra.mxu0 %v2744
        %2778 = vmatprep.subr.mxu0 0.0
        %2779 = vmatpush1.msra.mxu0 %v2745
        %2780 = vmatprep.subr.mxu0 0.0
        %2781 = vmatpush1.msra.mxu0 %v2746
        %2782 = vmatprep.subr.mxu0 0.0
        %2783 = vmatpush1.msra.mxu0 %v2747
        %2784 = vmatprep.subr.mxu0 0.0
        %2785 = vmatpush1.msra.mxu0 %v2748
        %2786 = vmatprep.subr.mxu0 0.0
        %2787 = vmatpush1.msra.mxu0 %v2749
        %2788 = vmatprep.subr.mxu0 0.0
        %2789 = vmatpush1.msra.mxu0 %v2750
        %2790 = vmatprep.subr.mxu0 0.0
        %2791 = vmatpush1.msra.mxu0 %v2751
        %2792 = vmatprep.subr.mxu0 0.0
        %2793 = vmatpush1.msra.mxu0 %v2752
        %2794 = vmatprep.subr.mxu0 0.0
        %2795 = vmatpush1.msra.mxu0 %v2753
        %2796 = vmatprep.subr.mxu0 0.0
        %2797 = vmatpush1.msra.mxu0 0.0
        %2798 = vmatprep.subr.mxu0 0.0
        %2799 = vmatpush1.msra.mxu0 0.0
        %2800 = vmatprep.subr.mxu0 0.0
        %2801 = vmatpush1.msra.mxu0 0.0
        %2802 = vmatprep.subr.mxu0 0.0
        %2803 = vmatpush1.msra.mxu0 0.0
        %2804 = vmatprep.subr.mxu0 0.0
        %2805 = vmatpush1.msra.mxu0 0.0
        %2806 = vmatprep.subr.mxu0 0.0
        %2807 = vmatpush1.msra.mxu0 0.0
        %2808 = vmatprep.subr.mxu0 0.0
        %2809 = vmatpush1.msra.mxu0 0.0
        %2810 = vmatprep.subr.mxu0 0.0
        %2811 = vmatpush1.msra.mxu0 0.0
        %2812 = vmatprep.subr.mxu0 0.0
        %2813 = vmatpush1.msra.mxu0 0.0
        %2814 = vmatprep.subr.mxu0 0.0
        %2815 = vmatpush1.msra.mxu0 0.0
        %2816 = vmatprep.subr.mxu0 0.0
        %2817 = vmatpush1.msra.mxu0 0.0
        %2818 = vmatprep.subr.mxu0 0.0
        %2819 = vmatpush1.msra.mxu0 0.0
        %2820 = vmatprep.subr.mxu0 0.0
        %2821 = vmatpush1.msra.mxu0 0.0
        %2822 = vmatprep.subr.mxu0 0.0
        %2823 = vmatpush1.msra.mxu0 0.0
        %2824 = vmatprep.subr.mxu0 0.0
        %2825 = vmatpush1.msra.mxu0 0.0
        %2826 = vmatprep.subr.mxu0 0.0
        %2827 = vmatpush1.msra.mxu0 0.0
        %2828 = vmatprep.subr.mxu0 0.0
        %2829 = vmatpush1.msra.mxu0 0.0
        %2830 = vmatprep.mubr.f32.mxu0 0.0
        %2831 = vmatmul.mubr.f32.gmra.mrb[0].mxu0 %v2755
        %v2832 = vpop.f32.mrb[0].mxu0
        %v2833 = vadd.f32 0.0, %v2832
        %v2834 = vpop.f32.mrb[0].mxu0
        %2835 = vmatprep.mubr.f32.mxu0 0.0
        %2836 = vmatmul.mubr.f32.gmra.mrb[0].mxu0 %v2758
        %v2837 = vpop.f32.mrb[0].mxu0
        %v2838 = vadd.f32 0.0, %v2837
        %v2839 = vpop.f32.mrb[0].mxu0
        %2840 = vmatprep.mubr.f32.mxu0 0.0
        %2841 = vmatmul.mubr.f32.gmra.mrb[0].mxu0 %v2761
        %v2842 = vpop.f32.mrb[0].mxu0
        %v2843 = vadd.f32 0.0, %v2842
        %v2844 = vpop.f32.mrb[0].mxu0
        %2845 = vmatprep.mubr.f32.mxu0 0.0
        %2846 = vmatmul.mubr.f32.gmra.mrb[0].mxu0 %v2764
        %v2847 = vpop.f32.mrb[0].mxu0
        %v2848 = vadd.f32 0.0, %v2847
        %v2849 = vpop.f32.mrb[0].mxu0
        %2850 = vdwg.mxu0
        %v2851 = vadd.f32 %v2716, %v2833
        %v2852 = vadd.f32 %v2721, %v2838
        %v2853 = vadd.f32 %v2726, %v2843
        %v2854 = vadd.f32 %v2731, %v2848
        %v2855 = vld [vmem:[%s10] sm:$0x1]
        %v2857 = vlaneseq
        %v2858 = vshrl.u32 %v2857, 7
        %v2859 = vsub.s32 0, %v2858
        %v2860 = vrot.slane %v2855, %v2859
        %v2862 = vadd.f32 %v2851, %v2860
        %v2863 = vadd.f32 %v2852, %v2860
        %v2864 = vadd.f32 %v2853, %v2860
        %v2865 = vadd.f32 %v2854, %v2860
        %v2866 = vxor.u32 %v2862, 2147483648
        %v2867 = vxor.u32 %v2863, 2147483648
        %v2868 = vxor.u32 %v2864, 2147483648
        %v2869 = vxor.u32 %v2865, 2147483648
        %v2870 = vmul.f32 %v2866, 1.442695
        %v2871 = vpow.pop %v2870
        %v2872 = vmul.f32 %v2867, 1.442695
        %v2873 = vpow.pop %v2872
        %v2874 = vmul.f32 %v2868, 1.442695
        %v2875 = vpow.pop %v2874
        %v2876 = vmul.f32 %v2869, 1.442695
        %v2877 = vpow.pop %v2876
        %v2878 = vadd.f32 %v2871, 1.0
        %v2879 = vadd.f32 %v2873, 1.0
        %v2880 = vadd.f32 %v2875, 1.0
        %v2881 = vadd.f32 %v2877, 1.0
        %v2882 = vrcp.pop %v2878
        %v2883 = vmul.f32 1.0, %v2882
        %v2884 = vrcp.pop %v2879
        %v2885 = vmul.f32 1.0, %v2884
        %v2886 = vrcp.pop %v2880
        %v2887 = vmul.f32 1.0, %v2886
        %v2888 = vrcp.pop %v2881
        %v2889 = vmul.f32 1.0, %v2888
        %vm2890 = vcmask 228352
        %2891 = vst.msk [vmem:[%s467] sm:$0xff] %vm2890, %v2883
        %2892 = vst.msk [vmem:[%s467 + $0x8] sm:$0xff] %vm2890, %v2885
        %2893 = vst.msk [vmem:[%s467 + $0x10] sm:$0xff] %vm2890, %v2887
        %vm2894 = vcmask 224256
        %2895 = vst.msk [vmem:[%s467 + $0x18] sm:$0xf] %vm2894, %v2889
        %p2896 = scmp.lt.s32.totalorder %s26, 1
        %s2897 = scalar_select %p2896, %s26, 1
        %s2898 = smul.addr %s2897, 4
        %s2899 = smul.addr %s2898, 8
        %s2900 = scalar_lea.vmem %s13, %s2899
        // Predicated region
        $region81: #{decoder_forward.1} parent=71 // pred_check
          %p2901 = pneg %p322
        $region82: #{decoder_forward.1} parent=71 // pred_check_branch
          %2903 = sbr.rel (%p2901) target = $region84
        $region83: #{decoder_forward.1} parent=71 // pred_region
          _
        $region84: #{decoder_forward.1} parent=71 // pred_fallthru
          _
      $region72: #{decoder_forward.1} parent=5 // pred_fallthru
        _
      %p2904 = scmp.le.s32.totalorder 2, %s21
      // Predicated region
      $region85: #{decoder_forward.1} parent=5 // pred_check
        %p2905 = pneg %p2904
      $region86: #{decoder_forward.1} parent=5 // pred_check_branch
        %2907 = sbr.rel (%p2905) target = $region88
      $region87: #{decoder_forward.1} parent=5 // pred_region
        %s2908 = ssub.s32 %s21, 2
        // Predicated region
        $region89: #{decoder_forward.1} parent=87 // pred_check
          %p2909 = pneg %p328
        $region90: #{decoder_forward.1} parent=87 // pred_check_branch
          %2911 = sbr.rel (%p2909) target = $region92
        $region91: #{decoder_forward.1} parent=87 // pred_region
          %p2912 = scmp.lt.s32.totalorder %s27, 1
          %s2913 = scalar_select %p2912, %s27, 1
          %s2914 = smul.addr %s2913, 4
          %s2915 = smul.addr %s2914, 8
          %s2916 = scalar_lea.vmem %s13, %s2915
        $region92: #{decoder_forward.1} parent=87 // pred_fallthru
          _
      $region88: #{decoder_forward.1} parent=5 // pred_fallthru
        _
    $region6: #{decoder_forward.1} parent=1 // loop_footer
      %s25 = sadd.s32 1, %s21
    $region7: #{decoder_forward.1} parent=1 // loop_footer_branch
      %20 = sbr.rel target = $region3
    $region8: #{decoder_forward.1} parent=1 // loop_exit
      _
    %2917 = vsyncpa [#allocation8], 1
    %s2918 = scalar_lea.sflag [#allocation8], 1
    %2919 = vsyncpa %s2918, 1
    %2920 = vsyncpa [#allocation10], 1

</llo_original>
